<compile_context>
chip_gen: v6e
topology: v6e:2x2x1
jax: 0.10.0
libtpu: 0.0.40
codegen_flags: <defaults>
</compile_context>

<pallas_src>
import functools

import jax
import jax.numpy as jnp
from jax import lax
from jax.experimental import pallas as pl
from jax.experimental.pallas import tpu as pltpu


def _round_up(x, m):
    return ((x + m - 1) // m) * m


def _pad_gate_cols(w, H, Hp):
    """Pad the trailing 4H axis gate-block-wise: gate k goes to [k*Hp, k*Hp+H)."""
    if Hp == H:
        return w
    parts = []
    for k in range(4):
        blk = w[..., k * H:(k + 1) * H]
        pad = [(0, 0)] * (blk.ndim - 1) + [(0, Hp - H)]
        parts.append(jnp.pad(blk, pad))
    return jnp.concatenate(parts, axis=-1)


def lstm_linear_kernel(x_ref, wih_ref, whh_ref, b_ref, wlin_ref, blin_ref,
                       out_ref, xproj_scr, h_scr, c_scr, *, T, Bp, Hp):
    # ---- prologue: one big MXU matmul for the whole input projection,
    # combined bias folded in (kept off the serial critical path).
    xproj_scr[...] = (
        jnp.dot(x_ref[...], wih_ref[...], preferred_element_type=jnp.float32)
        + b_ref[...])
    h_scr[...] = jnp.zeros_like(h_scr)
    c_scr[...] = jnp.zeros_like(c_scr)

    def step(t, carry):
        # (Bp, 4Hp) f32 slice of the precomputed projection; Bp % 8 == 0 so the
        # start offset is sublane-aligned (static once unrolled).
        xp_t = xproj_scr[pl.ds(t * Bp, Bp), :]
        h_prev = h_scr[...]
        gates = xp_t + jnp.dot(h_prev.astype(whh_ref.dtype), whh_ref[...],
                               preferred_element_type=jnp.float32)
        # Hp is a multiple of 128 -> every gate slice is a whole-vreg lane block.
        i_g = jax.nn.sigmoid(gates[:, 0 * Hp:1 * Hp])
        f_g = jax.nn.sigmoid(gates[:, 1 * Hp:2 * Hp])
        g_g = jnp.tanh(gates[:, 2 * Hp:3 * Hp])
        o_g = jax.nn.sigmoid(gates[:, 3 * Hp:4 * Hp])
        c_new = f_g * c_scr[...] + i_g * g_g
        h_scr[...] = o_g * jnp.tanh(c_new)
        c_scr[...] = c_new
        return carry

    # Short fixed trip counts: fully unroll (LLO visibility / cross-step overlap).
    # For long sequences fall back to partial unrolling to bound code size.
    unroll = True if T <= 32 else 4
    lax.fori_loop(0, T, step, None, unroll=unroll)

    # ---- epilogue: final hidden state through Linear(H, 10), lane-dense store.
    out_ref[...] = (
        jnp.dot(h_scr[...].astype(wlin_ref.dtype), wlin_ref[...],
                preferred_element_type=jnp.float32)
        + blin_ref[...]).astype(out_ref.dtype)


def rnn_zqx_forward(x, params, compute_dtype=jnp.float32):
    """x: (B, T, D_in) float32, batch_first (PyTorch convention)."""
    B, T, D = x.shape
    H = params["w_hh_t"].shape[0]
    n_out = params["w_lin_t"].shape[1]

    Bp = _round_up(B, 8)          # sublane grain
    Hp = _round_up(H, 128)        # lane grain -> vreg-aligned gate slices
    Np = _round_up(n_out, 128)    # lane-dense output store

    # time-major, batch padded, flattened to (T*Bp, D) so the input projection
    # is a single large matmul.
    x_tm = jnp.transpose(x, (1, 0, 2)).astype(jnp.float32)        # (T, B, D)
    x_tm = jnp.pad(x_tm, ((0, 0), (0, Bp - B), (0, 0)))           # (T, Bp, D)
    x_flat = x_tm.reshape(T * Bp, D).astype(compute_dtype)        # (T*Bp, D)

    w_ih_p = _pad_gate_cols(params["w_ih_t"], H, Hp).astype(compute_dtype)   # (D, 4Hp)
    w_hh_p = jnp.pad(_pad_gate_cols(params["w_hh_t"], H, Hp),
                     ((0, Hp - H), (0, 0))).astype(compute_dtype)            # (Hp, 4Hp)
    bias_p = _pad_gate_cols(params["bias"], H, Hp).astype(jnp.float32)       # (1, 4Hp)
    w_lin_p = jnp.pad(params["w_lin_t"],
                      ((0, Hp - H), (0, Np - n_out))).astype(compute_dtype)  # (Hp, Np)
    b_lin_p = jnp.pad(params["b_lin"],
                      ((0, 0), (0, Np - n_out))).astype(jnp.float32)         # (1, Np)

    kernel = functools.partial(lstm_linear_kernel, T=T, Bp=Bp, Hp=Hp)

    out_padded = pl.pallas_call(
        kernel,
        out_shape=jax.ShapeDtypeStruct((Bp, Np), jnp.float32),
        grid_spec=pltpu.PrefetchScalarGridSpec(
            num_scalar_prefetch=0,
            grid=(1,),   # recurrence lives inside the kernel (no per-step grid overhead)
            in_specs=[
                pl.BlockSpec((T * Bp, D), lambda i: (0, 0)),     # x (time-major, flat)
                pl.BlockSpec((D, 4 * Hp), lambda i: (0, 0)),     # W_ih^T (gate-padded)
                pl.BlockSpec((Hp, 4 * Hp), lambda i: (0, 0)),    # W_hh^T (gate-padded)
                pl.BlockSpec((1, 4 * Hp), lambda i: (0, 0)),     # b_ih + b_hh
                pl.BlockSpec((Hp, Np), lambda i: (0, 0)),        # W_lin^T
                pl.BlockSpec((1, Np), lambda i: (0, 0)),         # b_lin
            ],
            out_specs=pl.BlockSpec((Bp, Np), lambda i: (0, 0)),
            scratch_shapes=[
                pltpu.VMEM((T * Bp, 4 * Hp), jnp.float32),   # precomputed x projection
                pltpu.VMEM((Bp, Hp), jnp.float32),           # h state (f32)
                pltpu.VMEM((Bp, Hp), jnp.float32),           # c state (f32)
            ],
        ),
        compiler_params=pltpu.CompilerParams(
            dimension_semantics=("arbitrary",)),
    )(x_flat, w_ih_p, w_hh_p, bias_p, w_lin_p, b_lin_p)

    return out_padded[:B, :n_out]


def rnn_zqx_reference(x, params, compute_dtype=jnp.float32):
    """Pure-JAX reference with PyTorch LSTM semantics, precision-matched to the kernel."""
    B, T, D = x.shape
    H = params["w_hh_t"].shape[0]
    cd = compute_dtype
    w_ih = params["w_ih_t"].astype(cd)
    w_hh = params["w_hh_t"].astype(cd)
    w_lin = params["w_lin_t"].astype(cd)
    h = jnp.zeros((B, H), jnp.float32)
    c = jnp.zeros((B, H), jnp.float32)
    for t in range(T):
        gates = (jnp.dot(x[:, t, :].astype(cd), w_ih,
                         preferred_element_type=jnp.float32)
                 + jnp.dot(h.astype(cd), w_hh,
                           preferred_element_type=jnp.float32)
                 + params["bias"])
        i_g = jax.nn.sigmoid(gates[:, 0 * H:1 * H])
        f_g = jax.nn.sigmoid(gates[:, 1 * H:2 * H])
        g_g = jnp.tanh(gates[:, 2 * H:3 * H])
        o_g = jax.nn.sigmoid(gates[:, 3 * H:4 * H])
        c = f_g * c + i_g * g_g
        h = o_g * jnp.tanh(c)
    return (jnp.dot(h.astype(cd), w_lin, preferred_element_type=jnp.float32)
            + params["b_lin"])


def init_params(key, D_in, H, n_out=10):
    """Deterministic init matching PyTorch shapes (uniform(-1/sqrt(H), 1/sqrt(H)))."""
    ks = jax.random.split(key, 6)
    s = 1.0 / jnp.sqrt(H)
    w_ih = jax.random.uniform(ks[0], (4 * H, D_in), jnp.float32, -s, s)
    w_hh = jax.random.uniform(ks[1], (4 * H, H), jnp.float32, -s, s)
    b_ih = jax.random.uniform(ks[2], (4 * H,), jnp.float32, -s, s)
    b_hh = jax.random.uniform(ks[3], (4 * H,), jnp.float32, -s, s)
    w_lin = jax.random.uniform(ks[4], (n_out, H), jnp.float32, -s, s)
    b_lin = jax.random.uniform(ks[5], (n_out,), jnp.float32, -s, s)
    return {
        "w_ih_t": w_ih.T,                         # (D_in, 4H)  gate order [i, f, g, o]
        "w_hh_t": w_hh.T,                         # (H, 4H)
        "bias": (b_ih + b_hh).reshape(1, 4 * H),  # (1, 4H)
        "w_lin_t": w_lin.T,                       # (H, n_out)
        "b_lin": b_lin.reshape(1, n_out),         # (1, n_out)
    }


if __name__ == "__main__":
    # Small shapes consistent with the module: x is (B, T, D_in), batch_first.
    B, T, D_in, H = 2, 8, 16, 32

    key = jax.random.PRNGKey(0)
    k_x, k_p = jax.random.split(key)
    x = jax.random.normal(k_x, (B, T, D_in), jnp.float32)
    params = init_params(k_p, D_in, H)

    # f32 path: tight check against the pure-JAX reference.
    out = jax.block_until_ready(rnn_zqx_forward(x, params))
    ref = rnn_zqx_reference(x, params)
    assert out.shape == (B, 10)
    assert jnp.allclose(out, ref, atol=1e-5, rtol=1e-5), (out, ref)

    # bf16-weight path (f32 MXU accumulation + f32 gates) is available via
    # rnn_zqx_forward(x, params, compute_dtype=jnp.bfloat16).

    print("KERNEL_OK")
</pallas_src>

<mosaic_0001>
module attributes {stable_mosaic.version = 11 : i64} {
  func.func @lstm_linear_kernel(%arg0: i32, %arg1: memref<64x16xf32, #tpu.memory_space<vmem>>, %arg2: memref<16x512xf32, #tpu.memory_space<vmem>>, %arg3: memref<128x512xf32, #tpu.memory_space<vmem>>, %arg4: memref<1x512xf32, #tpu.memory_space<vmem>>, %arg5: memref<128x128xf32, #tpu.memory_space<vmem>>, %arg6: memref<1x128xf32, #tpu.memory_space<vmem>>, %arg7: memref<8x128xf32, #tpu.memory_space<vmem>>, %arg8: memref<64x512xf32, #tpu.memory_space<vmem>>, %arg9: memref<8x128xf32, #tpu.memory_space<vmem>>, %arg10: memref<8x128xf32, #tpu.memory_space<vmem>>) attributes {dimension_semantics = [#tpu.dimension_semantics<arbitrary>], iteration_bounds = array<i64: 1>, scalar_prefetch = 0 : i64, scratch_operands = 3 : i64, tpu.core_type = #tpu.core_type<tc>, window_params = [{pipeline_mode = #tpu.pipeline_mode<synchronous>, transform_indices = @transform_0, window_bounds = array<i64: 64, 16>}, {pipeline_mode = #tpu.pipeline_mode<synchronous>, transform_indices = @transform_1, window_bounds = array<i64: 16, 512>}, {pipeline_mode = #tpu.pipeline_mode<synchronous>, transform_indices = @transform_2, window_bounds = array<i64: 128, 512>}, {pipeline_mode = #tpu.pipeline_mode<synchronous>, transform_indices = @transform_3, window_bounds = array<i64: 1, 512>}, {pipeline_mode = #tpu.pipeline_mode<synchronous>, transform_indices = @transform_4, window_bounds = array<i64: 128, 128>}, {pipeline_mode = #tpu.pipeline_mode<synchronous>, transform_indices = @transform_5, window_bounds = array<i64: 1, 128>}, {pipeline_mode = #tpu.pipeline_mode<synchronous>, transform_indices = @transform_6, window_bounds = array<i64: 8, 128>}]} {
    %c0 = arith.constant 0 : index
    %c0_0 = arith.constant 0 : index
    %0 = vector.load %arg1[%c0, %c0_0] : memref<64x16xf32, #tpu.memory_space<vmem>>, vector<64x16xf32>
    %c0_1 = arith.constant 0 : index
    %c0_2 = arith.constant 0 : index
    %1 = vector.load %arg2[%c0_1, %c0_2] : memref<16x512xf32, #tpu.memory_space<vmem>>, vector<16x512xf32>
    %cst = arith.constant dense<0.000000e+00> : vector<64x512xf32>
    %2 = tpu.matmul %0, %1, %cst {dimension_numbers = #tpu.dot_dimension_numbers<[1], [0], [0], [1], [0, 0, 1, 1], [], []>} : vector<64x16xf32>, vector<16x512xf32>, vector<64x512xf32> -> vector<64x512xf32>
    %c0_3 = arith.constant 0 : index
    %c0_4 = arith.constant 0 : index
    %3 = vector.load %arg4[%c0_3, %c0_4] : memref<1x512xf32, #tpu.memory_space<vmem>>, vector<1x512xf32>
    %4 = vector.broadcast %3 : vector<1x512xf32> to vector<64x512xf32>
    %5 = arith.addf %2, %4 : vector<64x512xf32>
    %c0_5 = arith.constant 0 : index
    %c0_6 = arith.constant 0 : index
    %6 = vector.load %arg8[%c0_5, %c0_6] : memref<64x512xf32, #tpu.memory_space<vmem>>, vector<64x512xf32>
    tpu.vector_store %arg8[%c0_5, %c0_6], %5 {strides = array<i32>} : memref<64x512xf32, #tpu.memory_space<vmem>>, vector<64x512xf32>,
    %cst_7 = arith.constant 0.000000e+00 : f32
    %7 = vector.broadcast %cst_7 : f32 to vector<8x128xf32>
    %c0_8 = arith.constant 0 : index
    %c0_9 = arith.constant 0 : index
    %8 = vector.load %arg9[%c0_8, %c0_9] : memref<8x128xf32, #tpu.memory_space<vmem>>, vector<8x128xf32>
    tpu.vector_store %arg9[%c0_8, %c0_9], %7 {strides = array<i32>} : memref<8x128xf32, #tpu.memory_space<vmem>>, vector<8x128xf32>,
    %cst_10 = arith.constant 0.000000e+00 : f32
    %9 = vector.broadcast %cst_10 : f32 to vector<8x128xf32>
    %c0_11 = arith.constant 0 : index
    %c0_12 = arith.constant 0 : index
    %10 = vector.load %arg10[%c0_11, %c0_12] : memref<8x128xf32, #tpu.memory_space<vmem>>, vector<8x128xf32>
    tpu.vector_store %arg10[%c0_11, %c0_12], %9 {strides = array<i32>} : memref<8x128xf32, #tpu.memory_space<vmem>>, vector<8x128xf32>,
    %c0_i32 = arith.constant 0 : i32
    %c8_i32 = arith.constant 8 : i32
    %11 = arith.muli %c0_i32, %c8_i32 : i32
    %12 = arith.index_cast %11 : i32 to index
    %c0_13 = arith.constant 0 : index
    %13 = vector.load %arg8[%12, %c0_13] : memref<64x512xf32, #tpu.memory_space<vmem>>, vector<8x512xf32>
    %c0_14 = arith.constant 0 : index
    %c0_15 = arith.constant 0 : index
    %14 = vector.load %arg9[%c0_14, %c0_15] : memref<8x128xf32, #tpu.memory_space<vmem>>, vector<8x128xf32>
    %c0_16 = arith.constant 0 : index
    %c0_17 = arith.constant 0 : index
    %15 = vector.load %arg3[%c0_16, %c0_17] : memref<128x512xf32, #tpu.memory_space<vmem>>, vector<128x512xf32>
    %cst_18 = arith.constant dense<0.000000e+00> : vector<8x512xf32>
    %16 = tpu.matmul %14, %15, %cst_18 {dimension_numbers = #tpu.dot_dimension_numbers<[1], [0], [0], [1], [0, 0, 1, 1], [], []>} : vector<8x128xf32>, vector<128x512xf32>, vector<8x512xf32> -> vector<8x512xf32>
    %17 = arith.addf %13, %16 : vector<8x512xf32>
    %18 = vector.extract_strided_slice %17 {offsets = [0, 0], sizes = [8, 128], strides = [1, 1]} : vector<8x512xf32> to vector<8x128xf32>
    %19 = arith.negf %18 : vector<8x128xf32>
    %20 = math.exp %19 : vector<8x128xf32>
    %cst_19 = arith.constant 1.000000e+00 : f32
    %21 = vector.broadcast %cst_19 : f32 to vector<8x128xf32>
    %22 = arith.addf %21, %20 : vector<8x128xf32>
    %23 = arith.divf %21, %22 : vector<8x128xf32>
    %24 = vector.extract_strided_slice %17 {offsets = [0, 128], sizes = [8, 128], strides = [1, 1]} : vector<8x512xf32> to vector<8x128xf32>
    %25 = arith.negf %24 : vector<8x128xf32>
    %26 = math.exp %25 : vector<8x128xf32>
    %cst_20 = arith.constant 1.000000e+00 : f32
    %27 = vector.broadcast %cst_20 : f32 to vector<8x128xf32>
    %28 = arith.addf %27, %26 : vector<8x128xf32>
    %29 = arith.divf %27, %28 : vector<8x128xf32>
    %30 = vector.extract_strided_slice %17 {offsets = [0, 256], sizes = [8, 128], strides = [1, 1]} : vector<8x512xf32> to vector<8x128xf32>
    %31 = math.tanh %30 : vector<8x128xf32>
    %32 = vector.extract_strided_slice %17 {offsets = [0, 384], sizes = [8, 128], strides = [1, 1]} : vector<8x512xf32> to vector<8x128xf32>
    %33 = arith.negf %32 : vector<8x128xf32>
    %34 = math.exp %33 : vector<8x128xf32>
    %cst_21 = arith.constant 1.000000e+00 : f32
    %35 = vector.broadcast %cst_21 : f32 to vector<8x128xf32>
    %36 = arith.addf %35, %34 : vector<8x128xf32>
    %37 = arith.divf %35, %36 : vector<8x128xf32>
    %c0_22 = arith.constant 0 : index
    %c0_23 = arith.constant 0 : index
    %38 = vector.load %arg10[%c0_22, %c0_23] : memref<8x128xf32, #tpu.memory_space<vmem>>, vector<8x128xf32>
    %39 = arith.mulf %29, %38 : vector<8x128xf32>
    %40 = arith.mulf %23, %31 : vector<8x128xf32>
    %41 = arith.addf %39, %40 : vector<8x128xf32>
    %42 = math.tanh %41 : vector<8x128xf32>
    %43 = arith.mulf %37, %42 : vector<8x128xf32>
    %c0_24 = arith.constant 0 : index
    %c0_25 = arith.constant 0 : index
    %44 = vector.load %arg9[%c0_24, %c0_25] : memref<8x128xf32, #tpu.memory_space<vmem>>, vector<8x128xf32>
    tpu.vector_store %arg9[%c0_24, %c0_25], %43 {strides = array<i32>} : memref<8x128xf32, #tpu.memory_space<vmem>>, vector<8x128xf32>,
    %c0_26 = arith.constant 0 : index
    %c0_27 = arith.constant 0 : index
    %45 = vector.load %arg10[%c0_26, %c0_27] : memref<8x128xf32, #tpu.memory_space<vmem>>, vector<8x128xf32>
    tpu.vector_store %arg10[%c0_26, %c0_27], %41 {strides = array<i32>} : memref<8x128xf32, #tpu.memory_space<vmem>>, vector<8x128xf32>,
    %c1_i32 = arith.constant 1 : i32
    %c8_i32_28 = arith.constant 8 : i32
    %46 = arith.muli %c1_i32, %c8_i32_28 : i32
    %47 = arith.index_cast %46 : i32 to index
    %c0_29 = arith.constant 0 : index
    %48 = vector.load %arg8[%47, %c0_29] : memref<64x512xf32, #tpu.memory_space<vmem>>, vector<8x512xf32>
    %c0_30 = arith.constant 0 : index
    %c0_31 = arith.constant 0 : index
    %49 = vector.load %arg9[%c0_30, %c0_31] : memref<8x128xf32, #tpu.memory_space<vmem>>, vector<8x128xf32>
    %c0_32 = arith.constant 0 : index
    %c0_33 = arith.constant 0 : index
    %50 = vector.load %arg3[%c0_32, %c0_33] : memref<128x512xf32, #tpu.memory_space<vmem>>, vector<128x512xf32>
    %cst_34 = arith.constant dense<0.000000e+00> : vector<8x512xf32>
    %51 = tpu.matmul %49, %50, %cst_34 {dimension_numbers = #tpu.dot_dimension_numbers<[1], [0], [0], [1], [0, 0, 1, 1], [], []>} : vector<8x128xf32>, vector<128x512xf32>, vector<8x512xf32> -> vector<8x512xf32>
    %52 = arith.addf %48, %51 : vector<8x512xf32>
    %53 = vector.extract_strided_slice %52 {offsets = [0, 0], sizes = [8, 128], strides = [1, 1]} : vector<8x512xf32> to vector<8x128xf32>
    %54 = arith.negf %53 : vector<8x128xf32>
    %55 = math.exp %54 : vector<8x128xf32>
    %cst_35 = arith.constant 1.000000e+00 : f32
    %56 = vector.broadcast %cst_35 : f32 to vector<8x128xf32>
    %57 = arith.addf %56, %55 : vector<8x128xf32>
    %58 = arith.divf %56, %57 : vector<8x128xf32>
    %59 = vector.extract_strided_slice %52 {offsets = [0, 128], sizes = [8, 128], strides = [1, 1]} : vector<8x512xf32> to vector<8x128xf32>
    %60 = arith.negf %59 : vector<8x128xf32>
    %61 = math.exp %60 : vector<8x128xf32>
    %cst_36 = arith.constant 1.000000e+00 : f32
    %62 = vector.broadcast %cst_36 : f32 to vector<8x128xf32>
    %63 = arith.addf %62, %61 : vector<8x128xf32>
    %64 = arith.divf %62, %63 : vector<8x128xf32>
    %65 = vector.extract_strided_slice %52 {offsets = [0, 256], sizes = [8, 128], strides = [1, 1]} : vector<8x512xf32> to vector<8x128xf32>
    %66 = math.tanh %65 : vector<8x128xf32>
    %67 = vector.extract_strided_slice %52 {offsets = [0, 384], sizes = [8, 128], strides = [1, 1]} : vector<8x512xf32> to vector<8x128xf32>
    %68 = arith.negf %67 : vector<8x128xf32>
    %69 = math.exp %68 : vector<8x128xf32>
    %cst_37 = arith.constant 1.000000e+00 : f32
    %70 = vector.broadcast %cst_37 : f32 to vector<8x128xf32>
    %71 = arith.addf %70, %69 : vector<8x128xf32>
    %72 = arith.divf %70, %71 : vector<8x128xf32>
    %c0_38 = arith.constant 0 : index
    %c0_39 = arith.constant 0 : index
    %73 = vector.load %arg10[%c0_38, %c0_39] : memref<8x128xf32, #tpu.memory_space<vmem>>, vector<8x128xf32>
    %74 = arith.mulf %64, %73 : vector<8x128xf32>
    %75 = arith.mulf %58, %66 : vector<8x128xf32>
    %76 = arith.addf %74, %75 : vector<8x128xf32>
    %77 = math.tanh %76 : vector<8x128xf32>
    %78 = arith.mulf %72, %77 : vector<8x128xf32>
    %c0_40 = arith.constant 0 : index
    %c0_41 = arith.constant 0 : index
    %79 = vector.load %arg9[%c0_40, %c0_41] : memref<8x128xf32, #tpu.memory_space<vmem>>, vector<8x128xf32>
    tpu.vector_store %arg9[%c0_40, %c0_41], %78 {strides = array<i32>} : memref<8x128xf32, #tpu.memory_space<vmem>>, vector<8x128xf32>,
    %c0_42 = arith.constant 0 : index
    %c0_43 = arith.constant 0 : index
    %80 = vector.load %arg10[%c0_42, %c0_43] : memref<8x128xf32, #tpu.memory_space<vmem>>, vector<8x128xf32>
    tpu.vector_store %arg10[%c0_42, %c0_43], %76 {strides = array<i32>} : memref<8x128xf32, #tpu.memory_space<vmem>>, vector<8x128xf32>,
    %c2_i32 = arith.constant 2 : i32
    %c8_i32_44 = arith.constant 8 : i32
    %81 = arith.muli %c2_i32, %c8_i32_44 : i32
    %82 = arith.index_cast %81 : i32 to index
    %c0_45 = arith.constant 0 : index
    %83 = vector.load %arg8[%82, %c0_45] : memref<64x512xf32, #tpu.memory_space<vmem>>, vector<8x512xf32>
    %c0_46 = arith.constant 0 : index
    %c0_47 = arith.constant 0 : index
    %84 = vector.load %arg9[%c0_46, %c0_47] : memref<8x128xf32, #tpu.memory_space<vmem>>, vector<8x128xf32>
    %c0_48 = arith.constant 0 : index
    %c0_49 = arith.constant 0 : index
    %85 = vector.load %arg3[%c0_48, %c0_49] : memref<128x512xf32, #tpu.memory_space<vmem>>, vector<128x512xf32>
    %cst_50 = arith.constant dense<0.000000e+00> : vector<8x512xf32>
    %86 = tpu.matmul %84, %85, %cst_50 {dimension_numbers = #tpu.dot_dimension_numbers<[1], [0], [0], [1], [0, 0, 1, 1], [], []>} : vector<8x128xf32>, vector<128x512xf32>, vector<8x512xf32> -> vector<8x512xf32>
    %87 = arith.addf %83, %86 : vector<8x512xf32>
    %88 = vector.extract_strided_slice %87 {offsets = [0, 0], sizes = [8, 128], strides = [1, 1]} : vector<8x512xf32> to vector<8x128xf32>
    %89 = arith.negf %88 : vector<8x128xf32>
    %90 = math.exp %89 : vector<8x128xf32>
    %cst_51 = arith.constant 1.000000e+00 : f32
    %91 = vector.broadcast %cst_51 : f32 to vector<8x128xf32>
    %92 = arith.addf %91, %90 : vector<8x128xf32>
    %93 = arith.divf %91, %92 : vector<8x128xf32>
    %94 = vector.extract_strided_slice %87 {offsets = [0, 128], sizes = [8, 128], strides = [1, 1]} : vector<8x512xf32> to vector<8x128xf32>
    %95 = arith.negf %94 : vector<8x128xf32>
    %96 = math.exp %95 : vector<8x128xf32>
    %cst_52 = arith.constant 1.000000e+00 : f32
    %97 = vector.broadcast %cst_52 : f32 to vector<8x128xf32>
    %98 = arith.addf %97, %96 : vector<8x128xf32>
    %99 = arith.divf %97, %98 : vector<8x128xf32>
    %100 = vector.extract_strided_slice %87 {offsets = [0, 256], sizes = [8, 128], strides = [1, 1]} : vector<8x512xf32> to vector<8x128xf32>
    %101 = math.tanh %100 : vector<8x128xf32>
    %102 = vector.extract_strided_slice %87 {offsets = [0, 384], sizes = [8, 128], strides = [1, 1]} : vector<8x512xf32> to vector<8x128xf32>
    %103 = arith.negf %102 : vector<8x128xf32>
    %104 = math.exp %103 : vector<8x128xf32>
    %cst_53 = arith.constant 1.000000e+00 : f32
    %105 = vector.broadcast %cst_53 : f32 to vector<8x128xf32>
    %106 = arith.addf %105, %104 : vector<8x128xf32>
    %107 = arith.divf %105, %106 : vector<8x128xf32>
    %c0_54 = arith.constant 0 : index
    %c0_55 = arith.constant 0 : index
    %108 = vector.load %arg10[%c0_54, %c0_55] : memref<8x128xf32, #tpu.memory_space<vmem>>, vector<8x128xf32>
    %109 = arith.mulf %99, %108 : vector<8x128xf32>
    %110 = arith.mulf %93, %101 : vector<8x128xf32>
    %111 = arith.addf %109, %110 : vector<8x128xf32>
    %112 = math.tanh %111 : vector<8x128xf32>
    %113 = arith.mulf %107, %112 : vector<8x128xf32>
    %c0_56 = arith.constant 0 : index
    %c0_57 = arith.constant 0 : index
    %114 = vector.load %arg9[%c0_56, %c0_57] : memref<8x128xf32, #tpu.memory_space<vmem>>, vector<8x128xf32>
    tpu.vector_store %arg9[%c0_56, %c0_57], %113 {strides = array<i32>} : memref<8x128xf32, #tpu.memory_space<vmem>>, vector<8x128xf32>,
    %c0_58 = arith.constant 0 : index
    %c0_59 = arith.constant 0 : index
    %115 = vector.load %arg10[%c0_58, %c0_59] : memref<8x128xf32, #tpu.memory_space<vmem>>, vector<8x128xf32>
    tpu.vector_store %arg10[%c0_58, %c0_59], %111 {strides = array<i32>} : memref<8x128xf32, #tpu.memory_space<vmem>>, vector<8x128xf32>,
    %c3_i32 = arith.constant 3 : i32
    %c8_i32_60 = arith.constant 8 : i32
    %116 = arith.muli %c3_i32, %c8_i32_60 : i32
    %117 = arith.index_cast %116 : i32 to index
    %c0_61 = arith.constant 0 : index
    %118 = vector.load %arg8[%117, %c0_61] : memref<64x512xf32, #tpu.memory_space<vmem>>, vector<8x512xf32>
    %c0_62 = arith.constant 0 : index
    %c0_63 = arith.constant 0 : index
    %119 = vector.load %arg9[%c0_62, %c0_63] : memref<8x128xf32, #tpu.memory_space<vmem>>, vector<8x128xf32>
    %c0_64 = arith.constant 0 : index
    %c0_65 = arith.constant 0 : index
    %120 = vector.load %arg3[%c0_64, %c0_65] : memref<128x512xf32, #tpu.memory_space<vmem>>, vector<128x512xf32>
    %cst_66 = arith.constant dense<0.000000e+00> : vector<8x512xf32>
    %121 = tpu.matmul %119, %120, %cst_66 {dimension_numbers = #tpu.dot_dimension_numbers<[1], [0], [0], [1], [0, 0, 1, 1], [], []>} : vector<8x128xf32>, vector<128x512xf32>, vector<8x512xf32> -> vector<8x512xf32>
    %122 = arith.addf %118, %121 : vector<8x512xf32>
    %123 = vector.extract_strided_slice %122 {offsets = [0, 0], sizes = [8, 128], strides = [1, 1]} : vector<8x512xf32> to vector<8x128xf32>
    %124 = arith.negf %123 : vector<8x128xf32>
    %125 = math.exp %124 : vector<8x128xf32>
    %cst_67 = arith.constant 1.000000e+00 : f32
    %126 = vector.broadcast %cst_67 : f32 to vector<8x128xf32>
    %127 = arith.addf %126, %125 : vector<8x128xf32>
    %128 = arith.divf %126, %127 : vector<8x128xf32>
    %129 = vector.extract_strided_slice %122 {offsets = [0, 128], sizes = [8, 128], strides = [1, 1]} : vector<8x512xf32> to vector<8x128xf32>
    %130 = arith.negf %129 : vector<8x128xf32>
    %131 = math.exp %130 : vector<8x128xf32>
    %cst_68 = arith.constant 1.000000e+00 : f32
    %132 = vector.broadcast %cst_68 : f32 to vector<8x128xf32>
    %133 = arith.addf %132, %131 : vector<8x128xf32>
    %134 = arith.divf %132, %133 : vector<8x128xf32>
    %135 = vector.extract_strided_slice %122 {offsets = [0, 256], sizes = [8, 128], strides = [1, 1]} : vector<8x512xf32> to vector<8x128xf32>
    %136 = math.tanh %135 : vector<8x128xf32>
    %137 = vector.extract_strided_slice %122 {offsets = [0, 384], sizes = [8, 128], strides = [1, 1]} : vector<8x512xf32> to vector<8x128xf32>
    %138 = arith.negf %137 : vector<8x128xf32>
    %139 = math.exp %138 : vector<8x128xf32>
    %cst_69 = arith.constant 1.000000e+00 : f32
    %140 = vector.broadcast %cst_69 : f32 to vector<8x128xf32>
    %141 = arith.addf %140, %139 : vector<8x128xf32>
    %142 = arith.divf %140, %141 : vector<8x128xf32>
    %c0_70 = arith.constant 0 : index
    %c0_71 = arith.constant 0 : index
    %143 = vector.load %arg10[%c0_70, %c0_71] : memref<8x128xf32, #tpu.memory_space<vmem>>, vector<8x128xf32>
    %144 = arith.mulf %134, %143 : vector<8x128xf32>
    %145 = arith.mulf %128, %136 : vector<8x128xf32>
    %146 = arith.addf %144, %145 : vector<8x128xf32>
    %147 = math.tanh %146 : vector<8x128xf32>
    %148 = arith.mulf %142, %147 : vector<8x128xf32>
    %c0_72 = arith.constant 0 : index
    %c0_73 = arith.constant 0 : index
    %149 = vector.load %arg9[%c0_72, %c0_73] : memref<8x128xf32, #tpu.memory_space<vmem>>, vector<8x128xf32>
    tpu.vector_store %arg9[%c0_72, %c0_73], %148 {strides = array<i32>} : memref<8x128xf32, #tpu.memory_space<vmem>>, vector<8x128xf32>,
    %c0_74 = arith.constant 0 : index
    %c0_75 = arith.constant 0 : index
    %150 = vector.load %arg10[%c0_74, %c0_75] : memref<8x128xf32, #tpu.memory_space<vmem>>, vector<8x128xf32>
    tpu.vector_store %arg10[%c0_74, %c0_75], %146 {strides = array<i32>} : memref<8x128xf32, #tpu.memory_space<vmem>>, vector<8x128xf32>,
    %c4_i32 = arith.constant 4 : i32
    %c8_i32_76 = arith.constant 8 : i32
    %151 = arith.muli %c4_i32, %c8_i32_76 : i32
    %152 = arith.index_cast %151 : i32 to index
    %c0_77 = arith.constant 0 : index
    %153 = vector.load %arg8[%152, %c0_77] : memref<64x512xf32, #tpu.memory_space<vmem>>, vector<8x512xf32>
    %c0_78 = arith.constant 0 : index
    %c0_79 = arith.constant 0 : index
    %154 = vector.load %arg9[%c0_78, %c0_79] : memref<8x128xf32, #tpu.memory_space<vmem>>, vector<8x128xf32>
    %c0_80 = arith.constant 0 : index
    %c0_81 = arith.constant 0 : index
    %155 = vector.load %arg3[%c0_80, %c0_81] : memref<128x512xf32, #tpu.memory_space<vmem>>, vector<128x512xf32>
    %cst_82 = arith.constant dense<0.000000e+00> : vector<8x512xf32>
    %156 = tpu.matmul %154, %155, %cst_82 {dimension_numbers = #tpu.dot_dimension_numbers<[1], [0], [0], [1], [0, 0, 1, 1], [], []>} : vector<8x128xf32>, vector<128x512xf32>, vector<8x512xf32> -> vector<8x512xf32>
    %157 = arith.addf %153, %156 : vector<8x512xf32>
    %158 = vector.extract_strided_slice %157 {offsets = [0, 0], sizes = [8, 128], strides = [1, 1]} : vector<8x512xf32> to vector<8x128xf32>
    %159 = arith.negf %158 : vector<8x128xf32>
    %160 = math.exp %159 : vector<8x128xf32>
    %cst_83 = arith.constant 1.000000e+00 : f32
    %161 = vector.broadcast %cst_83 : f32 to vector<8x128xf32>
    %162 = arith.addf %161, %160 : vector<8x128xf32>
    %163 = arith.divf %161, %162 : vector<8x128xf32>
    %164 = vector.extract_strided_slice %157 {offsets = [0, 128], sizes = [8, 128], strides = [1, 1]} : vector<8x512xf32> to vector<8x128xf32>
    %165 = arith.negf %164 : vector<8x128xf32>
    %166 = math.exp %165 : vector<8x128xf32>
    %cst_84 = arith.constant 1.000000e+00 : f32
    %167 = vector.broadcast %cst_84 : f32 to vector<8x128xf32>
    %168 = arith.addf %167, %166 : vector<8x128xf32>
    %169 = arith.divf %167, %168 : vector<8x128xf32>
    %170 = vector.extract_strided_slice %157 {offsets = [0, 256], sizes = [8, 128], strides = [1, 1]} : vector<8x512xf32> to vector<8x128xf32>
    %171 = math.tanh %170 : vector<8x128xf32>
    %172 = vector.extract_strided_slice %157 {offsets = [0, 384], sizes = [8, 128], strides = [1, 1]} : vector<8x512xf32> to vector<8x128xf32>
    %173 = arith.negf %172 : vector<8x128xf32>
    %174 = math.exp %173 : vector<8x128xf32>
    %cst_85 = arith.constant 1.000000e+00 : f32
    %175 = vector.broadcast %cst_85 : f32 to vector<8x128xf32>
    %176 = arith.addf %175, %174 : vector<8x128xf32>
    %177 = arith.divf %175, %176 : vector<8x128xf32>
    %c0_86 = arith.constant 0 : index
    %c0_87 = arith.constant 0 : index
    %178 = vector.load %arg10[%c0_86, %c0_87] : memref<8x128xf32, #tpu.memory_space<vmem>>, vector<8x128xf32>
    %179 = arith.mulf %169, %178 : vector<8x128xf32>
    %180 = arith.mulf %163, %171 : vector<8x128xf32>
    %181 = arith.addf %179, %180 : vector<8x128xf32>
    %182 = math.tanh %181 : vector<8x128xf32>
    %183 = arith.mulf %177, %182 : vector<8x128xf32>
    %c0_88 = arith.constant 0 : index
    %c0_89 = arith.constant 0 : index
    %184 = vector.load %arg9[%c0_88, %c0_89] : memref<8x128xf32, #tpu.memory_space<vmem>>, vector<8x128xf32>
    tpu.vector_store %arg9[%c0_88, %c0_89], %183 {strides = array<i32>} : memref<8x128xf32, #tpu.memory_space<vmem>>, vector<8x128xf32>,
    %c0_90 = arith.constant 0 : index
    %c0_91 = arith.constant 0 : index
    %185 = vector.load %arg10[%c0_90, %c0_91] : memref<8x128xf32, #tpu.memory_space<vmem>>, vector<8x128xf32>
    tpu.vector_store %arg10[%c0_90, %c0_91], %181 {strides = array<i32>} : memref<8x128xf32, #tpu.memory_space<vmem>>, vector<8x128xf32>,
    %c5_i32 = arith.constant 5 : i32
    %c8_i32_92 = arith.constant 8 : i32
    %186 = arith.muli %c5_i32, %c8_i32_92 : i32
    %187 = arith.index_cast %186 : i32 to index
    %c0_93 = arith.constant 0 : index
    %188 = vector.load %arg8[%187, %c0_93] : memref<64x512xf32, #tpu.memory_space<vmem>>, vector<8x512xf32>
    %c0_94 = arith.constant 0 : index
    %c0_95 = arith.constant 0 : index
    %189 = vector.load %arg9[%c0_94, %c0_95] : memref<8x128xf32, #tpu.memory_space<vmem>>, vector<8x128xf32>
    %c0_96 = arith.constant 0 : index
    %c0_97 = arith.constant 0 : index
    %190 = vector.load %arg3[%c0_96, %c0_97] : memref<128x512xf32, #tpu.memory_space<vmem>>, vector<128x512xf32>
    %cst_98 = arith.constant dense<0.000000e+00> : vector<8x512xf32>
    %191 = tpu.matmul %189, %190, %cst_98 {dimension_numbers = #tpu.dot_dimension_numbers<[1], [0], [0], [1], [0, 0, 1, 1], [], []>} : vector<8x128xf32>, vector<128x512xf32>, vector<8x512xf32> -> vector<8x512xf32>
    %192 = arith.addf %188, %191 : vector<8x512xf32>
    %193 = vector.extract_strided_slice %192 {offsets = [0, 0], sizes = [8, 128], strides = [1, 1]} : vector<8x512xf32> to vector<8x128xf32>
    %194 = arith.negf %193 : vector<8x128xf32>
    %195 = math.exp %194 : vector<8x128xf32>
    %cst_99 = arith.constant 1.000000e+00 : f32
    %196 = vector.broadcast %cst_99 : f32 to vector<8x128xf32>
    %197 = arith.addf %196, %195 : vector<8x128xf32>
    %198 = arith.divf %196, %197 : vector<8x128xf32>
    %199 = vector.extract_strided_slice %192 {offsets = [0, 128], sizes = [8, 128], strides = [1, 1]} : vector<8x512xf32> to vector<8x128xf32>
    %200 = arith.negf %199 : vector<8x128xf32>
    %201 = math.exp %200 : vector<8x128xf32>
    %cst_100 = arith.constant 1.000000e+00 : f32
    %202 = vector.broadcast %cst_100 : f32 to vector<8x128xf32>
    %203 = arith.addf %202, %201 : vector<8x128xf32>
    %204 = arith.divf %202, %203 : vector<8x128xf32>
    %205 = vector.extract_strided_slice %192 {offsets = [0, 256], sizes = [8, 128], strides = [1, 1]} : vector<8x512xf32> to vector<8x128xf32>
    %206 = math.tanh %205 : vector<8x128xf32>
    %207 = vector.extract_strided_slice %192 {offsets = [0, 384], sizes = [8, 128], strides = [1, 1]} : vector<8x512xf32> to vector<8x128xf32>
    %208 = arith.negf %207 : vector<8x128xf32>
    %209 = math.exp %208 : vector<8x128xf32>
    %cst_101 = arith.constant 1.000000e+00 : f32
    %210 = vector.broadcast %cst_101 : f32 to vector<8x128xf32>
    %211 = arith.addf %210, %209 : vector<8x128xf32>
    %212 = arith.divf %210, %211 : vector<8x128xf32>
    %c0_102 = arith.constant 0 : index
    %c0_103 = arith.constant 0 : index
    %213 = vector.load %arg10[%c0_102, %c0_103] : memref<8x128xf32, #tpu.memory_space<vmem>>, vector<8x128xf32>
    %214 = arith.mulf %204, %213 : vector<8x128xf32>
    %215 = arith.mulf %198, %206 : vector<8x128xf32>
    %216 = arith.addf %214, %215 : vector<8x128xf32>
    %217 = math.tanh %216 : vector<8x128xf32>
    %218 = arith.mulf %212, %217 : vector<8x128xf32>
    %c0_104 = arith.constant 0 : index
    %c0_105 = arith.constant 0 : index
    %219 = vector.load %arg9[%c0_104, %c0_105] : memref<8x128xf32, #tpu.memory_space<vmem>>, vector<8x128xf32>
    tpu.vector_store %arg9[%c0_104, %c0_105], %218 {strides = array<i32>} : memref<8x128xf32, #tpu.memory_space<vmem>>, vector<8x128xf32>,
    %c0_106 = arith.constant 0 : index
    %c0_107 = arith.constant 0 : index
    %220 = vector.load %arg10[%c0_106, %c0_107] : memref<8x128xf32, #tpu.memory_space<vmem>>, vector<8x128xf32>
    tpu.vector_store %arg10[%c0_106, %c0_107], %216 {strides = array<i32>} : memref<8x128xf32, #tpu.memory_space<vmem>>, vector<8x128xf32>,
    %c6_i32 = arith.constant 6 : i32
    %c8_i32_108 = arith.constant 8 : i32
    %221 = arith.muli %c6_i32, %c8_i32_108 : i32
    %222 = arith.index_cast %221 : i32 to index
    %c0_109 = arith.constant 0 : index
    %223 = vector.load %arg8[%222, %c0_109] : memref<64x512xf32, #tpu.memory_space<vmem>>, vector<8x512xf32>
    %c0_110 = arith.constant 0 : index
    %c0_111 = arith.constant 0 : index
    %224 = vector.load %arg9[%c0_110, %c0_111] : memref<8x128xf32, #tpu.memory_space<vmem>>, vector<8x128xf32>
    %c0_112 = arith.constant 0 : index
    %c0_113 = arith.constant 0 : index
    %225 = vector.load %arg3[%c0_112, %c0_113] : memref<128x512xf32, #tpu.memory_space<vmem>>, vector<128x512xf32>
    %cst_114 = arith.constant dense<0.000000e+00> : vector<8x512xf32>
    %226 = tpu.matmul %224, %225, %cst_114 {dimension_numbers = #tpu.dot_dimension_numbers<[1], [0], [0], [1], [0, 0, 1, 1], [], []>} : vector<8x128xf32>, vector<128x512xf32>, vector<8x512xf32> -> vector<8x512xf32>
    %227 = arith.addf %223, %226 : vector<8x512xf32>
    %228 = vector.extract_strided_slice %227 {offsets = [0, 0], sizes = [8, 128], strides = [1, 1]} : vector<8x512xf32> to vector<8x128xf32>
    %229 = arith.negf %228 : vector<8x128xf32>
    %230 = math.exp %229 : vector<8x128xf32>
    %cst_115 = arith.constant 1.000000e+00 : f32
    %231 = vector.broadcast %cst_115 : f32 to vector<8x128xf32>
    %232 = arith.addf %231, %230 : vector<8x128xf32>
    %233 = arith.divf %231, %232 : vector<8x128xf32>
    %234 = vector.extract_strided_slice %227 {offsets = [0, 128], sizes = [8, 128], strides = [1, 1]} : vector<8x512xf32> to vector<8x128xf32>
    %235 = arith.negf %234 : vector<8x128xf32>
    %236 = math.exp %235 : vector<8x128xf32>
    %cst_116 = arith.constant 1.000000e+00 : f32
    %237 = vector.broadcast %cst_116 : f32 to vector<8x128xf32>
    %238 = arith.addf %237, %236 : vector<8x128xf32>
    %239 = arith.divf %237, %238 : vector<8x128xf32>
    %240 = vector.extract_strided_slice %227 {offsets = [0, 256], sizes = [8, 128], strides = [1, 1]} : vector<8x512xf32> to vector<8x128xf32>
    %241 = math.tanh %240 : vector<8x128xf32>
    %242 = vector.extract_strided_slice %227 {offsets = [0, 384], sizes = [8, 128], strides = [1, 1]} : vector<8x512xf32> to vector<8x128xf32>
    %243 = arith.negf %242 : vector<8x128xf32>
    %244 = math.exp %243 : vector<8x128xf32>
    %cst_117 = arith.constant 1.000000e+00 : f32
    %245 = vector.broadcast %cst_117 : f32 to vector<8x128xf32>
    %246 = arith.addf %245, %244 : vector<8x128xf32>
    %247 = arith.divf %245, %246 : vector<8x128xf32>
    %c0_118 = arith.constant 0 : index
    %c0_119 = arith.constant 0 : index
    %248 = vector.load %arg10[%c0_118, %c0_119] : memref<8x128xf32, #tpu.memory_space<vmem>>, vector<8x128xf32>
    %249 = arith.mulf %239, %248 : vector<8x128xf32>
    %250 = arith.mulf %233, %241 : vector<8x128xf32>
    %251 = arith.addf %249, %250 : vector<8x128xf32>
    %252 = math.tanh %251 : vector<8x128xf32>
    %253 = arith.mulf %247, %252 : vector<8x128xf32>
    %c0_120 = arith.constant 0 : index
    %c0_121 = arith.constant 0 : index
    %254 = vector.load %arg9[%c0_120, %c0_121] : memref<8x128xf32, #tpu.memory_space<vmem>>, vector<8x128xf32>
    tpu.vector_store %arg9[%c0_120, %c0_121], %253 {strides = array<i32>} : memref<8x128xf32, #tpu.memory_space<vmem>>, vector<8x128xf32>,
    %c0_122 = arith.constant 0 : index
    %c0_123 = arith.constant 0 : index
    %255 = vector.load %arg10[%c0_122, %c0_123] : memref<8x128xf32, #tpu.memory_space<vmem>>, vector<8x128xf32>
    tpu.vector_store %arg10[%c0_122, %c0_123], %251 {strides = array<i32>} : memref<8x128xf32, #tpu.memory_space<vmem>>, vector<8x128xf32>,
    %c7_i32 = arith.constant 7 : i32
    %c8_i32_124 = arith.constant 8 : i32
    %256 = arith.muli %c7_i32, %c8_i32_124 : i32
    %257 = arith.index_cast %256 : i32 to index
    %c0_125 = arith.constant 0 : index
    %258 = vector.load %arg8[%257, %c0_125] : memref<64x512xf32, #tpu.memory_space<vmem>>, vector<8x512xf32>
    %c0_126 = arith.constant 0 : index
    %c0_127 = arith.constant 0 : index
    %259 = vector.load %arg9[%c0_126, %c0_127] : memref<8x128xf32, #tpu.memory_space<vmem>>, vector<8x128xf32>
    %c0_128 = arith.constant 0 : index
    %c0_129 = arith.constant 0 : index
    %260 = vector.load %arg3[%c0_128, %c0_129] : memref<128x512xf32, #tpu.memory_space<vmem>>, vector<128x512xf32>
    %cst_130 = arith.constant dense<0.000000e+00> : vector<8x512xf32>
    %261 = tpu.matmul %259, %260, %cst_130 {dimension_numbers = #tpu.dot_dimension_numbers<[1], [0], [0], [1], [0, 0, 1, 1], [], []>} : vector<8x128xf32>, vector<128x512xf32>, vector<8x512xf32> -> vector<8x512xf32>
    %262 = arith.addf %258, %261 : vector<8x512xf32>
    %263 = vector.extract_strided_slice %262 {offsets = [0, 0], sizes = [8, 128], strides = [1, 1]} : vector<8x512xf32> to vector<8x128xf32>
    %264 = arith.negf %263 : vector<8x128xf32>
    %265 = math.exp %264 : vector<8x128xf32>
    %cst_131 = arith.constant 1.000000e+00 : f32
    %266 = vector.broadcast %cst_131 : f32 to vector<8x128xf32>
    %267 = arith.addf %266, %265 : vector<8x128xf32>
    %268 = arith.divf %266, %267 : vector<8x128xf32>
    %269 = vector.extract_strided_slice %262 {offsets = [0, 128], sizes = [8, 128], strides = [1, 1]} : vector<8x512xf32> to vector<8x128xf32>
    %270 = arith.negf %269 : vector<8x128xf32>
    %271 = math.exp %270 : vector<8x128xf32>
    %cst_132 = arith.constant 1.000000e+00 : f32
    %272 = vector.broadcast %cst_132 : f32 to vector<8x128xf32>
    %273 = arith.addf %272, %271 : vector<8x128xf32>
    %274 = arith.divf %272, %273 : vector<8x128xf32>
    %275 = vector.extract_strided_slice %262 {offsets = [0, 256], sizes = [8, 128], strides = [1, 1]} : vector<8x512xf32> to vector<8x128xf32>
    %276 = math.tanh %275 : vector<8x128xf32>
    %277 = vector.extract_strided_slice %262 {offsets = [0, 384], sizes = [8, 128], strides = [1, 1]} : vector<8x512xf32> to vector<8x128xf32>
    %278 = arith.negf %277 : vector<8x128xf32>
    %279 = math.exp %278 : vector<8x128xf32>
    %cst_133 = arith.constant 1.000000e+00 : f32
    %280 = vector.broadcast %cst_133 : f32 to vector<8x128xf32>
    %281 = arith.addf %280, %279 : vector<8x128xf32>
    %282 = arith.divf %280, %281 : vector<8x128xf32>
    %c0_134 = arith.constant 0 : index
    %c0_135 = arith.constant 0 : index
    %283 = vector.load %arg10[%c0_134, %c0_135] : memref<8x128xf32, #tpu.memory_space<vmem>>, vector<8x128xf32>
    %284 = arith.mulf %274, %283 : vector<8x128xf32>
    %285 = arith.mulf %268, %276 : vector<8x128xf32>
    %286 = arith.addf %284, %285 : vector<8x128xf32>
    %287 = math.tanh %286 : vector<8x128xf32>
    %288 = arith.mulf %282, %287 : vector<8x128xf32>
    %c0_136 = arith.constant 0 : index
    %c0_137 = arith.constant 0 : index
    %289 = vector.load %arg9[%c0_136, %c0_137] : memref<8x128xf32, #tpu.memory_space<vmem>>, vector<8x128xf32>
    tpu.vector_store %arg9[%c0_136, %c0_137], %288 {strides = array<i32>} : memref<8x128xf32, #tpu.memory_space<vmem>>, vector<8x128xf32>,
    %c0_138 = arith.constant 0 : index
    %c0_139 = arith.constant 0 : index
    %290 = vector.load %arg10[%c0_138, %c0_139] : memref<8x128xf32, #tpu.memory_space<vmem>>, vector<8x128xf32>
    tpu.vector_store %arg10[%c0_138, %c0_139], %286 {strides = array<i32>} : memref<8x128xf32, #tpu.memory_space<vmem>>, vector<8x128xf32>,
    %c8_i32_140 = arith.constant 8 : i32
    %c0_141 = arith.constant 0 : index
    %c0_142 = arith.constant 0 : index
    %291 = vector.load %arg9[%c0_141, %c0_142] : memref<8x128xf32, #tpu.memory_space<vmem>>, vector<8x128xf32>
    %c0_143 = arith.constant 0 : index
    %c0_144 = arith.constant 0 : index
    %292 = vector.load %arg5[%c0_143, %c0_144] : memref<128x128xf32, #tpu.memory_space<vmem>>, vector<128x128xf32>
    %cst_145 = arith.constant dense<0.000000e+00> : vector<8x128xf32>
    %293 = tpu.matmul %291, %292, %cst_145 {dimension_numbers = #tpu.dot_dimension_numbers<[1], [0], [0], [1], [0, 0, 1, 1], [], []>} : vector<8x128xf32>, vector<128x128xf32>, vector<8x128xf32> -> vector<8x128xf32>
    %c0_146 = arith.constant 0 : index
    %c0_147 = arith.constant 0 : index
    %294 = vector.load %arg6[%c0_146, %c0_147] : memref<1x128xf32, #tpu.memory_space<vmem>>, vector<1x128xf32>
    %295 = vector.broadcast %294 : vector<1x128xf32> to vector<8x128xf32>
    %296 = arith.addf %293, %295 : vector<8x128xf32>
    %c0_148 = arith.constant 0 : index
    %c0_149 = arith.constant 0 : index
    %297 = vector.load %arg7[%c0_148, %c0_149] : memref<8x128xf32, #tpu.memory_space<vmem>>, vector<8x128xf32>
    tpu.vector_store %arg7[%c0_148, %c0_149], %296 {strides = array<i32>} : memref<8x128xf32, #tpu.memory_space<vmem>>, vector<8x128xf32>,
    return
  }
  func.func @transform_0(%arg0: i32) -> (i32, i32) {
    %c0_i32 = arith.constant 0 : i32
    %c0_i32_0 = arith.constant 0 : i32
    %c0_i32_1 = arith.constant 0 : i32
    return %c0_i32, %c0_i32_0 : i32, i32
  }
  func.func @transform_1(%arg0: i32) -> (i32, i32) {
    %c0_i32 = arith.constant 0 : i32
    %c0_i32_0 = arith.constant 0 : i32
    %c0_i32_1 = arith.constant 0 : i32
    return %c0_i32, %c0_i32_0 : i32, i32
  }
  func.func @transform_2(%arg0: i32) -> (i32, i32) {
    %c0_i32 = arith.constant 0 : i32
    %c0_i32_0 = arith.constant 0 : i32
    %c0_i32_1 = arith.constant 0 : i32
    return %c0_i32, %c0_i32_0 : i32, i32
  }
  func.func @transform_3(%arg0: i32) -> (i32, i32) {
    %c0_i32 = arith.constant 0 : i32
    %c0_i32_0 = arith.constant 0 : i32
    %c0_i32_1 = arith.constant 0 : i32
    return %c0_i32, %c0_i32_0 : i32, i32
  }
  func.func @transform_4(%arg0: i32) -> (i32, i32) {
    %c0_i32 = arith.constant 0 : i32
    %c0_i32_0 = arith.constant 0 : i32
    %c0_i32_1 = arith.constant 0 : i32
    return %c0_i32, %c0_i32_0 : i32, i32
  }
  func.func @transform_5(%arg0: i32) -> (i32, i32) {
    %c0_i32 = arith.constant 0 : i32
    %c0_i32_0 = arith.constant 0 : i32
    %c0_i32_1 = arith.constant 0 : i32
    return %c0_i32, %c0_i32_0 : i32, i32
  }
  func.func @transform_6(%arg0: i32) -> (i32, i32) {
    %c0_i32 = arith.constant 0 : i32
    %c0_i32_0 = arith.constant 0 : i32
    %c0_i32_1 = arith.constant 0 : i32
    return %c0_i32, %c0_i32_0 : i32, i32
  }
}

</mosaic_0001>

<llo_original>
// kernel: tpu_custom_call.1
$region0: #{tpu_custom_call.1}
  #allocation0 [shape = 'u32[]', space=smem, size = 0x4, offset = 0x4, fixed_abs, tag = 'smem constant byte address 0x4 - core index']
  #allocation1 [shape = 'u32[144,128]{1,0:T(1,128)}', space=vmem, size = 0x12000, scoped, tag = 'internal scratch']
  #allocation2 [shape = 'f32[64,512]{1,0:T(8,128)}', space=vmem, size = 0x20000, scoped, tag = 'scratch operand']
  #allocation3 [shape = 'f32[8,128]{1,0:T(8,128)}', space=vmem, size = 0x1000, scoped, tag = 'scratch operand']
  #allocation4 [shape = 'f32[8,128]{1,0:T(8,128)}', space=vmem, size = 0x1000, scoped, tag = 'scratch operand']
  %s0 = inlined_call_operand.vmem [shape: f32[64,16], index: 0, kind: input, shape index: {}]
  %s1 = inlined_call_operand.vmem [shape: f32[16,512], index: 1, kind: input, shape index: {}]
  %s2 = inlined_call_operand.hbm [shape: f32[128,512], index: 2, kind: input, shape index: {}]
  %s3 = inlined_call_operand.vmem [shape: f32[1,512], index: 3, kind: input, shape index: {}]
  %s4 = inlined_call_operand.hbm [shape: f32[128,128], index: 4, kind: input, shape index: {}]
  %s5 = inlined_call_operand.vmem [shape: f32[1,128], index: 5, kind: input, shape index: {}]
  %s6 = inlined_call_operand.hbm [shape: f32[8,128], index: 6, kind: output, shape index: {}]
  %s7 = sld [smem:[#allocation0]]
  $region42: #{tpu_custom_call.1} parent=0
    _
  %s9 = ssub.s32 1, %s7
  %s10 = scalar_select 0, %s9, %s7
  $region1: #{tpu_custom_call.1} parent=0
    #allocation5 [shape = 'u8[262144]{0}', space=vmem, size = 0x40000, scoped, tag = 'input window, operand 2, single buffered']
    #allocation6 [shape = 's32[1]{0}', space=sflag, size = 0x4, scoped, tag = 'scoped memory for tpu_custom_call.1']
    #allocation7 [shape = 's32[1]{0}', space=sflag, size = 0x4, scoped, tag = 'scoped memory for tpu_custom_call.1']
    #allocation8 [shape = 'u8[65536]{0}', space=vmem, size = 0x10000, scoped, tag = 'input window, operand 4, single buffered']
    #allocation9 [shape = 's32[1]{0}', space=sflag, size = 0x4, scoped, tag = 'scoped memory for tpu_custom_call.1']
    #allocation10 [shape = 'u8[4096]{0}', space=vmem, size = 0x1000, scoped, tag = 'output window, operand 0, single buffered']
    %11 = vsyncpa [#allocation6], 0
    %12 = vsyncpa [#allocation9], 0
    %13 = vsyncpa [#allocation7], 0
    // Predicated region
    $region2: #{tpu_custom_call.1} parent=1 // pred_check
      _
    $region3: #{tpu_custom_call.1} parent=1 // pred_check_branch
      %15 = sbr.rel (0) target = $region5
    $region4: #{tpu_custom_call.1} parent=1 // pred_region
      _
    $region5: #{tpu_custom_call.1} parent=1 // pred_fallthru
      _
    // Predicated region
    $region6: #{tpu_custom_call.1} parent=1 // pred_check
      _
    $region7: #{tpu_custom_call.1} parent=1 // pred_check_branch
      %17 = sbr.rel (0) target = $region9
    $region8: #{tpu_custom_call.1} parent=1 // pred_region
      _
    $region9: #{tpu_custom_call.1} parent=1 // pred_fallthru
      _
    // Predicated region
    $region10: #{tpu_custom_call.1} parent=1 // pred_check
      _
    $region11: #{tpu_custom_call.1} parent=1 // pred_check_branch
      %19 = sbr.rel (0) target = $region13
    $region12: #{tpu_custom_call.1} parent=1 // pred_region
      %s21 = ssub.s32 8192, 8192
      %22 = vsyncadd [#allocation6], %s21
      %s23 = sshll.u32 [#allocation5], 4
      %s24 = int_to_ptr.vmem [resolvable:$true] %s23
      %29 = dma.hbm_to_vmem [thread:$0]  %s2, 8192, %s24, [#allocation6], 512, 512, 32
    $region13: #{tpu_custom_call.1} parent=1 // pred_fallthru
      _
    // Predicated region
    $region14: #{tpu_custom_call.1} parent=1 // pred_check
      _
    $region15: #{tpu_custom_call.1} parent=1 // pred_check_branch
      %31 = sbr.rel (0) target = $region17
    $region16: #{tpu_custom_call.1} parent=1 // pred_region
      _
    $region17: #{tpu_custom_call.1} parent=1 // pred_fallthru
      _
    // Predicated region
    $region18: #{tpu_custom_call.1} parent=1 // pred_check
      _
    $region19: #{tpu_custom_call.1} parent=1 // pred_check_branch
      %33 = sbr.rel (0) target = $region21
    $region20: #{tpu_custom_call.1} parent=1 // pred_region
      %s35 = ssub.s32 2048, 2048
      %36 = vsyncadd [#allocation9], %s35
      %s37 = sshll.u32 [#allocation8], 4
      %s38 = int_to_ptr.vmem [resolvable:$true] %s37
      %43 = dma.hbm_to_vmem [thread:$0]  %s4, 2048, %s38, [#allocation9], 128, 128, 8
    $region21: #{tpu_custom_call.1} parent=1 // pred_fallthru
      _
    // Predicated region
    $region22: #{tpu_custom_call.1} parent=1 // pred_check
      _
    $region23: #{tpu_custom_call.1} parent=1 // pred_check_branch
      %45 = sbr.rel (0) target = $region25
    $region24: #{tpu_custom_call.1} parent=1 // pred_region
      _
    $region25: #{tpu_custom_call.1} parent=1 // pred_fallthru
      _
    // Predicated region
    $region26: #{tpu_custom_call.1} parent=1 // pred_check
      _
    $region27: #{tpu_custom_call.1} parent=1 // pred_check_branch
      %47 = sbr.rel (0) target = $region29
    $region28: #{tpu_custom_call.1} parent=1 // pred_region
      %48 = dma.done [#allocation6], 8192
    $region29: #{tpu_custom_call.1} parent=1 // pred_fallthru
      _
    // Predicated region
    $region30: #{tpu_custom_call.1} parent=1 // pred_check
      _
    $region31: #{tpu_custom_call.1} parent=1 // pred_check_branch
      %50 = sbr.rel (0) target = $region33
    $region32: #{tpu_custom_call.1} parent=1 // pred_region
      %51 = dma.done [#allocation9], 2048
    $region33: #{tpu_custom_call.1} parent=1 // pred_fallthru
      _
    %v52 = vld [vmem:[%s0] sm:$0xff]
    %v53 = vld [vmem:[%s0 + $0x8] sm:$0xff]
    %v54 = vld [vmem:[%s0 + $0x10] sm:$0xff]
    %v55 = vld [vmem:[%s0 + $0x18] sm:$0xff]
    %v56 = vld [vmem:[%s0 + $0x20] sm:$0xff]
    %v57 = vld [vmem:[%s0 + $0x28] sm:$0xff]
    %v58 = vld [vmem:[%s0 + $0x30] sm:$0xff]
    %v59 = vld [vmem:[%s0 + $0x38] sm:$0xff]
    %v60 = vld [vmem:[%s1] sm:$0xff]
    %v61 = vld [vmem:[%s1 + $0x8] sm:$0xff]
    %v62 = vld [vmem:[%s1 + $0x10] sm:$0xff]
    %v63 = vld [vmem:[%s1 + $0x18] sm:$0xff]
    %v64 = vld [vmem:[%s1 + $0x20] sm:$0xff]
    %v65 = vld [vmem:[%s1 + $0x28] sm:$0xff]
    %v66 = vld [vmem:[%s1 + $0x30] sm:$0xff]
    %v67 = vld [vmem:[%s1 + $0x38] sm:$0xff]
    %v68 = vld [vmem:[%s3] sm:$0xf]
    %v70 = vlaneseq
    %v71 = vshrl.u32 %v70, 7
    %v72 = vsub.s32 0, %v71
    %v73 = vrot.slane %v68, %v72
    %v74 = vlaneseq
    %v75 = vshrl.u32 %v74, 7
    %v76 = vsub.s32 1, %v75
    %v77 = vrot.slane %v68, %v76
    %v78 = vlaneseq
    %v79 = vshrl.u32 %v78, 7
    %v80 = vsub.s32 2, %v79
    %v81 = vrot.slane %v68, %v80
    %v82 = vlaneseq
    %v83 = vshrl.u32 %v82, 7
    %v84 = vsub.s32 3, %v83
    %v85 = vrot.slane %v68, %v84
    %vm90 = vcmask 130048
    %v92 = vsel %vm90, %v52, 0
    %v95 = vsel %vm90, %v53, 0
    %v98 = vsel %vm90, %v54, 0
    %v101 = vsel %vm90, %v55, 0
    %v104 = vsel %vm90, %v56, 0
    %v107 = vsel %vm90, %v57, 0
    %v110 = vsel %vm90, %v58, 0
    %v113 = vsel %vm90, %v59, 0
    %115 = vmatprep.subr.mxu0 0.0
    %116 = vmatpush1.msra.mxu0 0.0
    %117 = vmatprep.subr.mxu0 0.0
    %118 = vmatpush1.msra.mxu0 0.0
    %119 = vmatprep.subr.mxu0 0.0
    %120 = vmatpush1.msra.mxu0 0.0
    %121 = vmatprep.subr.mxu0 0.0
    %122 = vmatpush1.msra.mxu0 0.0
    %123 = vmatprep.subr.mxu0 0.0
    %124 = vmatpush1.msra.mxu0 0.0
    %125 = vmatprep.subr.mxu0 0.0
    %126 = vmatpush1.msra.mxu0 0.0
    %127 = vmatprep.subr.mxu0 0.0
    %128 = vmatpush1.msra.mxu0 0.0
    %129 = vmatprep.subr.mxu0 0.0
    %130 = vmatpush1.msra.mxu0 0.0
    %131 = vmatprep.subr.mxu0 0.0
    %132 = vmatpush1.msra.mxu0 0.0
    %133 = vmatprep.subr.mxu0 0.0
    %134 = vmatpush1.msra.mxu0 0.0
    %135 = vmatprep.subr.mxu0 0.0
    %136 = vmatpush1.msra.mxu0 0.0
    %137 = vmatprep.subr.mxu0 0.0
    %138 = vmatpush1.msra.mxu0 0.0
    %139 = vmatprep.subr.mxu0 0.0
    %140 = vmatpush1.msra.mxu0 0.0
    %141 = vmatprep.subr.mxu0 0.0
    %142 = vmatpush1.msra.mxu0 0.0
    %143 = vmatprep.subr.mxu0 %v65
    %144 = vmatpush1.msra.mxu0 %v64
    %145 = vmatprep.subr.mxu0 %v61
    %146 = vmatpush1.msra.mxu0 %v60
    %147 = vmatprep.subr.mxu0 0.0
    %148 = vmatpush2.msra.mxu0 0.0
    %149 = vmatprep.subr.mxu0 0.0
    %150 = vmatpush2.msra.mxu0 0.0
    %151 = vmatprep.subr.mxu0 0.0
    %152 = vmatpush2.msra.mxu0 0.0
    %153 = vmatprep.subr.mxu0 0.0
    %154 = vmatpush2.msra.mxu0 0.0
    %155 = vmatprep.subr.mxu0 0.0
    %156 = vmatpush2.msra.mxu0 0.0
    %157 = vmatprep.subr.mxu0 0.0
    %158 = vmatpush2.msra.mxu0 0.0
    %159 = vmatprep.subr.mxu0 0.0
    %160 = vmatpush2.msra.mxu0 0.0
    %161 = vmatprep.subr.mxu0 0.0
    %162 = vmatpush2.msra.mxu0 0.0
    %163 = vmatprep.subr.mxu0 0.0
    %164 = vmatpush2.msra.mxu0 0.0
    %165 = vmatprep.subr.mxu0 0.0
    %166 = vmatpush2.msra.mxu0 0.0
    %167 = vmatprep.subr.mxu0 0.0
    %168 = vmatpush2.msra.mxu0 0.0
    %169 = vmatprep.subr.mxu0 0.0
    %170 = vmatpush2.msra.mxu0 0.0
    %171 = vmatprep.subr.mxu0 0.0
    %172 = vmatpush2.msra.mxu0 0.0
    %173 = vmatprep.subr.mxu0 0.0
    %174 = vmatpush2.msra.mxu0 0.0
    %175 = vmatprep.subr.mxu0 0.0
    %176 = vmatpush2.msra.mxu0 0.0
    %177 = vmatprep.subr.mxu0 0.0
    %178 = vmatpush2.msra.mxu0 0.0
    %179 = vmatprep.mubr.f32.mxu0 0.0
    %180 = vmatmul.mubr.f32.gmra.mxu0 %v92
    %v181 = vpop.f32.mrf.mxu0
    %v182 = vadd.f32 %v73, %v181
    %v183 = vpop.f32.mrf.mxu0
    %v184 = vadd.f32 %v77, %v183
    %185 = vmatprep.mubr.f32.mxu0 0.0
    %186 = vmatmul.mubr.f32.gmra.mxu0 %v95
    %v187 = vpop.f32.mrf.mxu0
    %v188 = vadd.f32 %v73, %v187
    %v189 = vpop.f32.mrf.mxu0
    %v190 = vadd.f32 %v77, %v189
    %191 = vmatprep.mubr.f32.mxu0 0.0
    %192 = vmatmul.mubr.f32.gmra.mxu0 %v98
    %v193 = vpop.f32.mrf.mxu0
    %v194 = vadd.f32 %v73, %v193
    %v195 = vpop.f32.mrf.mxu0
    %v196 = vadd.f32 %v77, %v195
    %197 = vmatprep.mubr.f32.mxu0 0.0
    %198 = vmatmul.mubr.f32.gmra.mxu0 %v101
    %v199 = vpop.f32.mrf.mxu0
    %v200 = vadd.f32 %v73, %v199
    %v201 = vpop.f32.mrf.mxu0
    %v202 = vadd.f32 %v77, %v201
    %203 = vmatprep.mubr.f32.mxu0 0.0
    %204 = vmatmul.mubr.f32.gmra.mxu0 %v104
    %v205 = vpop.f32.mrf.mxu0
    %v206 = vadd.f32 %v73, %v205
    %v207 = vpop.f32.mrf.mxu0
    %v208 = vadd.f32 %v77, %v207
    %209 = vmatprep.mubr.f32.mxu0 0.0
    %210 = vmatmul.mubr.f32.gmra.mxu0 %v107
    %v211 = vpop.f32.mrf.mxu0
    %v212 = vadd.f32 %v73, %v211
    %v213 = vpop.f32.mrf.mxu0
    %v214 = vadd.f32 %v77, %v213
    %215 = vmatprep.mubr.f32.mxu0 0.0
    %216 = vmatmul.mubr.f32.gmra.mxu0 %v110
    %v217 = vpop.f32.mrf.mxu0
    %v218 = vadd.f32 %v73, %v217
    %v219 = vpop.f32.mrf.mxu0
    %v220 = vadd.f32 %v77, %v219
    %221 = vmatprep.mubr.f32.mxu0 0.0
    %222 = vmatmul.mubr.f32.gmra.mxu0 %v113
    %v223 = vpop.f32.mrf.mxu0
    %v224 = vadd.f32 %v73, %v223
    %v225 = vpop.f32.mrf.mxu0
    %v226 = vadd.f32 %v77, %v225
    %227 = vdwg.mxu0
    %228 = vmatprep.subr.mxu0 0.0
    %229 = vmatpush1.msra.mxu0 0.0
    %230 = vmatprep.subr.mxu0 0.0
    %231 = vmatpush1.msra.mxu0 0.0
    %232 = vmatprep.subr.mxu0 0.0
    %233 = vmatpush1.msra.mxu0 0.0
    %234 = vmatprep.subr.mxu0 0.0
    %235 = vmatpush1.msra.mxu0 0.0
    %236 = vmatprep.subr.mxu0 0.0
    %237 = vmatpush1.msra.mxu0 0.0
    %238 = vmatprep.subr.mxu0 0.0
    %239 = vmatpush1.msra.mxu0 0.0
    %240 = vmatprep.subr.mxu0 0.0
    %241 = vmatpush1.msra.mxu0 0.0
    %242 = vmatprep.subr.mxu0 0.0
    %243 = vmatpush1.msra.mxu0 0.0
    %244 = vmatprep.subr.mxu0 0.0
    %245 = vmatpush1.msra.mxu0 0.0
    %246 = vmatprep.subr.mxu0 0.0
    %247 = vmatpush1.msra.mxu0 0.0
    %248 = vmatprep.subr.mxu0 0.0
    %249 = vmatpush1.msra.mxu0 0.0
    %250 = vmatprep.subr.mxu0 0.0
    %251 = vmatpush1.msra.mxu0 0.0
    %252 = vmatprep.subr.mxu0 0.0
    %253 = vmatpush1.msra.mxu0 0.0
    %254 = vmatprep.subr.mxu0 0.0
    %255 = vmatpush1.msra.mxu0 0.0
    %256 = vmatprep.subr.mxu0 %v67
    %257 = vmatpush1.msra.mxu0 %v66
    %258 = vmatprep.subr.mxu0 %v63
    %259 = vmatpush1.msra.mxu0 %v62
    %260 = vmatprep.subr.mxu0 0.0
    %261 = vmatpush2.msra.mxu0 0.0
    %262 = vmatprep.subr.mxu0 0.0
    %263 = vmatpush2.msra.mxu0 0.0
    %264 = vmatprep.subr.mxu0 0.0
    %265 = vmatpush2.msra.mxu0 0.0
    %266 = vmatprep.subr.mxu0 0.0
    %267 = vmatpush2.msra.mxu0 0.0
    %268 = vmatprep.subr.mxu0 0.0
    %269 = vmatpush2.msra.mxu0 0.0
    %270 = vmatprep.subr.mxu0 0.0
    %271 = vmatpush2.msra.mxu0 0.0
    %272 = vmatprep.subr.mxu0 0.0
    %273 = vmatpush2.msra.mxu0 0.0
    %274 = vmatprep.subr.mxu0 0.0
    %275 = vmatpush2.msra.mxu0 0.0
    %276 = vmatprep.subr.mxu0 0.0
    %277 = vmatpush2.msra.mxu0 0.0
    %278 = vmatprep.subr.mxu0 0.0
    %279 = vmatpush2.msra.mxu0 0.0
    %280 = vmatprep.subr.mxu0 0.0
    %281 = vmatpush2.msra.mxu0 0.0
    %282 = vmatprep.subr.mxu0 0.0
    %283 = vmatpush2.msra.mxu0 0.0
    %284 = vmatprep.subr.mxu0 0.0
    %285 = vmatpush2.msra.mxu0 0.0
    %286 = vmatprep.subr.mxu0 0.0
    %287 = vmatpush2.msra.mxu0 0.0
    %288 = vmatprep.subr.mxu0 0.0
    %289 = vmatpush2.msra.mxu0 0.0
    %290 = vmatprep.subr.mxu0 0.0
    %291 = vmatpush2.msra.mxu0 0.0
    %292 = vmatprep.mubr.f32.mxu0 0.0
    %293 = vmatmul.mubr.f32.gmra.mxu0 %v92
    %v294 = vpop.f32.mrf.mxu0
    %v295 = vadd.f32 %v81, %v294
    %v296 = vpop.f32.mrf.mxu0
    %v297 = vadd.f32 %v85, %v296
    %298 = vmatprep.mubr.f32.mxu0 0.0
    %299 = vmatmul.mubr.f32.gmra.mxu0 %v95
    %v300 = vpop.f32.mrf.mxu0
    %v301 = vadd.f32 %v81, %v300
    %v302 = vpop.f32.mrf.mxu0
    %v303 = vadd.f32 %v85, %v302
    %304 = vmatprep.mubr.f32.mxu0 0.0
    %305 = vmatmul.mubr.f32.gmra.mxu0 %v98
    %v306 = vpop.f32.mrf.mxu0
    %v307 = vadd.f32 %v81, %v306
    %v308 = vpop.f32.mrf.mxu0
    %v309 = vadd.f32 %v85, %v308
    %310 = vmatprep.mubr.f32.mxu0 0.0
    %311 = vmatmul.mubr.f32.gmra.mxu0 %v101
    %v312 = vpop.f32.mrf.mxu0
    %v313 = vadd.f32 %v81, %v312
    %v314 = vpop.f32.mrf.mxu0
    %v315 = vadd.f32 %v85, %v314
    %316 = vmatprep.mubr.f32.mxu0 0.0
    %317 = vmatmul.mubr.f32.gmra.mxu0 %v104
    %v318 = vpop.f32.mrf.mxu0
    %v319 = vadd.f32 %v81, %v318
    %v320 = vpop.f32.mrf.mxu0
    %v321 = vadd.f32 %v85, %v320
    %322 = vmatprep.mubr.f32.mxu0 0.0
    %323 = vmatmul.mubr.f32.gmra.mxu0 %v107
    %v324 = vpop.f32.mrf.mxu0
    %v325 = vadd.f32 %v81, %v324
    %v326 = vpop.f32.mrf.mxu0
    %v327 = vadd.f32 %v85, %v326
    %328 = vmatprep.mubr.f32.mxu0 0.0
    %329 = vmatmul.mubr.f32.gmra.mxu0 %v110
    %v330 = vpop.f32.mrf.mxu0
    %v331 = vadd.f32 %v81, %v330
    %v332 = vpop.f32.mrf.mxu0
    %v333 = vadd.f32 %v85, %v332
    %334 = vmatprep.mubr.f32.mxu0 0.0
    %335 = vmatmul.mubr.f32.gmra.mxu0 %v113
    %v336 = vpop.f32.mrf.mxu0
    %v337 = vadd.f32 %v81, %v336
    %v338 = vpop.f32.mrf.mxu0
    %v339 = vadd.f32 %v85, %v338
    %340 = vdwg.mxu0
    %341 = vst [vmem:[#allocation2] sm:$0xff] %v182
    %342 = vst [vmem:[#allocation2 + $0x8] sm:$0xff] %v184
    %343 = vst [vmem:[#allocation2 + $0x10] sm:$0xff] %v295
    %344 = vst [vmem:[#allocation2 + $0x18] sm:$0xff] %v297
    %345 = vst [vmem:[#allocation2 + $0x20] sm:$0xff] %v188
    %346 = vst [vmem:[#allocation2 + $0x28] sm:$0xff] %v190
    %347 = vst [vmem:[#allocation2 + $0x30] sm:$0xff] %v301
    %348 = vst [vmem:[#allocation2 + $0x38] sm:$0xff] %v303
    %349 = vst [vmem:[#allocation2 + $0x40] sm:$0xff] %v194
    %350 = vst [vmem:[#allocation2 + $0x48] sm:$0xff] %v196
    %351 = vst [vmem:[#allocation2 + $0x50] sm:$0xff] %v307
    %352 = vst [vmem:[#allocation2 + $0x58] sm:$0xff] %v309
    %353 = vst [vmem:[#allocation2 + $0x60] sm:$0xff] %v200
    %354 = vst [vmem:[#allocation2 + $0x68] sm:$0xff] %v202
    %355 = vst [vmem:[#allocation2 + $0x70] sm:$0xff] %v313
    %356 = vst [vmem:[#allocation2 + $0x78] sm:$0xff] %v315
    %357 = vst [vmem:[#allocation2 + $0x80] sm:$0xff] %v206
    %358 = vst [vmem:[#allocation2 + $0x88] sm:$0xff] %v208
    %359 = vst [vmem:[#allocation2 + $0x90] sm:$0xff] %v319
    %360 = vst [vmem:[#allocation2 + $0x98] sm:$0xff] %v321
    %361 = vst [vmem:[#allocation2 + $0xa0] sm:$0xff] %v212
    %362 = vst [vmem:[#allocation2 + $0xa8] sm:$0xff] %v214
    %363 = vst [vmem:[#allocation2 + $0xb0] sm:$0xff] %v325
    %364 = vst [vmem:[#allocation2 + $0xb8] sm:$0xff] %v327
    %365 = vst [vmem:[#allocation2 + $0xc0] sm:$0xff] %v218
    %366 = vst [vmem:[#allocation2 + $0xc8] sm:$0xff] %v220
    %367 = vst [vmem:[#allocation2 + $0xd0] sm:$0xff] %v331
    %368 = vst [vmem:[#allocation2 + $0xd8] sm:$0xff] %v333
    %369 = vst [vmem:[#allocation2 + $0xe0] sm:$0xff] %v224
    %370 = vst [vmem:[#allocation2 + $0xe8] sm:$0xff] %v226
    %371 = vst [vmem:[#allocation2 + $0xf0] sm:$0xff] %v337
    %372 = vst [vmem:[#allocation2 + $0xf8] sm:$0xff] %v339
    %373 = vst [vmem:[#allocation3] sm:$0xff] 0.0
    %374 = vst [vmem:[#allocation4] sm:$0xff] 0.0
    %v375 = vld [vmem:[#allocation2] sm:$0xff]
    %v376 = vld [vmem:[#allocation2 + $0x8] sm:$0xff]
    %v377 = vld [vmem:[#allocation2 + $0x10] sm:$0xff]
    %v378 = vld [vmem:[#allocation2 + $0x18] sm:$0xff]
    %v379 = vld [vmem:[#allocation3] sm:$0xff]
    %v380 = vld [vmem:[#allocation5] sm:$0xff]
    %v381 = vld [vmem:[#allocation5 + $0x8] sm:$0xff]
    %v382 = vld [vmem:[#allocation5 + $0x10] sm:$0xff]
    %v383 = vld [vmem:[#allocation5 + $0x18] sm:$0xff]
    %v384 = vld [vmem:[#allocation5 + $0x20] sm:$0xff]
    %v385 = vld [vmem:[#allocation5 + $0x28] sm:$0xff]
    %v386 = vld [vmem:[#allocation5 + $0x30] sm:$0xff]
    %v387 = vld [vmem:[#allocation5 + $0x38] sm:$0xff]
    %v388 = vld [vmem:[#allocation5 + $0x40] sm:$0xff]
    %v389 = vld [vmem:[#allocation5 + $0x48] sm:$0xff]
    %v390 = vld [vmem:[#allocation5 + $0x50] sm:$0xff]
    %v391 = vld [vmem:[#allocation5 + $0x58] sm:$0xff]
    %v392 = vld [vmem:[#allocation5 + $0x60] sm:$0xff]
    %v393 = vld [vmem:[#allocation5 + $0x68] sm:$0xff]
    %v394 = vld [vmem:[#allocation5 + $0x70] sm:$0xff]
    %v395 = vld [vmem:[#allocation5 + $0x78] sm:$0xff]
    %v396 = vld [vmem:[#allocation5 + $0x80] sm:$0xff]
    %v397 = vld [vmem:[#allocation5 + $0x88] sm:$0xff]
    %v398 = vld [vmem:[#allocation5 + $0x90] sm:$0xff]
    %v399 = vld [vmem:[#allocation5 + $0x98] sm:$0xff]
    %v400 = vld [vmem:[#allocation5 + $0xa0] sm:$0xff]
    %v401 = vld [vmem:[#allocation5 + $0xa8] sm:$0xff]
    %v402 = vld [vmem:[#allocation5 + $0xb0] sm:$0xff]
    %v403 = vld [vmem:[#allocation5 + $0xb8] sm:$0xff]
    %v404 = vld [vmem:[#allocation5 + $0xc0] sm:$0xff]
    %v405 = vld [vmem:[#allocation5 + $0xc8] sm:$0xff]
    %v406 = vld [vmem:[#allocation5 + $0xd0] sm:$0xff]
    %v407 = vld [vmem:[#allocation5 + $0xd8] sm:$0xff]
    %v408 = vld [vmem:[#allocation5 + $0xe0] sm:$0xff]
    %v409 = vld [vmem:[#allocation5 + $0xe8] sm:$0xff]
    %v410 = vld [vmem:[#allocation5 + $0xf0] sm:$0xff]
    %v411 = vld [vmem:[#allocation5 + $0xf8] sm:$0xff]
    %v412 = vld [vmem:[#allocation5 + $0x100] sm:$0xff]
    %v413 = vld [vmem:[#allocation5 + $0x108] sm:$0xff]
    %v414 = vld [vmem:[#allocation5 + $0x110] sm:$0xff]
    %v415 = vld [vmem:[#allocation5 + $0x118] sm:$0xff]
    %v416 = vld [vmem:[#allocation5 + $0x120] sm:$0xff]
    %v417 = vld [vmem:[#allocation5 + $0x128] sm:$0xff]
    %v418 = vld [vmem:[#allocation5 + $0x130] sm:$0xff]
    %v419 = vld [vmem:[#allocation5 + $0x138] sm:$0xff]
    %v420 = vld [vmem:[#allocation5 + $0x140] sm:$0xff]
    %v421 = vld [vmem:[#allocation5 + $0x148] sm:$0xff]
    %v422 = vld [vmem:[#allocation5 + $0x150] sm:$0xff]
    %v423 = vld [vmem:[#allocation5 + $0x158] sm:$0xff]
    %v424 = vld [vmem:[#allocation5 + $0x160] sm:$0xff]
    %v425 = vld [vmem:[#allocation5 + $0x168] sm:$0xff]
    %v426 = vld [vmem:[#allocation5 + $0x170] sm:$0xff]
    %v427 = vld [vmem:[#allocation5 + $0x178] sm:$0xff]
    %v428 = vld [vmem:[#allocation5 + $0x180] sm:$0xff]
    %v429 = vld [vmem:[#allocation5 + $0x188] sm:$0xff]
    %v430 = vld [vmem:[#allocation5 + $0x190] sm:$0xff]
    %v431 = vld [vmem:[#allocation5 + $0x198] sm:$0xff]
    %v432 = vld [vmem:[#allocation5 + $0x1a0] sm:$0xff]
    %v433 = vld [vmem:[#allocation5 + $0x1a8] sm:$0xff]
    %v434 = vld [vmem:[#allocation5 + $0x1b0] sm:$0xff]
    %v435 = vld [vmem:[#allocation5 + $0x1b8] sm:$0xff]
    %v436 = vld [vmem:[#allocation5 + $0x1c0] sm:$0xff]
    %v437 = vld [vmem:[#allocation5 + $0x1c8] sm:$0xff]
    %v438 = vld [vmem:[#allocation5 + $0x1d0] sm:$0xff]
    %v439 = vld [vmem:[#allocation5 + $0x1d8] sm:$0xff]
    %v440 = vld [vmem:[#allocation5 + $0x1e0] sm:$0xff]
    %v441 = vld [vmem:[#allocation5 + $0x1e8] sm:$0xff]
    %v442 = vld [vmem:[#allocation5 + $0x1f0] sm:$0xff]
    %v443 = vld [vmem:[#allocation5 + $0x1f8] sm:$0xff]
    %444 = vmatprep.subr.mxu0 %v441
    %445 = vmatpush1.msra.mxu0 %v440
    %446 = vmatprep.subr.mxu0 %v437
    %447 = vmatpush1.msra.mxu0 %v436
    %448 = vmatprep.subr.mxu0 %v433
    %449 = vmatpush1.msra.mxu0 %v432
    %450 = vmatprep.subr.mxu0 %v429
    %451 = vmatpush1.msra.mxu0 %v428
    %452 = vmatprep.subr.mxu0 %v425
    %453 = vmatpush1.msra.mxu0 %v424
    %454 = vmatprep.subr.mxu0 %v421
    %455 = vmatpush1.msra.mxu0 %v420
    %456 = vmatprep.subr.mxu0 %v417
    %457 = vmatpush1.msra.mxu0 %v416
    %458 = vmatprep.subr.mxu0 %v413
    %459 = vmatpush1.msra.mxu0 %v412
    %460 = vmatprep.subr.mxu0 %v409
    %461 = vmatpush1.msra.mxu0 %v408
    %462 = vmatprep.subr.mxu0 %v405
    %463 = vmatpush1.msra.mxu0 %v404
    %464 = vmatprep.subr.mxu0 %v401
    %465 = vmatpush1.msra.mxu0 %v400
    %466 = vmatprep.subr.mxu0 %v397
    %467 = vmatpush1.msra.mxu0 %v396
    %468 = vmatprep.subr.mxu0 %v393
    %469 = vmatpush1.msra.mxu0 %v392
    %470 = vmatprep.subr.mxu0 %v389
    %471 = vmatpush1.msra.mxu0 %v388
    %472 = vmatprep.subr.mxu0 %v385
    %473 = vmatpush1.msra.mxu0 %v384
    %474 = vmatprep.subr.mxu0 %v381
    %475 = vmatpush1.msra.mxu0 %v380
    %476 = vmatprep.subr.mxu0 0.0
    %477 = vmatpush2.msra.mxu0 0.0
    %478 = vmatprep.subr.mxu0 0.0
    %479 = vmatpush2.msra.mxu0 0.0
    %480 = vmatprep.subr.mxu0 0.0
    %481 = vmatpush2.msra.mxu0 0.0
    %482 = vmatprep.subr.mxu0 0.0
    %483 = vmatpush2.msra.mxu0 0.0
    %484 = vmatprep.subr.mxu0 0.0
    %485 = vmatpush2.msra.mxu0 0.0
    %486 = vmatprep.subr.mxu0 0.0
    %487 = vmatpush2.msra.mxu0 0.0
    %488 = vmatprep.subr.mxu0 0.0
    %489 = vmatpush2.msra.mxu0 0.0
    %490 = vmatprep.subr.mxu0 0.0
    %491 = vmatpush2.msra.mxu0 0.0
    %492 = vmatprep.subr.mxu0 0.0
    %493 = vmatpush2.msra.mxu0 0.0
    %494 = vmatprep.subr.mxu0 0.0
    %495 = vmatpush2.msra.mxu0 0.0
    %496 = vmatprep.subr.mxu0 0.0
    %497 = vmatpush2.msra.mxu0 0.0
    %498 = vmatprep.subr.mxu0 0.0
    %499 = vmatpush2.msra.mxu0 0.0
    %500 = vmatprep.subr.mxu0 0.0
    %501 = vmatpush2.msra.mxu0 0.0
    %502 = vmatprep.subr.mxu0 0.0
    %503 = vmatpush2.msra.mxu0 0.0
    %504 = vmatprep.subr.mxu0 0.0
    %505 = vmatpush2.msra.mxu0 0.0
    %506 = vmatprep.subr.mxu0 0.0
    %507 = vmatpush2.msra.mxu0 0.0
    %508 = vmatprep.mubr.f32.mxu0 0.0
    %509 = vmatmul.mubr.f32.gmra.mxu0 %v379
    %v510 = vpop.f32.mrf.mxu0
    %v511 = vadd.f32 0.0, %v510
    %v512 = vpop.f32.mrf.mxu0
    %v513 = vadd.f32 0.0, %v512
    %514 = vdwg.mxu0
    %515 = vmatprep.subr.mxu0 %v443
    %516 = vmatpush1.msra.mxu0 %v442
    %517 = vmatprep.subr.mxu0 %v439
    %518 = vmatpush1.msra.mxu0 %v438
    %519 = vmatprep.subr.mxu0 %v435
    %520 = vmatpush1.msra.mxu0 %v434
    %521 = vmatprep.subr.mxu0 %v431
    %522 = vmatpush1.msra.mxu0 %v430
    %523 = vmatprep.subr.mxu0 %v427
    %524 = vmatpush1.msra.mxu0 %v426
    %525 = vmatprep.subr.mxu0 %v423
    %526 = vmatpush1.msra.mxu0 %v422
    %527 = vmatprep.subr.mxu0 %v419
    %528 = vmatpush1.msra.mxu0 %v418
    %529 = vmatprep.subr.mxu0 %v415
    %530 = vmatpush1.msra.mxu0 %v414
    %531 = vmatprep.subr.mxu0 %v411
    %532 = vmatpush1.msra.mxu0 %v410
    %533 = vmatprep.subr.mxu0 %v407
    %534 = vmatpush1.msra.mxu0 %v406
    %535 = vmatprep.subr.mxu0 %v403
    %536 = vmatpush1.msra.mxu0 %v402
    %537 = vmatprep.subr.mxu0 %v399
    %538 = vmatpush1.msra.mxu0 %v398
    %539 = vmatprep.subr.mxu0 %v395
    %540 = vmatpush1.msra.mxu0 %v394
    %541 = vmatprep.subr.mxu0 %v391
    %542 = vmatpush1.msra.mxu0 %v390
    %543 = vmatprep.subr.mxu0 %v387
    %544 = vmatpush1.msra.mxu0 %v386
    %545 = vmatprep.subr.mxu0 %v383
    %546 = vmatpush1.msra.mxu0 %v382
    %547 = vmatprep.subr.mxu0 0.0
    %548 = vmatpush2.msra.mxu0 0.0
    %549 = vmatprep.subr.mxu0 0.0
    %550 = vmatpush2.msra.mxu0 0.0
    %551 = vmatprep.subr.mxu0 0.0
    %552 = vmatpush2.msra.mxu0 0.0
    %553 = vmatprep.subr.mxu0 0.0
    %554 = vmatpush2.msra.mxu0 0.0
    %555 = vmatprep.subr.mxu0 0.0
    %556 = vmatpush2.msra.mxu0 0.0
    %557 = vmatprep.subr.mxu0 0.0
    %558 = vmatpush2.msra.mxu0 0.0
    %559 = vmatprep.subr.mxu0 0.0
    %560 = vmatpush2.msra.mxu0 0.0
    %561 = vmatprep.subr.mxu0 0.0
    %562 = vmatpush2.msra.mxu0 0.0
    %563 = vmatprep.subr.mxu0 0.0
    %564 = vmatpush2.msra.mxu0 0.0
    %565 = vmatprep.subr.mxu0 0.0
    %566 = vmatpush2.msra.mxu0 0.0
    %567 = vmatprep.subr.mxu0 0.0
    %568 = vmatpush2.msra.mxu0 0.0
    %569 = vmatprep.subr.mxu0 0.0
    %570 = vmatpush2.msra.mxu0 0.0
    %571 = vmatprep.subr.mxu0 0.0
    %572 = vmatpush2.msra.mxu0 0.0
    %573 = vmatprep.subr.mxu0 0.0
    %574 = vmatpush2.msra.mxu0 0.0
    %575 = vmatprep.subr.mxu0 0.0
    %576 = vmatpush2.msra.mxu0 0.0
    %577 = vmatprep.subr.mxu0 0.0
    %578 = vmatpush2.msra.mxu0 0.0
    %579 = vmatprep.mubr.f32.mxu0 0.0
    %580 = vmatmul.mubr.f32.gmra.mxu0 %v379
    %v581 = vpop.f32.mrf.mxu0
    %v582 = vadd.f32 0.0, %v581
    %v583 = vpop.f32.mrf.mxu0
    %v584 = vadd.f32 0.0, %v583
    %585 = vdwg.mxu0
    %v586 = vadd.f32 %v375, %v511
    %v587 = vadd.f32 %v376, %v513
    %v588 = vadd.f32 %v377, %v582
    %v589 = vadd.f32 %v378, %v584
    %v590 = vxor.u32 %v586, 2147483648
    %v591 = vmul.f32 %v590, 1.442695
    %v592 = vpow.pop %v591
    %v593 = vadd.f32 %v592, 1.0
    %v594 = vrcp.pop %v593
    %v595 = vmul.f32 1.0, %v594
    %v596 = vxor.u32 %v587, 2147483648
    %v597 = vmul.f32 %v596, 1.442695
    %v598 = vpow.pop %v597
    %v599 = vadd.f32 %v598, 1.0
    %v600 = vrcp.pop %v599
    %v601 = vmul.f32 1.0, %v600
    %v602 = vtanh.pop %v588
    %v603 = vxor.u32 %v589, 2147483648
    %v604 = vmul.f32 %v603, 1.442695
    %v605 = vpow.pop %v604
    %v606 = vadd.f32 %v605, 1.0
    %v607 = vrcp.pop %v606
    %v608 = vmul.f32 1.0, %v607
    %v609 = vld [vmem:[#allocation4] sm:$0xff]
    %v610 = vmul.f32 %v601, %v609
    %v611 = vmul.f32 %v595, %v602
    %v612 = vadd.f32 %v610, %v611
    %v613 = vtanh.pop %v612
    %v614 = vmul.f32 %v608, %v613
    %615 = vst [vmem:[#allocation3] sm:$0xff] %v614
    %616 = vst [vmem:[#allocation4] sm:$0xff] %v612
    %v617 = vld [vmem:[#allocation2 + $0x20] sm:$0xff]
    %v618 = vld [vmem:[#allocation2 + $0x28] sm:$0xff]
    %v619 = vld [vmem:[#allocation2 + $0x30] sm:$0xff]
    %v620 = vld [vmem:[#allocation2 + $0x38] sm:$0xff]
    %v621 = vld [vmem:[#allocation3] sm:$0xff]
    %v622 = vld [vmem:[#allocation5] sm:$0xff]
    %v623 = vld [vmem:[#allocation5 + $0x8] sm:$0xff]
    %v624 = vld [vmem:[#allocation5 + $0x10] sm:$0xff]
    %v625 = vld [vmem:[#allocation5 + $0x18] sm:$0xff]
    %v626 = vld [vmem:[#allocation5 + $0x20] sm:$0xff]
    %v627 = vld [vmem:[#allocation5 + $0x28] sm:$0xff]
    %v628 = vld [vmem:[#allocation5 + $0x30] sm:$0xff]
    %v629 = vld [vmem:[#allocation5 + $0x38] sm:$0xff]
    %v630 = vld [vmem:[#allocation5 + $0x40] sm:$0xff]
    %v631 = vld [vmem:[#allocation5 + $0x48] sm:$0xff]
    %v632 = vld [vmem:[#allocation5 + $0x50] sm:$0xff]
    %v633 = vld [vmem:[#allocation5 + $0x58] sm:$0xff]
    %v634 = vld [vmem:[#allocation5 + $0x60] sm:$0xff]
    %v635 = vld [vmem:[#allocation5 + $0x68] sm:$0xff]
    %v636 = vld [vmem:[#allocation5 + $0x70] sm:$0xff]
    %v637 = vld [vmem:[#allocation5 + $0x78] sm:$0xff]
    %v638 = vld [vmem:[#allocation5 + $0x80] sm:$0xff]
    %v639 = vld [vmem:[#allocation5 + $0x88] sm:$0xff]
    %v640 = vld [vmem:[#allocation5 + $0x90] sm:$0xff]
    %v641 = vld [vmem:[#allocation5 + $0x98] sm:$0xff]
    %v642 = vld [vmem:[#allocation5 + $0xa0] sm:$0xff]
    %v643 = vld [vmem:[#allocation5 + $0xa8] sm:$0xff]
    %v644 = vld [vmem:[#allocation5 + $0xb0] sm:$0xff]
    %v645 = vld [vmem:[#allocation5 + $0xb8] sm:$0xff]
    %v646 = vld [vmem:[#allocation5 + $0xc0] sm:$0xff]
    %v647 = vld [vmem:[#allocation5 + $0xc8] sm:$0xff]
    %v648 = vld [vmem:[#allocation5 + $0xd0] sm:$0xff]
    %v649 = vld [vmem:[#allocation5 + $0xd8] sm:$0xff]
    %v650 = vld [vmem:[#allocation5 + $0xe0] sm:$0xff]
    %v651 = vld [vmem:[#allocation5 + $0xe8] sm:$0xff]
    %v652 = vld [vmem:[#allocation5 + $0xf0] sm:$0xff]
    %v653 = vld [vmem:[#allocation5 + $0xf8] sm:$0xff]
    %v654 = vld [vmem:[#allocation5 + $0x100] sm:$0xff]
    %v655 = vld [vmem:[#allocation5 + $0x108] sm:$0xff]
    %v656 = vld [vmem:[#allocation5 + $0x110] sm:$0xff]
    %v657 = vld [vmem:[#allocation5 + $0x118] sm:$0xff]
    %v658 = vld [vmem:[#allocation5 + $0x120] sm:$0xff]
    %v659 = vld [vmem:[#allocation5 + $0x128] sm:$0xff]
    %v660 = vld [vmem:[#allocation5 + $0x130] sm:$0xff]
    %v661 = vld [vmem:[#allocation5 + $0x138] sm:$0xff]
    %v662 = vld [vmem:[#allocation5 + $0x140] sm:$0xff]
    %v663 = vld [vmem:[#allocation5 + $0x148] sm:$0xff]
    %v664 = vld [vmem:[#allocation5 + $0x150] sm:$0xff]
    %v665 = vld [vmem:[#allocation5 + $0x158] sm:$0xff]
    %v666 = vld [vmem:[#allocation5 + $0x160] sm:$0xff]
    %v667 = vld [vmem:[#allocation5 + $0x168] sm:$0xff]
    %v668 = vld [vmem:[#allocation5 + $0x170] sm:$0xff]
    %v669 = vld [vmem:[#allocation5 + $0x178] sm:$0xff]
    %v670 = vld [vmem:[#allocation5 + $0x180] sm:$0xff]
    %v671 = vld [vmem:[#allocation5 + $0x188] sm:$0xff]
    %v672 = vld [vmem:[#allocation5 + $0x190] sm:$0xff]
    %v673 = vld [vmem:[#allocation5 + $0x198] sm:$0xff]
    %v674 = vld [vmem:[#allocation5 + $0x1a0] sm:$0xff]
    %v675 = vld [vmem:[#allocation5 + $0x1a8] sm:$0xff]
    %v676 = vld [vmem:[#allocation5 + $0x1b0] sm:$0xff]
    %v677 = vld [vmem:[#allocation5 + $0x1b8] sm:$0xff]
    %v678 = vld [vmem:[#allocation5 + $0x1c0] sm:$0xff]
    %v679 = vld [vmem:[#allocation5 + $0x1c8] sm:$0xff]
    %v680 = vld [vmem:[#allocation5 + $0x1d0] sm:$0xff]
    %v681 = vld [vmem:[#allocation5 + $0x1d8] sm:$0xff]
    %v682 = vld [vmem:[#allocation5 + $0x1e0] sm:$0xff]
    %v683 = vld [vmem:[#allocation5 + $0x1e8] sm:$0xff]
    %v684 = vld [vmem:[#allocation5 + $0x1f0] sm:$0xff]
    %v685 = vld [vmem:[#allocation5 + $0x1f8] sm:$0xff]
    %686 = vmatprep.subr.mxu0 %v683
    %687 = vmatpush1.msra.mxu0 %v682
    %688 = vmatprep.subr.mxu0 %v679
    %689 = vmatpush1.msra.mxu0 %v678
    %690 = vmatprep.subr.mxu0 %v675
    %691 = vmatpush1.msra.mxu0 %v674
    %692 = vmatprep.subr.mxu0 %v671
    %693 = vmatpush1.msra.mxu0 %v670
    %694 = vmatprep.subr.mxu0 %v667
    %695 = vmatpush1.msra.mxu0 %v666
    %696 = vmatprep.subr.mxu0 %v663
    %697 = vmatpush1.msra.mxu0 %v662
    %698 = vmatprep.subr.mxu0 %v659
    %699 = vmatpush1.msra.mxu0 %v658
    %700 = vmatprep.subr.mxu0 %v655
    %701 = vmatpush1.msra.mxu0 %v654
    %702 = vmatprep.subr.mxu0 %v651
    %703 = vmatpush1.msra.mxu0 %v650
    %704 = vmatprep.subr.mxu0 %v647
    %705 = vmatpush1.msra.mxu0 %v646
    %706 = vmatprep.subr.mxu0 %v643
    %707 = vmatpush1.msra.mxu0 %v642
    %708 = vmatprep.subr.mxu0 %v639
    %709 = vmatpush1.msra.mxu0 %v638
    %710 = vmatprep.subr.mxu0 %v635
    %711 = vmatpush1.msra.mxu0 %v634
    %712 = vmatprep.subr.mxu0 %v631
    %713 = vmatpush1.msra.mxu0 %v630
    %714 = vmatprep.subr.mxu0 %v627
    %715 = vmatpush1.msra.mxu0 %v626
    %716 = vmatprep.subr.mxu0 %v623
    %717 = vmatpush1.msra.mxu0 %v622
    %718 = vmatprep.subr.mxu0 0.0
    %719 = vmatpush2.msra.mxu0 0.0
    %720 = vmatprep.subr.mxu0 0.0
    %721 = vmatpush2.msra.mxu0 0.0
    %722 = vmatprep.subr.mxu0 0.0
    %723 = vmatpush2.msra.mxu0 0.0
    %724 = vmatprep.subr.mxu0 0.0
    %725 = vmatpush2.msra.mxu0 0.0
    %726 = vmatprep.subr.mxu0 0.0
    %727 = vmatpush2.msra.mxu0 0.0
    %728 = vmatprep.subr.mxu0 0.0
    %729 = vmatpush2.msra.mxu0 0.0
    %730 = vmatprep.subr.mxu0 0.0
    %731 = vmatpush2.msra.mxu0 0.0
    %732 = vmatprep.subr.mxu0 0.0
    %733 = vmatpush2.msra.mxu0 0.0
    %734 = vmatprep.subr.mxu0 0.0
    %735 = vmatpush2.msra.mxu0 0.0
    %736 = vmatprep.subr.mxu0 0.0
    %737 = vmatpush2.msra.mxu0 0.0
    %738 = vmatprep.subr.mxu0 0.0
    %739 = vmatpush2.msra.mxu0 0.0
    %740 = vmatprep.subr.mxu0 0.0
    %741 = vmatpush2.msra.mxu0 0.0
    %742 = vmatprep.subr.mxu0 0.0
    %743 = vmatpush2.msra.mxu0 0.0
    %744 = vmatprep.subr.mxu0 0.0
    %745 = vmatpush2.msra.mxu0 0.0
    %746 = vmatprep.subr.mxu0 0.0
    %747 = vmatpush2.msra.mxu0 0.0
    %748 = vmatprep.subr.mxu0 0.0
    %749 = vmatpush2.msra.mxu0 0.0
    %750 = vmatprep.mubr.f32.mxu0 0.0
    %751 = vmatmul.mubr.f32.gmra.mxu0 %v621
    %v752 = vpop.f32.mrf.mxu0
    %v753 = vadd.f32 0.0, %v752
    %v754 = vpop.f32.mrf.mxu0
    %v755 = vadd.f32 0.0, %v754
    %756 = vdwg.mxu0
    %757 = vmatprep.subr.mxu0 %v685
    %758 = vmatpush1.msra.mxu0 %v684
    %759 = vmatprep.subr.mxu0 %v681
    %760 = vmatpush1.msra.mxu0 %v680
    %761 = vmatprep.subr.mxu0 %v677
    %762 = vmatpush1.msra.mxu0 %v676
    %763 = vmatprep.subr.mxu0 %v673
    %764 = vmatpush1.msra.mxu0 %v672
    %765 = vmatprep.subr.mxu0 %v669
    %766 = vmatpush1.msra.mxu0 %v668
    %767 = vmatprep.subr.mxu0 %v665
    %768 = vmatpush1.msra.mxu0 %v664
    %769 = vmatprep.subr.mxu0 %v661
    %770 = vmatpush1.msra.mxu0 %v660
    %771 = vmatprep.subr.mxu0 %v657
    %772 = vmatpush1.msra.mxu0 %v656
    %773 = vmatprep.subr.mxu0 %v653
    %774 = vmatpush1.msra.mxu0 %v652
    %775 = vmatprep.subr.mxu0 %v649
    %776 = vmatpush1.msra.mxu0 %v648
    %777 = vmatprep.subr.mxu0 %v645
    %778 = vmatpush1.msra.mxu0 %v644
    %779 = vmatprep.subr.mxu0 %v641
    %780 = vmatpush1.msra.mxu0 %v640
    %781 = vmatprep.subr.mxu0 %v637
    %782 = vmatpush1.msra.mxu0 %v636
    %783 = vmatprep.subr.mxu0 %v633
    %784 = vmatpush1.msra.mxu0 %v632
    %785 = vmatprep.subr.mxu0 %v629
    %786 = vmatpush1.msra.mxu0 %v628
    %787 = vmatprep.subr.mxu0 %v625
    %788 = vmatpush1.msra.mxu0 %v624
    %789 = vmatprep.subr.mxu0 0.0
    %790 = vmatpush2.msra.mxu0 0.0
    %791 = vmatprep.subr.mxu0 0.0
    %792 = vmatpush2.msra.mxu0 0.0
    %793 = vmatprep.subr.mxu0 0.0
    %794 = vmatpush2.msra.mxu0 0.0
    %795 = vmatprep.subr.mxu0 0.0
    %796 = vmatpush2.msra.mxu0 0.0
    %797 = vmatprep.subr.mxu0 0.0
    %798 = vmatpush2.msra.mxu0 0.0
    %799 = vmatprep.subr.mxu0 0.0
    %800 = vmatpush2.msra.mxu0 0.0
    %801 = vmatprep.subr.mxu0 0.0
    %802 = vmatpush2.msra.mxu0 0.0
    %803 = vmatprep.subr.mxu0 0.0
    %804 = vmatpush2.msra.mxu0 0.0
    %805 = vmatprep.subr.mxu0 0.0
    %806 = vmatpush2.msra.mxu0 0.0
    %807 = vmatprep.subr.mxu0 0.0
    %808 = vmatpush2.msra.mxu0 0.0
    %809 = vmatprep.subr.mxu0 0.0
    %810 = vmatpush2.msra.mxu0 0.0
    %811 = vmatprep.subr.mxu0 0.0
    %812 = vmatpush2.msra.mxu0 0.0
    %813 = vmatprep.subr.mxu0 0.0
    %814 = vmatpush2.msra.mxu0 0.0
    %815 = vmatprep.subr.mxu0 0.0
    %816 = vmatpush2.msra.mxu0 0.0
    %817 = vmatprep.subr.mxu0 0.0
    %818 = vmatpush2.msra.mxu0 0.0
    %819 = vmatprep.subr.mxu0 0.0
    %820 = vmatpush2.msra.mxu0 0.0
    %821 = vmatprep.mubr.f32.mxu0 0.0
    %822 = vmatmul.mubr.f32.gmra.mxu0 %v621
    %v823 = vpop.f32.mrf.mxu0
    %v824 = vadd.f32 0.0, %v823
    %v825 = vpop.f32.mrf.mxu0
    %v826 = vadd.f32 0.0, %v825
    %827 = vdwg.mxu0
    %v828 = vadd.f32 %v617, %v753
    %v829 = vadd.f32 %v618, %v755
    %v830 = vadd.f32 %v619, %v824
    %v831 = vadd.f32 %v620, %v826
    %v832 = vxor.u32 %v828, 2147483648
    %v833 = vmul.f32 %v832, 1.442695
    %v834 = vpow.pop %v833
    %v835 = vadd.f32 %v834, 1.0
    %v836 = vrcp.pop %v835
    %v837 = vmul.f32 1.0, %v836
    %v838 = vxor.u32 %v829, 2147483648
    %v839 = vmul.f32 %v838, 1.442695
    %v840 = vpow.pop %v839
    %v841 = vadd.f32 %v840, 1.0
    %v842 = vrcp.pop %v841
    %v843 = vmul.f32 1.0, %v842
    %v844 = vtanh.pop %v830
    %v845 = vxor.u32 %v831, 2147483648
    %v846 = vmul.f32 %v845, 1.442695
    %v847 = vpow.pop %v846
    %v848 = vadd.f32 %v847, 1.0
    %v849 = vrcp.pop %v848
    %v850 = vmul.f32 1.0, %v849
    %v851 = vld [vmem:[#allocation4] sm:$0xff]
    %v852 = vmul.f32 %v843, %v851
    %v853 = vmul.f32 %v837, %v844
    %v854 = vadd.f32 %v852, %v853
    %v855 = vtanh.pop %v854
    %v856 = vmul.f32 %v850, %v855
    %857 = vst [vmem:[#allocation3] sm:$0xff] %v856
    %858 = vst [vmem:[#allocation4] sm:$0xff] %v854
    %v859 = vld [vmem:[#allocation2 + $0x40] sm:$0xff]
    %v860 = vld [vmem:[#allocation2 + $0x48] sm:$0xff]
    %v861 = vld [vmem:[#allocation2 + $0x50] sm:$0xff]
    %v862 = vld [vmem:[#allocation2 + $0x58] sm:$0xff]
    %v863 = vld [vmem:[#allocation3] sm:$0xff]
    %v864 = vld [vmem:[#allocation5] sm:$0xff]
    %v865 = vld [vmem:[#allocation5 + $0x8] sm:$0xff]
    %v866 = vld [vmem:[#allocation5 + $0x10] sm:$0xff]
    %v867 = vld [vmem:[#allocation5 + $0x18] sm:$0xff]
    %v868 = vld [vmem:[#allocation5 + $0x20] sm:$0xff]
    %v869 = vld [vmem:[#allocation5 + $0x28] sm:$0xff]
    %v870 = vld [vmem:[#allocation5 + $0x30] sm:$0xff]
    %v871 = vld [vmem:[#allocation5 + $0x38] sm:$0xff]
    %v872 = vld [vmem:[#allocation5 + $0x40] sm:$0xff]
    %v873 = vld [vmem:[#allocation5 + $0x48] sm:$0xff]
    %v874 = vld [vmem:[#allocation5 + $0x50] sm:$0xff]
    %v875 = vld [vmem:[#allocation5 + $0x58] sm:$0xff]
    %v876 = vld [vmem:[#allocation5 + $0x60] sm:$0xff]
    %v877 = vld [vmem:[#allocation5 + $0x68] sm:$0xff]
    %v878 = vld [vmem:[#allocation5 + $0x70] sm:$0xff]
    %v879 = vld [vmem:[#allocation5 + $0x78] sm:$0xff]
    %v880 = vld [vmem:[#allocation5 + $0x80] sm:$0xff]
    %v881 = vld [vmem:[#allocation5 + $0x88] sm:$0xff]
    %v882 = vld [vmem:[#allocation5 + $0x90] sm:$0xff]
    %v883 = vld [vmem:[#allocation5 + $0x98] sm:$0xff]
    %v884 = vld [vmem:[#allocation5 + $0xa0] sm:$0xff]
    %v885 = vld [vmem:[#allocation5 + $0xa8] sm:$0xff]
    %v886 = vld [vmem:[#allocation5 + $0xb0] sm:$0xff]
    %v887 = vld [vmem:[#allocation5 + $0xb8] sm:$0xff]
    %v888 = vld [vmem:[#allocation5 + $0xc0] sm:$0xff]
    %v889 = vld [vmem:[#allocation5 + $0xc8] sm:$0xff]
    %v890 = vld [vmem:[#allocation5 + $0xd0] sm:$0xff]
    %v891 = vld [vmem:[#allocation5 + $0xd8] sm:$0xff]
    %v892 = vld [vmem:[#allocation5 + $0xe0] sm:$0xff]
    %v893 = vld [vmem:[#allocation5 + $0xe8] sm:$0xff]
    %v894 = vld [vmem:[#allocation5 + $0xf0] sm:$0xff]
    %v895 = vld [vmem:[#allocation5 + $0xf8] sm:$0xff]
    %v896 = vld [vmem:[#allocation5 + $0x100] sm:$0xff]
    %v897 = vld [vmem:[#allocation5 + $0x108] sm:$0xff]
    %v898 = vld [vmem:[#allocation5 + $0x110] sm:$0xff]
    %v899 = vld [vmem:[#allocation5 + $0x118] sm:$0xff]
    %v900 = vld [vmem:[#allocation5 + $0x120] sm:$0xff]
    %v901 = vld [vmem:[#allocation5 + $0x128] sm:$0xff]
    %v902 = vld [vmem:[#allocation5 + $0x130] sm:$0xff]
    %v903 = vld [vmem:[#allocation5 + $0x138] sm:$0xff]
    %v904 = vld [vmem:[#allocation5 + $0x140] sm:$0xff]
    %v905 = vld [vmem:[#allocation5 + $0x148] sm:$0xff]
    %v906 = vld [vmem:[#allocation5 + $0x150] sm:$0xff]
    %v907 = vld [vmem:[#allocation5 + $0x158] sm:$0xff]
    %v908 = vld [vmem:[#allocation5 + $0x160] sm:$0xff]
    %v909 = vld [vmem:[#allocation5 + $0x168] sm:$0xff]
    %v910 = vld [vmem:[#allocation5 + $0x170] sm:$0xff]
    %v911 = vld [vmem:[#allocation5 + $0x178] sm:$0xff]
    %v912 = vld [vmem:[#allocation5 + $0x180] sm:$0xff]
    %v913 = vld [vmem:[#allocation5 + $0x188] sm:$0xff]
    %v914 = vld [vmem:[#allocation5 + $0x190] sm:$0xff]
    %v915 = vld [vmem:[#allocation5 + $0x198] sm:$0xff]
    %v916 = vld [vmem:[#allocation5 + $0x1a0] sm:$0xff]
    %v917 = vld [vmem:[#allocation5 + $0x1a8] sm:$0xff]
    %v918 = vld [vmem:[#allocation5 + $0x1b0] sm:$0xff]
    %v919 = vld [vmem:[#allocation5 + $0x1b8] sm:$0xff]
    %v920 = vld [vmem:[#allocation5 + $0x1c0] sm:$0xff]
    %v921 = vld [vmem:[#allocation5 + $0x1c8] sm:$0xff]
    %v922 = vld [vmem:[#allocation5 + $0x1d0] sm:$0xff]
    %v923 = vld [vmem:[#allocation5 + $0x1d8] sm:$0xff]
    %v924 = vld [vmem:[#allocation5 + $0x1e0] sm:$0xff]
    %v925 = vld [vmem:[#allocation5 + $0x1e8] sm:$0xff]
    %v926 = vld [vmem:[#allocation5 + $0x1f0] sm:$0xff]
    %v927 = vld [vmem:[#allocation5 + $0x1f8] sm:$0xff]
    %928 = vmatprep.subr.mxu0 %v925
    %929 = vmatpush1.msra.mxu0 %v924
    %930 = vmatprep.subr.mxu0 %v921
    %931 = vmatpush1.msra.mxu0 %v920
    %932 = vmatprep.subr.mxu0 %v917
    %933 = vmatpush1.msra.mxu0 %v916
    %934 = vmatprep.subr.mxu0 %v913
    %935 = vmatpush1.msra.mxu0 %v912
    %936 = vmatprep.subr.mxu0 %v909
    %937 = vmatpush1.msra.mxu0 %v908
    %938 = vmatprep.subr.mxu0 %v905
    %939 = vmatpush1.msra.mxu0 %v904
    %940 = vmatprep.subr.mxu0 %v901
    %941 = vmatpush1.msra.mxu0 %v900
    %942 = vmatprep.subr.mxu0 %v897
    %943 = vmatpush1.msra.mxu0 %v896
    %944 = vmatprep.subr.mxu0 %v893
    %945 = vmatpush1.msra.mxu0 %v892
    %946 = vmatprep.subr.mxu0 %v889
    %947 = vmatpush1.msra.mxu0 %v888
    %948 = vmatprep.subr.mxu0 %v885
    %949 = vmatpush1.msra.mxu0 %v884
    %950 = vmatprep.subr.mxu0 %v881
    %951 = vmatpush1.msra.mxu0 %v880
    %952 = vmatprep.subr.mxu0 %v877
    %953 = vmatpush1.msra.mxu0 %v876
    %954 = vmatprep.subr.mxu0 %v873
    %955 = vmatpush1.msra.mxu0 %v872
    %956 = vmatprep.subr.mxu0 %v869
    %957 = vmatpush1.msra.mxu0 %v868
    %958 = vmatprep.subr.mxu0 %v865
    %959 = vmatpush1.msra.mxu0 %v864
    %960 = vmatprep.subr.mxu0 0.0
    %961 = vmatpush2.msra.mxu0 0.0
    %962 = vmatprep.subr.mxu0 0.0
    %963 = vmatpush2.msra.mxu0 0.0
    %964 = vmatprep.subr.mxu0 0.0
    %965 = vmatpush2.msra.mxu0 0.0
    %966 = vmatprep.subr.mxu0 0.0
    %967 = vmatpush2.msra.mxu0 0.0
    %968 = vmatprep.subr.mxu0 0.0
    %969 = vmatpush2.msra.mxu0 0.0
    %970 = vmatprep.subr.mxu0 0.0
    %971 = vmatpush2.msra.mxu0 0.0
    %972 = vmatprep.subr.mxu0 0.0
    %973 = vmatpush2.msra.mxu0 0.0
    %974 = vmatprep.subr.mxu0 0.0
    %975 = vmatpush2.msra.mxu0 0.0
    %976 = vmatprep.subr.mxu0 0.0
    %977 = vmatpush2.msra.mxu0 0.0
    %978 = vmatprep.subr.mxu0 0.0
    %979 = vmatpush2.msra.mxu0 0.0
    %980 = vmatprep.subr.mxu0 0.0
    %981 = vmatpush2.msra.mxu0 0.0
    %982 = vmatprep.subr.mxu0 0.0
    %983 = vmatpush2.msra.mxu0 0.0
    %984 = vmatprep.subr.mxu0 0.0
    %985 = vmatpush2.msra.mxu0 0.0
    %986 = vmatprep.subr.mxu0 0.0
    %987 = vmatpush2.msra.mxu0 0.0
    %988 = vmatprep.subr.mxu0 0.0
    %989 = vmatpush2.msra.mxu0 0.0
    %990 = vmatprep.subr.mxu0 0.0
    %991 = vmatpush2.msra.mxu0 0.0
    %992 = vmatprep.mubr.f32.mxu0 0.0
    %993 = vmatmul.mubr.f32.gmra.mxu0 %v863
    %v994 = vpop.f32.mrf.mxu0
    %v995 = vadd.f32 0.0, %v994
    %v996 = vpop.f32.mrf.mxu0
    %v997 = vadd.f32 0.0, %v996
    %998 = vdwg.mxu0
    %999 = vmatprep.subr.mxu0 %v927
    %1000 = vmatpush1.msra.mxu0 %v926
    %1001 = vmatprep.subr.mxu0 %v923
    %1002 = vmatpush1.msra.mxu0 %v922
    %1003 = vmatprep.subr.mxu0 %v919
    %1004 = vmatpush1.msra.mxu0 %v918
    %1005 = vmatprep.subr.mxu0 %v915
    %1006 = vmatpush1.msra.mxu0 %v914
    %1007 = vmatprep.subr.mxu0 %v911
    %1008 = vmatpush1.msra.mxu0 %v910
    %1009 = vmatprep.subr.mxu0 %v907
    %1010 = vmatpush1.msra.mxu0 %v906
    %1011 = vmatprep.subr.mxu0 %v903
    %1012 = vmatpush1.msra.mxu0 %v902
    %1013 = vmatprep.subr.mxu0 %v899
    %1014 = vmatpush1.msra.mxu0 %v898
    %1015 = vmatprep.subr.mxu0 %v895
    %1016 = vmatpush1.msra.mxu0 %v894
    %1017 = vmatprep.subr.mxu0 %v891
    %1018 = vmatpush1.msra.mxu0 %v890
    %1019 = vmatprep.subr.mxu0 %v887
    %1020 = vmatpush1.msra.mxu0 %v886
    %1021 = vmatprep.subr.mxu0 %v883
    %1022 = vmatpush1.msra.mxu0 %v882
    %1023 = vmatprep.subr.mxu0 %v879
    %1024 = vmatpush1.msra.mxu0 %v878
    %1025 = vmatprep.subr.mxu0 %v875
    %1026 = vmatpush1.msra.mxu0 %v874
    %1027 = vmatprep.subr.mxu0 %v871
    %1028 = vmatpush1.msra.mxu0 %v870
    %1029 = vmatprep.subr.mxu0 %v867
    %1030 = vmatpush1.msra.mxu0 %v866
    %1031 = vmatprep.subr.mxu0 0.0
    %1032 = vmatpush2.msra.mxu0 0.0
    %1033 = vmatprep.subr.mxu0 0.0
    %1034 = vmatpush2.msra.mxu0 0.0
    %1035 = vmatprep.subr.mxu0 0.0
    %1036 = vmatpush2.msra.mxu0 0.0
    %1037 = vmatprep.subr.mxu0 0.0
    %1038 = vmatpush2.msra.mxu0 0.0
    %1039 = vmatprep.subr.mxu0 0.0
    %1040 = vmatpush2.msra.mxu0 0.0
    %1041 = vmatprep.subr.mxu0 0.0
    %1042 = vmatpush2.msra.mxu0 0.0
    %1043 = vmatprep.subr.mxu0 0.0
    %1044 = vmatpush2.msra.mxu0 0.0
    %1045 = vmatprep.subr.mxu0 0.0
    %1046 = vmatpush2.msra.mxu0 0.0
    %1047 = vmatprep.subr.mxu0 0.0
    %1048 = vmatpush2.msra.mxu0 0.0
    %1049 = vmatprep.subr.mxu0 0.0
    %1050 = vmatpush2.msra.mxu0 0.0
    %1051 = vmatprep.subr.mxu0 0.0
    %1052 = vmatpush2.msra.mxu0 0.0
    %1053 = vmatprep.subr.mxu0 0.0
    %1054 = vmatpush2.msra.mxu0 0.0
    %1055 = vmatprep.subr.mxu0 0.0
    %1056 = vmatpush2.msra.mxu0 0.0
    %1057 = vmatprep.subr.mxu0 0.0
    %1058 = vmatpush2.msra.mxu0 0.0
    %1059 = vmatprep.subr.mxu0 0.0
    %1060 = vmatpush2.msra.mxu0 0.0
    %1061 = vmatprep.subr.mxu0 0.0
    %1062 = vmatpush2.msra.mxu0 0.0
    %1063 = vmatprep.mubr.f32.mxu0 0.0
    %1064 = vmatmul.mubr.f32.gmra.mxu0 %v863
    %v1065 = vpop.f32.mrf.mxu0
    %v1066 = vadd.f32 0.0, %v1065
    %v1067 = vpop.f32.mrf.mxu0
    %v1068 = vadd.f32 0.0, %v1067
    %1069 = vdwg.mxu0
    %v1070 = vadd.f32 %v859, %v995
    %v1071 = vadd.f32 %v860, %v997
    %v1072 = vadd.f32 %v861, %v1066
    %v1073 = vadd.f32 %v862, %v1068
    %v1074 = vxor.u32 %v1070, 2147483648
    %v1075 = vmul.f32 %v1074, 1.442695
    %v1076 = vpow.pop %v1075
    %v1077 = vadd.f32 %v1076, 1.0
    %v1078 = vrcp.pop %v1077
    %v1079 = vmul.f32 1.0, %v1078
    %v1080 = vxor.u32 %v1071, 2147483648
    %v1081 = vmul.f32 %v1080, 1.442695
    %v1082 = vpow.pop %v1081
    %v1083 = vadd.f32 %v1082, 1.0
    %v1084 = vrcp.pop %v1083
    %v1085 = vmul.f32 1.0, %v1084
    %v1086 = vtanh.pop %v1072
    %v1087 = vxor.u32 %v1073, 2147483648
    %v1088 = vmul.f32 %v1087, 1.442695
    %v1089 = vpow.pop %v1088
    %v1090 = vadd.f32 %v1089, 1.0
    %v1091 = vrcp.pop %v1090
    %v1092 = vmul.f32 1.0, %v1091
    %v1093 = vld [vmem:[#allocation4] sm:$0xff]
    %v1094 = vmul.f32 %v1085, %v1093
    %v1095 = vmul.f32 %v1079, %v1086
    %v1096 = vadd.f32 %v1094, %v1095
    %v1097 = vtanh.pop %v1096
    %v1098 = vmul.f32 %v1092, %v1097
    %1099 = vst [vmem:[#allocation3] sm:$0xff] %v1098
    %1100 = vst [vmem:[#allocation4] sm:$0xff] %v1096
    %v1101 = vld [vmem:[#allocation2 + $0x60] sm:$0xff]
    %v1102 = vld [vmem:[#allocation2 + $0x68] sm:$0xff]
    %v1103 = vld [vmem:[#allocation2 + $0x70] sm:$0xff]
    %v1104 = vld [vmem:[#allocation2 + $0x78] sm:$0xff]
    %v1105 = vld [vmem:[#allocation3] sm:$0xff]
    %v1106 = vld [vmem:[#allocation5] sm:$0xff]
    %v1107 = vld [vmem:[#allocation5 + $0x8] sm:$0xff]
    %v1108 = vld [vmem:[#allocation5 + $0x10] sm:$0xff]
    %v1109 = vld [vmem:[#allocation5 + $0x18] sm:$0xff]
    %v1110 = vld [vmem:[#allocation5 + $0x20] sm:$0xff]
    %v1111 = vld [vmem:[#allocation5 + $0x28] sm:$0xff]
    %v1112 = vld [vmem:[#allocation5 + $0x30] sm:$0xff]
    %v1113 = vld [vmem:[#allocation5 + $0x38] sm:$0xff]
    %v1114 = vld [vmem:[#allocation5 + $0x40] sm:$0xff]
    %v1115 = vld [vmem:[#allocation5 + $0x48] sm:$0xff]
    %v1116 = vld [vmem:[#allocation5 + $0x50] sm:$0xff]
    %v1117 = vld [vmem:[#allocation5 + $0x58] sm:$0xff]
    %v1118 = vld [vmem:[#allocation5 + $0x60] sm:$0xff]
    %v1119 = vld [vmem:[#allocation5 + $0x68] sm:$0xff]
    %v1120 = vld [vmem:[#allocation5 + $0x70] sm:$0xff]
    %v1121 = vld [vmem:[#allocation5 + $0x78] sm:$0xff]
    %v1122 = vld [vmem:[#allocation5 + $0x80] sm:$0xff]
    %v1123 = vld [vmem:[#allocation5 + $0x88] sm:$0xff]
    %v1124 = vld [vmem:[#allocation5 + $0x90] sm:$0xff]
    %v1125 = vld [vmem:[#allocation5 + $0x98] sm:$0xff]
    %v1126 = vld [vmem:[#allocation5 + $0xa0] sm:$0xff]
    %v1127 = vld [vmem:[#allocation5 + $0xa8] sm:$0xff]
    %v1128 = vld [vmem:[#allocation5 + $0xb0] sm:$0xff]
    %v1129 = vld [vmem:[#allocation5 + $0xb8] sm:$0xff]
    %v1130 = vld [vmem:[#allocation5 + $0xc0] sm:$0xff]
    %v1131 = vld [vmem:[#allocation5 + $0xc8] sm:$0xff]
    %v1132 = vld [vmem:[#allocation5 + $0xd0] sm:$0xff]
    %v1133 = vld [vmem:[#allocation5 + $0xd8] sm:$0xff]
    %v1134 = vld [vmem:[#allocation5 + $0xe0] sm:$0xff]
    %v1135 = vld [vmem:[#allocation5 + $0xe8] sm:$0xff]
    %v1136 = vld [vmem:[#allocation5 + $0xf0] sm:$0xff]
    %v1137 = vld [vmem:[#allocation5 + $0xf8] sm:$0xff]
    %v1138 = vld [vmem:[#allocation5 + $0x100] sm:$0xff]
    %v1139 = vld [vmem:[#allocation5 + $0x108] sm:$0xff]
    %v1140 = vld [vmem:[#allocation5 + $0x110] sm:$0xff]
    %v1141 = vld [vmem:[#allocation5 + $0x118] sm:$0xff]
    %v1142 = vld [vmem:[#allocation5 + $0x120] sm:$0xff]
    %v1143 = vld [vmem:[#allocation5 + $0x128] sm:$0xff]
    %v1144 = vld [vmem:[#allocation5 + $0x130] sm:$0xff]
    %v1145 = vld [vmem:[#allocation5 + $0x138] sm:$0xff]
    %v1146 = vld [vmem:[#allocation5 + $0x140] sm:$0xff]
    %v1147 = vld [vmem:[#allocation5 + $0x148] sm:$0xff]
    %v1148 = vld [vmem:[#allocation5 + $0x150] sm:$0xff]
    %v1149 = vld [vmem:[#allocation5 + $0x158] sm:$0xff]
    %v1150 = vld [vmem:[#allocation5 + $0x160] sm:$0xff]
    %v1151 = vld [vmem:[#allocation5 + $0x168] sm:$0xff]
    %v1152 = vld [vmem:[#allocation5 + $0x170] sm:$0xff]
    %v1153 = vld [vmem:[#allocation5 + $0x178] sm:$0xff]
    %v1154 = vld [vmem:[#allocation5 + $0x180] sm:$0xff]
    %v1155 = vld [vmem:[#allocation5 + $0x188] sm:$0xff]
    %v1156 = vld [vmem:[#allocation5 + $0x190] sm:$0xff]
    %v1157 = vld [vmem:[#allocation5 + $0x198] sm:$0xff]
    %v1158 = vld [vmem:[#allocation5 + $0x1a0] sm:$0xff]
    %v1159 = vld [vmem:[#allocation5 + $0x1a8] sm:$0xff]
    %v1160 = vld [vmem:[#allocation5 + $0x1b0] sm:$0xff]
    %v1161 = vld [vmem:[#allocation5 + $0x1b8] sm:$0xff]
    %v1162 = vld [vmem:[#allocation5 + $0x1c0] sm:$0xff]
    %v1163 = vld [vmem:[#allocation5 + $0x1c8] sm:$0xff]
    %v1164 = vld [vmem:[#allocation5 + $0x1d0] sm:$0xff]
    %v1165 = vld [vmem:[#allocation5 + $0x1d8] sm:$0xff]
    %v1166 = vld [vmem:[#allocation5 + $0x1e0] sm:$0xff]
    %v1167 = vld [vmem:[#allocation5 + $0x1e8] sm:$0xff]
    %v1168 = vld [vmem:[#allocation5 + $0x1f0] sm:$0xff]
    %v1169 = vld [vmem:[#allocation5 + $0x1f8] sm:$0xff]
    %1170 = vmatprep.subr.mxu0 %v1167
    %1171 = vmatpush1.msra.mxu0 %v1166
    %1172 = vmatprep.subr.mxu0 %v1163
    %1173 = vmatpush1.msra.mxu0 %v1162
    %1174 = vmatprep.subr.mxu0 %v1159
    %1175 = vmatpush1.msra.mxu0 %v1158
    %1176 = vmatprep.subr.mxu0 %v1155
    %1177 = vmatpush1.msra.mxu0 %v1154
    %1178 = vmatprep.subr.mxu0 %v1151
    %1179 = vmatpush1.msra.mxu0 %v1150
    %1180 = vmatprep.subr.mxu0 %v1147
    %1181 = vmatpush1.msra.mxu0 %v1146
    %1182 = vmatprep.subr.mxu0 %v1143
    %1183 = vmatpush1.msra.mxu0 %v1142
    %1184 = vmatprep.subr.mxu0 %v1139
    %1185 = vmatpush1.msra.mxu0 %v1138
    %1186 = vmatprep.subr.mxu0 %v1135
    %1187 = vmatpush1.msra.mxu0 %v1134
    %1188 = vmatprep.subr.mxu0 %v1131
    %1189 = vmatpush1.msra.mxu0 %v1130
    %1190 = vmatprep.subr.mxu0 %v1127
    %1191 = vmatpush1.msra.mxu0 %v1126
    %1192 = vmatprep.subr.mxu0 %v1123
    %1193 = vmatpush1.msra.mxu0 %v1122
    %1194 = vmatprep.subr.mxu0 %v1119
    %1195 = vmatpush1.msra.mxu0 %v1118
    %1196 = vmatprep.subr.mxu0 %v1115
    %1197 = vmatpush1.msra.mxu0 %v1114
    %1198 = vmatprep.subr.mxu0 %v1111
    %1199 = vmatpush1.msra.mxu0 %v1110
    %1200 = vmatprep.subr.mxu0 %v1107
    %1201 = vmatpush1.msra.mxu0 %v1106
    %1202 = vmatprep.subr.mxu0 0.0
    %1203 = vmatpush2.msra.mxu0 0.0
    %1204 = vmatprep.subr.mxu0 0.0
    %1205 = vmatpush2.msra.mxu0 0.0
    %1206 = vmatprep.subr.mxu0 0.0
    %1207 = vmatpush2.msra.mxu0 0.0
    %1208 = vmatprep.subr.mxu0 0.0
    %1209 = vmatpush2.msra.mxu0 0.0
    %1210 = vmatprep.subr.mxu0 0.0
    %1211 = vmatpush2.msra.mxu0 0.0
    %1212 = vmatprep.subr.mxu0 0.0
    %1213 = vmatpush2.msra.mxu0 0.0
    %1214 = vmatprep.subr.mxu0 0.0
    %1215 = vmatpush2.msra.mxu0 0.0
    %1216 = vmatprep.subr.mxu0 0.0
    %1217 = vmatpush2.msra.mxu0 0.0
    %1218 = vmatprep.subr.mxu0 0.0
    %1219 = vmatpush2.msra.mxu0 0.0
    %1220 = vmatprep.subr.mxu0 0.0
    %1221 = vmatpush2.msra.mxu0 0.0
    %1222 = vmatprep.subr.mxu0 0.0
    %1223 = vmatpush2.msra.mxu0 0.0
    %1224 = vmatprep.subr.mxu0 0.0
    %1225 = vmatpush2.msra.mxu0 0.0
    %1226 = vmatprep.subr.mxu0 0.0
    %1227 = vmatpush2.msra.mxu0 0.0
    %1228 = vmatprep.subr.mxu0 0.0
    %1229 = vmatpush2.msra.mxu0 0.0
    %1230 = vmatprep.subr.mxu0 0.0
    %1231 = vmatpush2.msra.mxu0 0.0
    %1232 = vmatprep.subr.mxu0 0.0
    %1233 = vmatpush2.msra.mxu0 0.0
    %1234 = vmatprep.mubr.f32.mxu0 0.0
    %1235 = vmatmul.mubr.f32.gmra.mxu0 %v1105
    %v1236 = vpop.f32.mrf.mxu0
    %v1237 = vadd.f32 0.0, %v1236
    %v1238 = vpop.f32.mrf.mxu0
    %v1239 = vadd.f32 0.0, %v1238
    %1240 = vdwg.mxu0
    %1241 = vmatprep.subr.mxu0 %v1169
    %1242 = vmatpush1.msra.mxu0 %v1168
    %1243 = vmatprep.subr.mxu0 %v1165
    %1244 = vmatpush1.msra.mxu0 %v1164
    %1245 = vmatprep.subr.mxu0 %v1161
    %1246 = vmatpush1.msra.mxu0 %v1160
    %1247 = vmatprep.subr.mxu0 %v1157
    %1248 = vmatpush1.msra.mxu0 %v1156
    %1249 = vmatprep.subr.mxu0 %v1153
    %1250 = vmatpush1.msra.mxu0 %v1152
    %1251 = vmatprep.subr.mxu0 %v1149
    %1252 = vmatpush1.msra.mxu0 %v1148
    %1253 = vmatprep.subr.mxu0 %v1145
    %1254 = vmatpush1.msra.mxu0 %v1144
    %1255 = vmatprep.subr.mxu0 %v1141
    %1256 = vmatpush1.msra.mxu0 %v1140
    %1257 = vmatprep.subr.mxu0 %v1137
    %1258 = vmatpush1.msra.mxu0 %v1136
    %1259 = vmatprep.subr.mxu0 %v1133
    %1260 = vmatpush1.msra.mxu0 %v1132
    %1261 = vmatprep.subr.mxu0 %v1129
    %1262 = vmatpush1.msra.mxu0 %v1128
    %1263 = vmatprep.subr.mxu0 %v1125
    %1264 = vmatpush1.msra.mxu0 %v1124
    %1265 = vmatprep.subr.mxu0 %v1121
    %1266 = vmatpush1.msra.mxu0 %v1120
    %1267 = vmatprep.subr.mxu0 %v1117
    %1268 = vmatpush1.msra.mxu0 %v1116
    %1269 = vmatprep.subr.mxu0 %v1113
    %1270 = vmatpush1.msra.mxu0 %v1112
    %1271 = vmatprep.subr.mxu0 %v1109
    %1272 = vmatpush1.msra.mxu0 %v1108
    %1273 = vmatprep.subr.mxu0 0.0
    %1274 = vmatpush2.msra.mxu0 0.0
    %1275 = vmatprep.subr.mxu0 0.0
    %1276 = vmatpush2.msra.mxu0 0.0
    %1277 = vmatprep.subr.mxu0 0.0
    %1278 = vmatpush2.msra.mxu0 0.0
    %1279 = vmatprep.subr.mxu0 0.0
    %1280 = vmatpush2.msra.mxu0 0.0
    %1281 = vmatprep.subr.mxu0 0.0
    %1282 = vmatpush2.msra.mxu0 0.0
    %1283 = vmatprep.subr.mxu0 0.0
    %1284 = vmatpush2.msra.mxu0 0.0
    %1285 = vmatprep.subr.mxu0 0.0
    %1286 = vmatpush2.msra.mxu0 0.0
    %1287 = vmatprep.subr.mxu0 0.0
    %1288 = vmatpush2.msra.mxu0 0.0
    %1289 = vmatprep.subr.mxu0 0.0
    %1290 = vmatpush2.msra.mxu0 0.0
    %1291 = vmatprep.subr.mxu0 0.0
    %1292 = vmatpush2.msra.mxu0 0.0
    %1293 = vmatprep.subr.mxu0 0.0
    %1294 = vmatpush2.msra.mxu0 0.0
    %1295 = vmatprep.subr.mxu0 0.0
    %1296 = vmatpush2.msra.mxu0 0.0
    %1297 = vmatprep.subr.mxu0 0.0
    %1298 = vmatpush2.msra.mxu0 0.0
    %1299 = vmatprep.subr.mxu0 0.0
    %1300 = vmatpush2.msra.mxu0 0.0
    %1301 = vmatprep.subr.mxu0 0.0
    %1302 = vmatpush2.msra.mxu0 0.0
    %1303 = vmatprep.subr.mxu0 0.0
    %1304 = vmatpush2.msra.mxu0 0.0
    %1305 = vmatprep.mubr.f32.mxu0 0.0
    %1306 = vmatmul.mubr.f32.gmra.mxu0 %v1105
    %v1307 = vpop.f32.mrf.mxu0
    %v1308 = vadd.f32 0.0, %v1307
    %v1309 = vpop.f32.mrf.mxu0
    %v1310 = vadd.f32 0.0, %v1309
    %1311 = vdwg.mxu0
    %v1312 = vadd.f32 %v1101, %v1237
    %v1313 = vadd.f32 %v1102, %v1239
    %v1314 = vadd.f32 %v1103, %v1308
    %v1315 = vadd.f32 %v1104, %v1310
    %v1316 = vxor.u32 %v1312, 2147483648
    %v1317 = vmul.f32 %v1316, 1.442695
    %v1318 = vpow.pop %v1317
    %v1319 = vadd.f32 %v1318, 1.0
    %v1320 = vrcp.pop %v1319
    %v1321 = vmul.f32 1.0, %v1320
    %v1322 = vxor.u32 %v1313, 2147483648
    %v1323 = vmul.f32 %v1322, 1.442695
    %v1324 = vpow.pop %v1323
    %v1325 = vadd.f32 %v1324, 1.0
    %v1326 = vrcp.pop %v1325
    %v1327 = vmul.f32 1.0, %v1326
    %v1328 = vtanh.pop %v1314
    %v1329 = vxor.u32 %v1315, 2147483648
    %v1330 = vmul.f32 %v1329, 1.442695
    %v1331 = vpow.pop %v1330
    %v1332 = vadd.f32 %v1331, 1.0
    %v1333 = vrcp.pop %v1332
    %v1334 = vmul.f32 1.0, %v1333
    %v1335 = vld [vmem:[#allocation4] sm:$0xff]
    %v1336 = vmul.f32 %v1327, %v1335
    %v1337 = vmul.f32 %v1321, %v1328
    %v1338 = vadd.f32 %v1336, %v1337
    %v1339 = vtanh.pop %v1338
    %v1340 = vmul.f32 %v1334, %v1339
    %1341 = vst [vmem:[#allocation3] sm:$0xff] %v1340
    %1342 = vst [vmem:[#allocation4] sm:$0xff] %v1338
    %v1343 = vld [vmem:[#allocation2 + $0x80] sm:$0xff]
    %v1344 = vld [vmem:[#allocation2 + $0x88] sm:$0xff]
    %v1345 = vld [vmem:[#allocation2 + $0x90] sm:$0xff]
    %v1346 = vld [vmem:[#allocation2 + $0x98] sm:$0xff]
    %v1347 = vld [vmem:[#allocation3] sm:$0xff]
    %v1348 = vld [vmem:[#allocation5] sm:$0xff]
    %v1349 = vld [vmem:[#allocation5 + $0x8] sm:$0xff]
    %v1350 = vld [vmem:[#allocation5 + $0x10] sm:$0xff]
    %v1351 = vld [vmem:[#allocation5 + $0x18] sm:$0xff]
    %v1352 = vld [vmem:[#allocation5 + $0x20] sm:$0xff]
    %v1353 = vld [vmem:[#allocation5 + $0x28] sm:$0xff]
    %v1354 = vld [vmem:[#allocation5 + $0x30] sm:$0xff]
    %v1355 = vld [vmem:[#allocation5 + $0x38] sm:$0xff]
    %v1356 = vld [vmem:[#allocation5 + $0x40] sm:$0xff]
    %v1357 = vld [vmem:[#allocation5 + $0x48] sm:$0xff]
    %v1358 = vld [vmem:[#allocation5 + $0x50] sm:$0xff]
    %v1359 = vld [vmem:[#allocation5 + $0x58] sm:$0xff]
    %v1360 = vld [vmem:[#allocation5 + $0x60] sm:$0xff]
    %v1361 = vld [vmem:[#allocation5 + $0x68] sm:$0xff]
    %v1362 = vld [vmem:[#allocation5 + $0x70] sm:$0xff]
    %v1363 = vld [vmem:[#allocation5 + $0x78] sm:$0xff]
    %v1364 = vld [vmem:[#allocation5 + $0x80] sm:$0xff]
    %v1365 = vld [vmem:[#allocation5 + $0x88] sm:$0xff]
    %v1366 = vld [vmem:[#allocation5 + $0x90] sm:$0xff]
    %v1367 = vld [vmem:[#allocation5 + $0x98] sm:$0xff]
    %v1368 = vld [vmem:[#allocation5 + $0xa0] sm:$0xff]
    %v1369 = vld [vmem:[#allocation5 + $0xa8] sm:$0xff]
    %v1370 = vld [vmem:[#allocation5 + $0xb0] sm:$0xff]
    %v1371 = vld [vmem:[#allocation5 + $0xb8] sm:$0xff]
    %v1372 = vld [vmem:[#allocation5 + $0xc0] sm:$0xff]
    %v1373 = vld [vmem:[#allocation5 + $0xc8] sm:$0xff]
    %v1374 = vld [vmem:[#allocation5 + $0xd0] sm:$0xff]
    %v1375 = vld [vmem:[#allocation5 + $0xd8] sm:$0xff]
    %v1376 = vld [vmem:[#allocation5 + $0xe0] sm:$0xff]
    %v1377 = vld [vmem:[#allocation5 + $0xe8] sm:$0xff]
    %v1378 = vld [vmem:[#allocation5 + $0xf0] sm:$0xff]
    %v1379 = vld [vmem:[#allocation5 + $0xf8] sm:$0xff]
    %v1380 = vld [vmem:[#allocation5 + $0x100] sm:$0xff]
    %v1381 = vld [vmem:[#allocation5 + $0x108] sm:$0xff]
    %v1382 = vld [vmem:[#allocation5 + $0x110] sm:$0xff]
    %v1383 = vld [vmem:[#allocation5 + $0x118] sm:$0xff]
    %v1384 = vld [vmem:[#allocation5 + $0x120] sm:$0xff]
    %v1385 = vld [vmem:[#allocation5 + $0x128] sm:$0xff]
    %v1386 = vld [vmem:[#allocation5 + $0x130] sm:$0xff]
    %v1387 = vld [vmem:[#allocation5 + $0x138] sm:$0xff]
    %v1388 = vld [vmem:[#allocation5 + $0x140] sm:$0xff]
    %v1389 = vld [vmem:[#allocation5 + $0x148] sm:$0xff]
    %v1390 = vld [vmem:[#allocation5 + $0x150] sm:$0xff]
    %v1391 = vld [vmem:[#allocation5 + $0x158] sm:$0xff]
    %v1392 = vld [vmem:[#allocation5 + $0x160] sm:$0xff]
    %v1393 = vld [vmem:[#allocation5 + $0x168] sm:$0xff]
    %v1394 = vld [vmem:[#allocation5 + $0x170] sm:$0xff]
    %v1395 = vld [vmem:[#allocation5 + $0x178] sm:$0xff]
    %v1396 = vld [vmem:[#allocation5 + $0x180] sm:$0xff]
    %v1397 = vld [vmem:[#allocation5 + $0x188] sm:$0xff]
    %v1398 = vld [vmem:[#allocation5 + $0x190] sm:$0xff]
    %v1399 = vld [vmem:[#allocation5 + $0x198] sm:$0xff]
    %v1400 = vld [vmem:[#allocation5 + $0x1a0] sm:$0xff]
    %v1401 = vld [vmem:[#allocation5 + $0x1a8] sm:$0xff]
    %v1402 = vld [vmem:[#allocation5 + $0x1b0] sm:$0xff]
    %v1403 = vld [vmem:[#allocation5 + $0x1b8] sm:$0xff]
    %v1404 = vld [vmem:[#allocation5 + $0x1c0] sm:$0xff]
    %v1405 = vld [vmem:[#allocation5 + $0x1c8] sm:$0xff]
    %v1406 = vld [vmem:[#allocation5 + $0x1d0] sm:$0xff]
    %v1407 = vld [vmem:[#allocation5 + $0x1d8] sm:$0xff]
    %v1408 = vld [vmem:[#allocation5 + $0x1e0] sm:$0xff]
    %v1409 = vld [vmem:[#allocation5 + $0x1e8] sm:$0xff]
    %v1410 = vld [vmem:[#allocation5 + $0x1f0] sm:$0xff]
    %v1411 = vld [vmem:[#allocation5 + $0x1f8] sm:$0xff]
    %1412 = vmatprep.subr.mxu0 %v1409
    %1413 = vmatpush1.msra.mxu0 %v1408
    %1414 = vmatprep.subr.mxu0 %v1405
    %1415 = vmatpush1.msra.mxu0 %v1404
    %1416 = vmatprep.subr.mxu0 %v1401
    %1417 = vmatpush1.msra.mxu0 %v1400
    %1418 = vmatprep.subr.mxu0 %v1397
    %1419 = vmatpush1.msra.mxu0 %v1396
    %1420 = vmatprep.subr.mxu0 %v1393
    %1421 = vmatpush1.msra.mxu0 %v1392
    %1422 = vmatprep.subr.mxu0 %v1389
    %1423 = vmatpush1.msra.mxu0 %v1388
    %1424 = vmatprep.subr.mxu0 %v1385
    %1425 = vmatpush1.msra.mxu0 %v1384
    %1426 = vmatprep.subr.mxu0 %v1381
    %1427 = vmatpush1.msra.mxu0 %v1380
    %1428 = vmatprep.subr.mxu0 %v1377
    %1429 = vmatpush1.msra.mxu0 %v1376
    %1430 = vmatprep.subr.mxu0 %v1373
    %1431 = vmatpush1.msra.mxu0 %v1372
    %1432 = vmatprep.subr.mxu0 %v1369
    %1433 = vmatpush1.msra.mxu0 %v1368
    %1434 = vmatprep.subr.mxu0 %v1365
    %1435 = vmatpush1.msra.mxu0 %v1364
    %1436 = vmatprep.subr.mxu0 %v1361
    %1437 = vmatpush1.msra.mxu0 %v1360
    %1438 = vmatprep.subr.mxu0 %v1357
    %1439 = vmatpush1.msra.mxu0 %v1356
    %1440 = vmatprep.subr.mxu0 %v1353
    %1441 = vmatpush1.msra.mxu0 %v1352
    %1442 = vmatprep.subr.mxu0 %v1349
    %1443 = vmatpush1.msra.mxu0 %v1348
    %1444 = vmatprep.subr.mxu0 0.0
    %1445 = vmatpush2.msra.mxu0 0.0
    %1446 = vmatprep.subr.mxu0 0.0
    %1447 = vmatpush2.msra.mxu0 0.0
    %1448 = vmatprep.subr.mxu0 0.0
    %1449 = vmatpush2.msra.mxu0 0.0
    %1450 = vmatprep.subr.mxu0 0.0
    %1451 = vmatpush2.msra.mxu0 0.0
    %1452 = vmatprep.subr.mxu0 0.0
    %1453 = vmatpush2.msra.mxu0 0.0
    %1454 = vmatprep.subr.mxu0 0.0
    %1455 = vmatpush2.msra.mxu0 0.0
    %1456 = vmatprep.subr.mxu0 0.0
    %1457 = vmatpush2.msra.mxu0 0.0
    %1458 = vmatprep.subr.mxu0 0.0
    %1459 = vmatpush2.msra.mxu0 0.0
    %1460 = vmatprep.subr.mxu0 0.0
    %1461 = vmatpush2.msra.mxu0 0.0
    %1462 = vmatprep.subr.mxu0 0.0
    %1463 = vmatpush2.msra.mxu0 0.0
    %1464 = vmatprep.subr.mxu0 0.0
    %1465 = vmatpush2.msra.mxu0 0.0
    %1466 = vmatprep.subr.mxu0 0.0
    %1467 = vmatpush2.msra.mxu0 0.0
    %1468 = vmatprep.subr.mxu0 0.0
    %1469 = vmatpush2.msra.mxu0 0.0
    %1470 = vmatprep.subr.mxu0 0.0
    %1471 = vmatpush2.msra.mxu0 0.0
    %1472 = vmatprep.subr.mxu0 0.0
    %1473 = vmatpush2.msra.mxu0 0.0
    %1474 = vmatprep.subr.mxu0 0.0
    %1475 = vmatpush2.msra.mxu0 0.0
    %1476 = vmatprep.mubr.f32.mxu0 0.0
    %1477 = vmatmul.mubr.f32.gmra.mxu0 %v1347
    %v1478 = vpop.f32.mrf.mxu0
    %v1479 = vadd.f32 0.0, %v1478
    %v1480 = vpop.f32.mrf.mxu0
    %v1481 = vadd.f32 0.0, %v1480
    %1482 = vdwg.mxu0
    %1483 = vmatprep.subr.mxu0 %v1411
    %1484 = vmatpush1.msra.mxu0 %v1410
    %1485 = vmatprep.subr.mxu0 %v1407
    %1486 = vmatpush1.msra.mxu0 %v1406
    %1487 = vmatprep.subr.mxu0 %v1403
    %1488 = vmatpush1.msra.mxu0 %v1402
    %1489 = vmatprep.subr.mxu0 %v1399
    %1490 = vmatpush1.msra.mxu0 %v1398
    %1491 = vmatprep.subr.mxu0 %v1395
    %1492 = vmatpush1.msra.mxu0 %v1394
    %1493 = vmatprep.subr.mxu0 %v1391
    %1494 = vmatpush1.msra.mxu0 %v1390
    %1495 = vmatprep.subr.mxu0 %v1387
    %1496 = vmatpush1.msra.mxu0 %v1386
    %1497 = vmatprep.subr.mxu0 %v1383
    %1498 = vmatpush1.msra.mxu0 %v1382
    %1499 = vmatprep.subr.mxu0 %v1379
    %1500 = vmatpush1.msra.mxu0 %v1378
    %1501 = vmatprep.subr.mxu0 %v1375
    %1502 = vmatpush1.msra.mxu0 %v1374
    %1503 = vmatprep.subr.mxu0 %v1371
    %1504 = vmatpush1.msra.mxu0 %v1370
    %1505 = vmatprep.subr.mxu0 %v1367
    %1506 = vmatpush1.msra.mxu0 %v1366
    %1507 = vmatprep.subr.mxu0 %v1363
    %1508 = vmatpush1.msra.mxu0 %v1362
    %1509 = vmatprep.subr.mxu0 %v1359
    %1510 = vmatpush1.msra.mxu0 %v1358
    %1511 = vmatprep.subr.mxu0 %v1355
    %1512 = vmatpush1.msra.mxu0 %v1354
    %1513 = vmatprep.subr.mxu0 %v1351
    %1514 = vmatpush1.msra.mxu0 %v1350
    %1515 = vmatprep.subr.mxu0 0.0
    %1516 = vmatpush2.msra.mxu0 0.0
    %1517 = vmatprep.subr.mxu0 0.0
    %1518 = vmatpush2.msra.mxu0 0.0
    %1519 = vmatprep.subr.mxu0 0.0
    %1520 = vmatpush2.msra.mxu0 0.0
    %1521 = vmatprep.subr.mxu0 0.0
    %1522 = vmatpush2.msra.mxu0 0.0
    %1523 = vmatprep.subr.mxu0 0.0
    %1524 = vmatpush2.msra.mxu0 0.0
    %1525 = vmatprep.subr.mxu0 0.0
    %1526 = vmatpush2.msra.mxu0 0.0
    %1527 = vmatprep.subr.mxu0 0.0
    %1528 = vmatpush2.msra.mxu0 0.0
    %1529 = vmatprep.subr.mxu0 0.0
    %1530 = vmatpush2.msra.mxu0 0.0
    %1531 = vmatprep.subr.mxu0 0.0
    %1532 = vmatpush2.msra.mxu0 0.0
    %1533 = vmatprep.subr.mxu0 0.0
    %1534 = vmatpush2.msra.mxu0 0.0
    %1535 = vmatprep.subr.mxu0 0.0
    %1536 = vmatpush2.msra.mxu0 0.0
    %1537 = vmatprep.subr.mxu0 0.0
    %1538 = vmatpush2.msra.mxu0 0.0
    %1539 = vmatprep.subr.mxu0 0.0
    %1540 = vmatpush2.msra.mxu0 0.0
    %1541 = vmatprep.subr.mxu0 0.0
    %1542 = vmatpush2.msra.mxu0 0.0
    %1543 = vmatprep.subr.mxu0 0.0
    %1544 = vmatpush2.msra.mxu0 0.0
    %1545 = vmatprep.subr.mxu0 0.0
    %1546 = vmatpush2.msra.mxu0 0.0
    %1547 = vmatprep.mubr.f32.mxu0 0.0
    %1548 = vmatmul.mubr.f32.gmra.mxu0 %v1347
    %v1549 = vpop.f32.mrf.mxu0
    %v1550 = vadd.f32 0.0, %v1549
    %v1551 = vpop.f32.mrf.mxu0
    %v1552 = vadd.f32 0.0, %v1551
    %1553 = vdwg.mxu0
    %v1554 = vadd.f32 %v1343, %v1479
    %v1555 = vadd.f32 %v1344, %v1481
    %v1556 = vadd.f32 %v1345, %v1550
    %v1557 = vadd.f32 %v1346, %v1552
    %v1558 = vxor.u32 %v1554, 2147483648
    %v1559 = vmul.f32 %v1558, 1.442695
    %v1560 = vpow.pop %v1559
    %v1561 = vadd.f32 %v1560, 1.0
    %v1562 = vrcp.pop %v1561
    %v1563 = vmul.f32 1.0, %v1562
    %v1564 = vxor.u32 %v1555, 2147483648
    %v1565 = vmul.f32 %v1564, 1.442695
    %v1566 = vpow.pop %v1565
    %v1567 = vadd.f32 %v1566, 1.0
    %v1568 = vrcp.pop %v1567
    %v1569 = vmul.f32 1.0, %v1568
    %v1570 = vtanh.pop %v1556
    %v1571 = vxor.u32 %v1557, 2147483648
    %v1572 = vmul.f32 %v1571, 1.442695
    %v1573 = vpow.pop %v1572
    %v1574 = vadd.f32 %v1573, 1.0
    %v1575 = vrcp.pop %v1574
    %v1576 = vmul.f32 1.0, %v1575
    %v1577 = vld [vmem:[#allocation4] sm:$0xff]
    %v1578 = vmul.f32 %v1569, %v1577
    %v1579 = vmul.f32 %v1563, %v1570
    %v1580 = vadd.f32 %v1578, %v1579
    %v1581 = vtanh.pop %v1580
    %v1582 = vmul.f32 %v1576, %v1581
    %1583 = vst [vmem:[#allocation3] sm:$0xff] %v1582
    %1584 = vst [vmem:[#allocation4] sm:$0xff] %v1580
    %v1585 = vld [vmem:[#allocation2 + $0xa0] sm:$0xff]
    %v1586 = vld [vmem:[#allocation2 + $0xa8] sm:$0xff]
    %v1587 = vld [vmem:[#allocation2 + $0xb0] sm:$0xff]
    %v1588 = vld [vmem:[#allocation2 + $0xb8] sm:$0xff]
    %v1589 = vld [vmem:[#allocation3] sm:$0xff]
    %v1590 = vld [vmem:[#allocation5] sm:$0xff]
    %v1591 = vld [vmem:[#allocation5 + $0x8] sm:$0xff]
    %v1592 = vld [vmem:[#allocation5 + $0x10] sm:$0xff]
    %v1593 = vld [vmem:[#allocation5 + $0x18] sm:$0xff]
    %v1594 = vld [vmem:[#allocation5 + $0x20] sm:$0xff]
    %v1595 = vld [vmem:[#allocation5 + $0x28] sm:$0xff]
    %v1596 = vld [vmem:[#allocation5 + $0x30] sm:$0xff]
    %v1597 = vld [vmem:[#allocation5 + $0x38] sm:$0xff]
    %v1598 = vld [vmem:[#allocation5 + $0x40] sm:$0xff]
    %v1599 = vld [vmem:[#allocation5 + $0x48] sm:$0xff]
    %v1600 = vld [vmem:[#allocation5 + $0x50] sm:$0xff]
    %v1601 = vld [vmem:[#allocation5 + $0x58] sm:$0xff]
    %v1602 = vld [vmem:[#allocation5 + $0x60] sm:$0xff]
    %v1603 = vld [vmem:[#allocation5 + $0x68] sm:$0xff]
    %v1604 = vld [vmem:[#allocation5 + $0x70] sm:$0xff]
    %v1605 = vld [vmem:[#allocation5 + $0x78] sm:$0xff]
    %v1606 = vld [vmem:[#allocation5 + $0x80] sm:$0xff]
    %v1607 = vld [vmem:[#allocation5 + $0x88] sm:$0xff]
    %v1608 = vld [vmem:[#allocation5 + $0x90] sm:$0xff]
    %v1609 = vld [vmem:[#allocation5 + $0x98] sm:$0xff]
    %v1610 = vld [vmem:[#allocation5 + $0xa0] sm:$0xff]
    %v1611 = vld [vmem:[#allocation5 + $0xa8] sm:$0xff]
    %v1612 = vld [vmem:[#allocation5 + $0xb0] sm:$0xff]
    %v1613 = vld [vmem:[#allocation5 + $0xb8] sm:$0xff]
    %v1614 = vld [vmem:[#allocation5 + $0xc0] sm:$0xff]
    %v1615 = vld [vmem:[#allocation5 + $0xc8] sm:$0xff]
    %v1616 = vld [vmem:[#allocation5 + $0xd0] sm:$0xff]
    %v1617 = vld [vmem:[#allocation5 + $0xd8] sm:$0xff]
    %v1618 = vld [vmem:[#allocation5 + $0xe0] sm:$0xff]
    %v1619 = vld [vmem:[#allocation5 + $0xe8] sm:$0xff]
    %v1620 = vld [vmem:[#allocation5 + $0xf0] sm:$0xff]
    %v1621 = vld [vmem:[#allocation5 + $0xf8] sm:$0xff]
    %v1622 = vld [vmem:[#allocation5 + $0x100] sm:$0xff]
    %v1623 = vld [vmem:[#allocation5 + $0x108] sm:$0xff]
    %v1624 = vld [vmem:[#allocation5 + $0x110] sm:$0xff]
    %v1625 = vld [vmem:[#allocation5 + $0x118] sm:$0xff]
    %v1626 = vld [vmem:[#allocation5 + $0x120] sm:$0xff]
    %v1627 = vld [vmem:[#allocation5 + $0x128] sm:$0xff]
    %v1628 = vld [vmem:[#allocation5 + $0x130] sm:$0xff]
    %v1629 = vld [vmem:[#allocation5 + $0x138] sm:$0xff]
    %v1630 = vld [vmem:[#allocation5 + $0x140] sm:$0xff]
    %v1631 = vld [vmem:[#allocation5 + $0x148] sm:$0xff]
    %v1632 = vld [vmem:[#allocation5 + $0x150] sm:$0xff]
    %v1633 = vld [vmem:[#allocation5 + $0x158] sm:$0xff]
    %v1634 = vld [vmem:[#allocation5 + $0x160] sm:$0xff]
    %v1635 = vld [vmem:[#allocation5 + $0x168] sm:$0xff]
    %v1636 = vld [vmem:[#allocation5 + $0x170] sm:$0xff]
    %v1637 = vld [vmem:[#allocation5 + $0x178] sm:$0xff]
    %v1638 = vld [vmem:[#allocation5 + $0x180] sm:$0xff]
    %v1639 = vld [vmem:[#allocation5 + $0x188] sm:$0xff]
    %v1640 = vld [vmem:[#allocation5 + $0x190] sm:$0xff]
    %v1641 = vld [vmem:[#allocation5 + $0x198] sm:$0xff]
    %v1642 = vld [vmem:[#allocation5 + $0x1a0] sm:$0xff]
    %v1643 = vld [vmem:[#allocation5 + $0x1a8] sm:$0xff]
    %v1644 = vld [vmem:[#allocation5 + $0x1b0] sm:$0xff]
    %v1645 = vld [vmem:[#allocation5 + $0x1b8] sm:$0xff]
    %v1646 = vld [vmem:[#allocation5 + $0x1c0] sm:$0xff]
    %v1647 = vld [vmem:[#allocation5 + $0x1c8] sm:$0xff]
    %v1648 = vld [vmem:[#allocation5 + $0x1d0] sm:$0xff]
    %v1649 = vld [vmem:[#allocation5 + $0x1d8] sm:$0xff]
    %v1650 = vld [vmem:[#allocation5 + $0x1e0] sm:$0xff]
    %v1651 = vld [vmem:[#allocation5 + $0x1e8] sm:$0xff]
    %v1652 = vld [vmem:[#allocation5 + $0x1f0] sm:$0xff]
    %v1653 = vld [vmem:[#allocation5 + $0x1f8] sm:$0xff]
    %1654 = vmatprep.subr.mxu0 %v1651
    %1655 = vmatpush1.msra.mxu0 %v1650
    %1656 = vmatprep.subr.mxu0 %v1647
    %1657 = vmatpush1.msra.mxu0 %v1646
    %1658 = vmatprep.subr.mxu0 %v1643
    %1659 = vmatpush1.msra.mxu0 %v1642
    %1660 = vmatprep.subr.mxu0 %v1639
    %1661 = vmatpush1.msra.mxu0 %v1638
    %1662 = vmatprep.subr.mxu0 %v1635
    %1663 = vmatpush1.msra.mxu0 %v1634
    %1664 = vmatprep.subr.mxu0 %v1631
    %1665 = vmatpush1.msra.mxu0 %v1630
    %1666 = vmatprep.subr.mxu0 %v1627
    %1667 = vmatpush1.msra.mxu0 %v1626
    %1668 = vmatprep.subr.mxu0 %v1623
    %1669 = vmatpush1.msra.mxu0 %v1622
    %1670 = vmatprep.subr.mxu0 %v1619
    %1671 = vmatpush1.msra.mxu0 %v1618
    %1672 = vmatprep.subr.mxu0 %v1615
    %1673 = vmatpush1.msra.mxu0 %v1614
    %1674 = vmatprep.subr.mxu0 %v1611
    %1675 = vmatpush1.msra.mxu0 %v1610
    %1676 = vmatprep.subr.mxu0 %v1607
    %1677 = vmatpush1.msra.mxu0 %v1606
    %1678 = vmatprep.subr.mxu0 %v1603
    %1679 = vmatpush1.msra.mxu0 %v1602
    %1680 = vmatprep.subr.mxu0 %v1599
    %1681 = vmatpush1.msra.mxu0 %v1598
    %1682 = vmatprep.subr.mxu0 %v1595
    %1683 = vmatpush1.msra.mxu0 %v1594
    %1684 = vmatprep.subr.mxu0 %v1591
    %1685 = vmatpush1.msra.mxu0 %v1590
    %1686 = vmatprep.subr.mxu0 0.0
    %1687 = vmatpush2.msra.mxu0 0.0
    %1688 = vmatprep.subr.mxu0 0.0
    %1689 = vmatpush2.msra.mxu0 0.0
    %1690 = vmatprep.subr.mxu0 0.0
    %1691 = vmatpush2.msra.mxu0 0.0
    %1692 = vmatprep.subr.mxu0 0.0
    %1693 = vmatpush2.msra.mxu0 0.0
    %1694 = vmatprep.subr.mxu0 0.0
    %1695 = vmatpush2.msra.mxu0 0.0
    %1696 = vmatprep.subr.mxu0 0.0
    %1697 = vmatpush2.msra.mxu0 0.0
    %1698 = vmatprep.subr.mxu0 0.0
    %1699 = vmatpush2.msra.mxu0 0.0
    %1700 = vmatprep.subr.mxu0 0.0
    %1701 = vmatpush2.msra.mxu0 0.0
    %1702 = vmatprep.subr.mxu0 0.0
    %1703 = vmatpush2.msra.mxu0 0.0
    %1704 = vmatprep.subr.mxu0 0.0
    %1705 = vmatpush2.msra.mxu0 0.0
    %1706 = vmatprep.subr.mxu0 0.0
    %1707 = vmatpush2.msra.mxu0 0.0
    %1708 = vmatprep.subr.mxu0 0.0
    %1709 = vmatpush2.msra.mxu0 0.0
    %1710 = vmatprep.subr.mxu0 0.0
    %1711 = vmatpush2.msra.mxu0 0.0
    %1712 = vmatprep.subr.mxu0 0.0
    %1713 = vmatpush2.msra.mxu0 0.0
    %1714 = vmatprep.subr.mxu0 0.0
    %1715 = vmatpush2.msra.mxu0 0.0
    %1716 = vmatprep.subr.mxu0 0.0
    %1717 = vmatpush2.msra.mxu0 0.0
    %1718 = vmatprep.mubr.f32.mxu0 0.0
    %1719 = vmatmul.mubr.f32.gmra.mxu0 %v1589
    %v1720 = vpop.f32.mrf.mxu0
    %v1721 = vadd.f32 0.0, %v1720
    %v1722 = vpop.f32.mrf.mxu0
    %v1723 = vadd.f32 0.0, %v1722
    %1724 = vdwg.mxu0
    %1725 = vmatprep.subr.mxu0 %v1653
    %1726 = vmatpush1.msra.mxu0 %v1652
    %1727 = vmatprep.subr.mxu0 %v1649
    %1728 = vmatpush1.msra.mxu0 %v1648
    %1729 = vmatprep.subr.mxu0 %v1645
    %1730 = vmatpush1.msra.mxu0 %v1644
    %1731 = vmatprep.subr.mxu0 %v1641
    %1732 = vmatpush1.msra.mxu0 %v1640
    %1733 = vmatprep.subr.mxu0 %v1637
    %1734 = vmatpush1.msra.mxu0 %v1636
    %1735 = vmatprep.subr.mxu0 %v1633
    %1736 = vmatpush1.msra.mxu0 %v1632
    %1737 = vmatprep.subr.mxu0 %v1629
    %1738 = vmatpush1.msra.mxu0 %v1628
    %1739 = vmatprep.subr.mxu0 %v1625
    %1740 = vmatpush1.msra.mxu0 %v1624
    %1741 = vmatprep.subr.mxu0 %v1621
    %1742 = vmatpush1.msra.mxu0 %v1620
    %1743 = vmatprep.subr.mxu0 %v1617
    %1744 = vmatpush1.msra.mxu0 %v1616
    %1745 = vmatprep.subr.mxu0 %v1613
    %1746 = vmatpush1.msra.mxu0 %v1612
    %1747 = vmatprep.subr.mxu0 %v1609
    %1748 = vmatpush1.msra.mxu0 %v1608
    %1749 = vmatprep.subr.mxu0 %v1605
    %1750 = vmatpush1.msra.mxu0 %v1604
    %1751 = vmatprep.subr.mxu0 %v1601
    %1752 = vmatpush1.msra.mxu0 %v1600
    %1753 = vmatprep.subr.mxu0 %v1597
    %1754 = vmatpush1.msra.mxu0 %v1596
    %1755 = vmatprep.subr.mxu0 %v1593
    %1756 = vmatpush1.msra.mxu0 %v1592
    %1757 = vmatprep.subr.mxu0 0.0
    %1758 = vmatpush2.msra.mxu0 0.0
    %1759 = vmatprep.subr.mxu0 0.0
    %1760 = vmatpush2.msra.mxu0 0.0
    %1761 = vmatprep.subr.mxu0 0.0
    %1762 = vmatpush2.msra.mxu0 0.0
    %1763 = vmatprep.subr.mxu0 0.0
    %1764 = vmatpush2.msra.mxu0 0.0
    %1765 = vmatprep.subr.mxu0 0.0
    %1766 = vmatpush2.msra.mxu0 0.0
    %1767 = vmatprep.subr.mxu0 0.0
    %1768 = vmatpush2.msra.mxu0 0.0
    %1769 = vmatprep.subr.mxu0 0.0
    %1770 = vmatpush2.msra.mxu0 0.0
    %1771 = vmatprep.subr.mxu0 0.0
    %1772 = vmatpush2.msra.mxu0 0.0
    %1773 = vmatprep.subr.mxu0 0.0
    %1774 = vmatpush2.msra.mxu0 0.0
    %1775 = vmatprep.subr.mxu0 0.0
    %1776 = vmatpush2.msra.mxu0 0.0
    %1777 = vmatprep.subr.mxu0 0.0
    %1778 = vmatpush2.msra.mxu0 0.0
    %1779 = vmatprep.subr.mxu0 0.0
    %1780 = vmatpush2.msra.mxu0 0.0
    %1781 = vmatprep.subr.mxu0 0.0
    %1782 = vmatpush2.msra.mxu0 0.0
    %1783 = vmatprep.subr.mxu0 0.0
    %1784 = vmatpush2.msra.mxu0 0.0
    %1785 = vmatprep.subr.mxu0 0.0
    %1786 = vmatpush2.msra.mxu0 0.0
    %1787 = vmatprep.subr.mxu0 0.0
    %1788 = vmatpush2.msra.mxu0 0.0
    %1789 = vmatprep.mubr.f32.mxu0 0.0
    %1790 = vmatmul.mubr.f32.gmra.mxu0 %v1589
    %v1791 = vpop.f32.mrf.mxu0
    %v1792 = vadd.f32 0.0, %v1791
    %v1793 = vpop.f32.mrf.mxu0
    %v1794 = vadd.f32 0.0, %v1793
    %1795 = vdwg.mxu0
    %v1796 = vadd.f32 %v1585, %v1721
    %v1797 = vadd.f32 %v1586, %v1723
    %v1798 = vadd.f32 %v1587, %v1792
    %v1799 = vadd.f32 %v1588, %v1794
    %v1800 = vxor.u32 %v1796, 2147483648
    %v1801 = vmul.f32 %v1800, 1.442695
    %v1802 = vpow.pop %v1801
    %v1803 = vadd.f32 %v1802, 1.0
    %v1804 = vrcp.pop %v1803
    %v1805 = vmul.f32 1.0, %v1804
    %v1806 = vxor.u32 %v1797, 2147483648
    %v1807 = vmul.f32 %v1806, 1.442695
    %v1808 = vpow.pop %v1807
    %v1809 = vadd.f32 %v1808, 1.0
    %v1810 = vrcp.pop %v1809
    %v1811 = vmul.f32 1.0, %v1810
    %v1812 = vtanh.pop %v1798
    %v1813 = vxor.u32 %v1799, 2147483648
    %v1814 = vmul.f32 %v1813, 1.442695
    %v1815 = vpow.pop %v1814
    %v1816 = vadd.f32 %v1815, 1.0
    %v1817 = vrcp.pop %v1816
    %v1818 = vmul.f32 1.0, %v1817
    %v1819 = vld [vmem:[#allocation4] sm:$0xff]
    %v1820 = vmul.f32 %v1811, %v1819
    %v1821 = vmul.f32 %v1805, %v1812
    %v1822 = vadd.f32 %v1820, %v1821
    %v1823 = vtanh.pop %v1822
    %v1824 = vmul.f32 %v1818, %v1823
    %1825 = vst [vmem:[#allocation3] sm:$0xff] %v1824
    %1826 = vst [vmem:[#allocation4] sm:$0xff] %v1822
    %v1827 = vld [vmem:[#allocation2 + $0xc0] sm:$0xff]
    %v1828 = vld [vmem:[#allocation2 + $0xc8] sm:$0xff]
    %v1829 = vld [vmem:[#allocation2 + $0xd0] sm:$0xff]
    %v1830 = vld [vmem:[#allocation2 + $0xd8] sm:$0xff]
    %v1831 = vld [vmem:[#allocation3] sm:$0xff]
    %v1832 = vld [vmem:[#allocation5] sm:$0xff]
    %v1833 = vld [vmem:[#allocation5 + $0x8] sm:$0xff]
    %v1834 = vld [vmem:[#allocation5 + $0x10] sm:$0xff]
    %v1835 = vld [vmem:[#allocation5 + $0x18] sm:$0xff]
    %v1836 = vld [vmem:[#allocation5 + $0x20] sm:$0xff]
    %v1837 = vld [vmem:[#allocation5 + $0x28] sm:$0xff]
    %v1838 = vld [vmem:[#allocation5 + $0x30] sm:$0xff]
    %v1839 = vld [vmem:[#allocation5 + $0x38] sm:$0xff]
    %v1840 = vld [vmem:[#allocation5 + $0x40] sm:$0xff]
    %v1841 = vld [vmem:[#allocation5 + $0x48] sm:$0xff]
    %v1842 = vld [vmem:[#allocation5 + $0x50] sm:$0xff]
    %v1843 = vld [vmem:[#allocation5 + $0x58] sm:$0xff]
    %v1844 = vld [vmem:[#allocation5 + $0x60] sm:$0xff]
    %v1845 = vld [vmem:[#allocation5 + $0x68] sm:$0xff]
    %v1846 = vld [vmem:[#allocation5 + $0x70] sm:$0xff]
    %v1847 = vld [vmem:[#allocation5 + $0x78] sm:$0xff]
    %v1848 = vld [vmem:[#allocation5 + $0x80] sm:$0xff]
    %v1849 = vld [vmem:[#allocation5 + $0x88] sm:$0xff]
    %v1850 = vld [vmem:[#allocation5 + $0x90] sm:$0xff]
    %v1851 = vld [vmem:[#allocation5 + $0x98] sm:$0xff]
    %v1852 = vld [vmem:[#allocation5 + $0xa0] sm:$0xff]
    %v1853 = vld [vmem:[#allocation5 + $0xa8] sm:$0xff]
    %v1854 = vld [vmem:[#allocation5 + $0xb0] sm:$0xff]
    %v1855 = vld [vmem:[#allocation5 + $0xb8] sm:$0xff]
    %v1856 = vld [vmem:[#allocation5 + $0xc0] sm:$0xff]
    %v1857 = vld [vmem:[#allocation5 + $0xc8] sm:$0xff]
    %v1858 = vld [vmem:[#allocation5 + $0xd0] sm:$0xff]
    %v1859 = vld [vmem:[#allocation5 + $0xd8] sm:$0xff]
    %v1860 = vld [vmem:[#allocation5 + $0xe0] sm:$0xff]
    %v1861 = vld [vmem:[#allocation5 + $0xe8] sm:$0xff]
    %v1862 = vld [vmem:[#allocation5 + $0xf0] sm:$0xff]
    %v1863 = vld [vmem:[#allocation5 + $0xf8] sm:$0xff]
    %v1864 = vld [vmem:[#allocation5 + $0x100] sm:$0xff]
    %v1865 = vld [vmem:[#allocation5 + $0x108] sm:$0xff]
    %v1866 = vld [vmem:[#allocation5 + $0x110] sm:$0xff]
    %v1867 = vld [vmem:[#allocation5 + $0x118] sm:$0xff]
    %v1868 = vld [vmem:[#allocation5 + $0x120] sm:$0xff]
    %v1869 = vld [vmem:[#allocation5 + $0x128] sm:$0xff]
    %v1870 = vld [vmem:[#allocation5 + $0x130] sm:$0xff]
    %v1871 = vld [vmem:[#allocation5 + $0x138] sm:$0xff]
    %v1872 = vld [vmem:[#allocation5 + $0x140] sm:$0xff]
    %v1873 = vld [vmem:[#allocation5 + $0x148] sm:$0xff]
    %v1874 = vld [vmem:[#allocation5 + $0x150] sm:$0xff]
    %v1875 = vld [vmem:[#allocation5 + $0x158] sm:$0xff]
    %v1876 = vld [vmem:[#allocation5 + $0x160] sm:$0xff]
    %v1877 = vld [vmem:[#allocation5 + $0x168] sm:$0xff]
    %v1878 = vld [vmem:[#allocation5 + $0x170] sm:$0xff]
    %v1879 = vld [vmem:[#allocation5 + $0x178] sm:$0xff]
    %v1880 = vld [vmem:[#allocation5 + $0x180] sm:$0xff]
    %v1881 = vld [vmem:[#allocation5 + $0x188] sm:$0xff]
    %v1882 = vld [vmem:[#allocation5 + $0x190] sm:$0xff]
    %v1883 = vld [vmem:[#allocation5 + $0x198] sm:$0xff]
    %v1884 = vld [vmem:[#allocation5 + $0x1a0] sm:$0xff]
    %v1885 = vld [vmem:[#allocation5 + $0x1a8] sm:$0xff]
    %v1886 = vld [vmem:[#allocation5 + $0x1b0] sm:$0xff]
    %v1887 = vld [vmem:[#allocation5 + $0x1b8] sm:$0xff]
    %v1888 = vld [vmem:[#allocation5 + $0x1c0] sm:$0xff]
    %v1889 = vld [vmem:[#allocation5 + $0x1c8] sm:$0xff]
    %v1890 = vld [vmem:[#allocation5 + $0x1d0] sm:$0xff]
    %v1891 = vld [vmem:[#allocation5 + $0x1d8] sm:$0xff]
    %v1892 = vld [vmem:[#allocation5 + $0x1e0] sm:$0xff]
    %v1893 = vld [vmem:[#allocation5 + $0x1e8] sm:$0xff]
    %v1894 = vld [vmem:[#allocation5 + $0x1f0] sm:$0xff]
    %v1895 = vld [vmem:[#allocation5 + $0x1f8] sm:$0xff]
    %1896 = vmatprep.subr.mxu0 %v1893
    %1897 = vmatpush1.msra.mxu0 %v1892
    %1898 = vmatprep.subr.mxu0 %v1889
    %1899 = vmatpush1.msra.mxu0 %v1888
    %1900 = vmatprep.subr.mxu0 %v1885
    %1901 = vmatpush1.msra.mxu0 %v1884
    %1902 = vmatprep.subr.mxu0 %v1881
    %1903 = vmatpush1.msra.mxu0 %v1880
    %1904 = vmatprep.subr.mxu0 %v1877
    %1905 = vmatpush1.msra.mxu0 %v1876
    %1906 = vmatprep.subr.mxu0 %v1873
    %1907 = vmatpush1.msra.mxu0 %v1872
    %1908 = vmatprep.subr.mxu0 %v1869
    %1909 = vmatpush1.msra.mxu0 %v1868
    %1910 = vmatprep.subr.mxu0 %v1865
    %1911 = vmatpush1.msra.mxu0 %v1864
    %1912 = vmatprep.subr.mxu0 %v1861
    %1913 = vmatpush1.msra.mxu0 %v1860
    %1914 = vmatprep.subr.mxu0 %v1857
    %1915 = vmatpush1.msra.mxu0 %v1856
    %1916 = vmatprep.subr.mxu0 %v1853
    %1917 = vmatpush1.msra.mxu0 %v1852
    %1918 = vmatprep.subr.mxu0 %v1849
    %1919 = vmatpush1.msra.mxu0 %v1848
    %1920 = vmatprep.subr.mxu0 %v1845
    %1921 = vmatpush1.msra.mxu0 %v1844
    %1922 = vmatprep.subr.mxu0 %v1841
    %1923 = vmatpush1.msra.mxu0 %v1840
    %1924 = vmatprep.subr.mxu0 %v1837
    %1925 = vmatpush1.msra.mxu0 %v1836
    %1926 = vmatprep.subr.mxu0 %v1833
    %1927 = vmatpush1.msra.mxu0 %v1832
    %1928 = vmatprep.subr.mxu0 0.0
    %1929 = vmatpush2.msra.mxu0 0.0
    %1930 = vmatprep.subr.mxu0 0.0
    %1931 = vmatpush2.msra.mxu0 0.0
    %1932 = vmatprep.subr.mxu0 0.0
    %1933 = vmatpush2.msra.mxu0 0.0
    %1934 = vmatprep.subr.mxu0 0.0
    %1935 = vmatpush2.msra.mxu0 0.0
    %1936 = vmatprep.subr.mxu0 0.0
    %1937 = vmatpush2.msra.mxu0 0.0
    %1938 = vmatprep.subr.mxu0 0.0
    %1939 = vmatpush2.msra.mxu0 0.0
    %1940 = vmatprep.subr.mxu0 0.0
    %1941 = vmatpush2.msra.mxu0 0.0
    %1942 = vmatprep.subr.mxu0 0.0
    %1943 = vmatpush2.msra.mxu0 0.0
    %1944 = vmatprep.subr.mxu0 0.0
    %1945 = vmatpush2.msra.mxu0 0.0
    %1946 = vmatprep.subr.mxu0 0.0
    %1947 = vmatpush2.msra.mxu0 0.0
    %1948 = vmatprep.subr.mxu0 0.0
    %1949 = vmatpush2.msra.mxu0 0.0
    %1950 = vmatprep.subr.mxu0 0.0
    %1951 = vmatpush2.msra.mxu0 0.0
    %1952 = vmatprep.subr.mxu0 0.0
    %1953 = vmatpush2.msra.mxu0 0.0
    %1954 = vmatprep.subr.mxu0 0.0
    %1955 = vmatpush2.msra.mxu0 0.0
    %1956 = vmatprep.subr.mxu0 0.0
    %1957 = vmatpush2.msra.mxu0 0.0
    %1958 = vmatprep.subr.mxu0 0.0
    %1959 = vmatpush2.msra.mxu0 0.0
    %1960 = vmatprep.mubr.f32.mxu0 0.0
    %1961 = vmatmul.mubr.f32.gmra.mxu0 %v1831
    %v1962 = vpop.f32.mrf.mxu0
    %v1963 = vadd.f32 0.0, %v1962
    %v1964 = vpop.f32.mrf.mxu0
    %v1965 = vadd.f32 0.0, %v1964
    %1966 = vdwg.mxu0
    %1967 = vmatprep.subr.mxu0 %v1895
    %1968 = vmatpush1.msra.mxu0 %v1894
    %1969 = vmatprep.subr.mxu0 %v1891
    %1970 = vmatpush1.msra.mxu0 %v1890
    %1971 = vmatprep.subr.mxu0 %v1887
    %1972 = vmatpush1.msra.mxu0 %v1886
    %1973 = vmatprep.subr.mxu0 %v1883
    %1974 = vmatpush1.msra.mxu0 %v1882
    %1975 = vmatprep.subr.mxu0 %v1879
    %1976 = vmatpush1.msra.mxu0 %v1878
    %1977 = vmatprep.subr.mxu0 %v1875
    %1978 = vmatpush1.msra.mxu0 %v1874
    %1979 = vmatprep.subr.mxu0 %v1871
    %1980 = vmatpush1.msra.mxu0 %v1870
    %1981 = vmatprep.subr.mxu0 %v1867
    %1982 = vmatpush1.msra.mxu0 %v1866
    %1983 = vmatprep.subr.mxu0 %v1863
    %1984 = vmatpush1.msra.mxu0 %v1862
    %1985 = vmatprep.subr.mxu0 %v1859
    %1986 = vmatpush1.msra.mxu0 %v1858
    %1987 = vmatprep.subr.mxu0 %v1855
    %1988 = vmatpush1.msra.mxu0 %v1854
    %1989 = vmatprep.subr.mxu0 %v1851
    %1990 = vmatpush1.msra.mxu0 %v1850
    %1991 = vmatprep.subr.mxu0 %v1847
    %1992 = vmatpush1.msra.mxu0 %v1846
    %1993 = vmatprep.subr.mxu0 %v1843
    %1994 = vmatpush1.msra.mxu0 %v1842
    %1995 = vmatprep.subr.mxu0 %v1839
    %1996 = vmatpush1.msra.mxu0 %v1838
    %1997 = vmatprep.subr.mxu0 %v1835
    %1998 = vmatpush1.msra.mxu0 %v1834
    %1999 = vmatprep.subr.mxu0 0.0
    %2000 = vmatpush2.msra.mxu0 0.0
    %2001 = vmatprep.subr.mxu0 0.0
    %2002 = vmatpush2.msra.mxu0 0.0
    %2003 = vmatprep.subr.mxu0 0.0
    %2004 = vmatpush2.msra.mxu0 0.0
    %2005 = vmatprep.subr.mxu0 0.0
    %2006 = vmatpush2.msra.mxu0 0.0
    %2007 = vmatprep.subr.mxu0 0.0
    %2008 = vmatpush2.msra.mxu0 0.0
    %2009 = vmatprep.subr.mxu0 0.0
    %2010 = vmatpush2.msra.mxu0 0.0
    %2011 = vmatprep.subr.mxu0 0.0
    %2012 = vmatpush2.msra.mxu0 0.0
    %2013 = vmatprep.subr.mxu0 0.0
    %2014 = vmatpush2.msra.mxu0 0.0
    %2015 = vmatprep.subr.mxu0 0.0
    %2016 = vmatpush2.msra.mxu0 0.0
    %2017 = vmatprep.subr.mxu0 0.0
    %2018 = vmatpush2.msra.mxu0 0.0
    %2019 = vmatprep.subr.mxu0 0.0
    %2020 = vmatpush2.msra.mxu0 0.0
    %2021 = vmatprep.subr.mxu0 0.0
    %2022 = vmatpush2.msra.mxu0 0.0
    %2023 = vmatprep.subr.mxu0 0.0
    %2024 = vmatpush2.msra.mxu0 0.0
    %2025 = vmatprep.subr.mxu0 0.0
    %2026 = vmatpush2.msra.mxu0 0.0
    %2027 = vmatprep.subr.mxu0 0.0
    %2028 = vmatpush2.msra.mxu0 0.0
    %2029 = vmatprep.subr.mxu0 0.0
    %2030 = vmatpush2.msra.mxu0 0.0
    %2031 = vmatprep.mubr.f32.mxu0 0.0
    %2032 = vmatmul.mubr.f32.gmra.mxu0 %v1831
    %v2033 = vpop.f32.mrf.mxu0
    %v2034 = vadd.f32 0.0, %v2033
    %v2035 = vpop.f32.mrf.mxu0
    %v2036 = vadd.f32 0.0, %v2035
    %2037 = vdwg.mxu0
    %v2038 = vadd.f32 %v1827, %v1963
    %v2039 = vadd.f32 %v1828, %v1965
    %v2040 = vadd.f32 %v1829, %v2034
    %v2041 = vadd.f32 %v1830, %v2036
    %v2042 = vxor.u32 %v2038, 2147483648
    %v2043 = vmul.f32 %v2042, 1.442695
    %v2044 = vpow.pop %v2043
    %v2045 = vadd.f32 %v2044, 1.0
    %v2046 = vrcp.pop %v2045
    %v2047 = vmul.f32 1.0, %v2046
    %v2048 = vxor.u32 %v2039, 2147483648
    %v2049 = vmul.f32 %v2048, 1.442695
    %v2050 = vpow.pop %v2049
    %v2051 = vadd.f32 %v2050, 1.0
    %v2052 = vrcp.pop %v2051
    %v2053 = vmul.f32 1.0, %v2052
    %v2054 = vtanh.pop %v2040
    %v2055 = vxor.u32 %v2041, 2147483648
    %v2056 = vmul.f32 %v2055, 1.442695
    %v2057 = vpow.pop %v2056
    %v2058 = vadd.f32 %v2057, 1.0
    %v2059 = vrcp.pop %v2058
    %v2060 = vmul.f32 1.0, %v2059
    %v2061 = vld [vmem:[#allocation4] sm:$0xff]
    %v2062 = vmul.f32 %v2053, %v2061
    %v2063 = vmul.f32 %v2047, %v2054
    %v2064 = vadd.f32 %v2062, %v2063
    %v2065 = vtanh.pop %v2064
    %v2066 = vmul.f32 %v2060, %v2065
    %2067 = vst [vmem:[#allocation3] sm:$0xff] %v2066
    %2068 = vst [vmem:[#allocation4] sm:$0xff] %v2064
    %v2069 = vld [vmem:[#allocation2 + $0xe0] sm:$0xff]
    %v2070 = vld [vmem:[#allocation2 + $0xe8] sm:$0xff]
    %v2071 = vld [vmem:[#allocation2 + $0xf0] sm:$0xff]
    %v2072 = vld [vmem:[#allocation2 + $0xf8] sm:$0xff]
    %v2073 = vld [vmem:[#allocation3] sm:$0xff]
    %v2074 = vld [vmem:[#allocation5] sm:$0xff]
    %v2075 = vld [vmem:[#allocation5 + $0x8] sm:$0xff]
    %v2076 = vld [vmem:[#allocation5 + $0x10] sm:$0xff]
    %v2077 = vld [vmem:[#allocation5 + $0x18] sm:$0xff]
    %v2078 = vld [vmem:[#allocation5 + $0x20] sm:$0xff]
    %v2079 = vld [vmem:[#allocation5 + $0x28] sm:$0xff]
    %v2080 = vld [vmem:[#allocation5 + $0x30] sm:$0xff]
    %v2081 = vld [vmem:[#allocation5 + $0x38] sm:$0xff]
    %v2082 = vld [vmem:[#allocation5 + $0x40] sm:$0xff]
    %v2083 = vld [vmem:[#allocation5 + $0x48] sm:$0xff]
    %v2084 = vld [vmem:[#allocation5 + $0x50] sm:$0xff]
    %v2085 = vld [vmem:[#allocation5 + $0x58] sm:$0xff]
    %v2086 = vld [vmem:[#allocation5 + $0x60] sm:$0xff]
    %v2087 = vld [vmem:[#allocation5 + $0x68] sm:$0xff]
    %v2088 = vld [vmem:[#allocation5 + $0x70] sm:$0xff]
    %v2089 = vld [vmem:[#allocation5 + $0x78] sm:$0xff]
    %v2090 = vld [vmem:[#allocation5 + $0x80] sm:$0xff]
    %v2091 = vld [vmem:[#allocation5 + $0x88] sm:$0xff]
    %v2092 = vld [vmem:[#allocation5 + $0x90] sm:$0xff]
    %v2093 = vld [vmem:[#allocation5 + $0x98] sm:$0xff]
    %v2094 = vld [vmem:[#allocation5 + $0xa0] sm:$0xff]
    %v2095 = vld [vmem:[#allocation5 + $0xa8] sm:$0xff]
    %v2096 = vld [vmem:[#allocation5 + $0xb0] sm:$0xff]
    %v2097 = vld [vmem:[#allocation5 + $0xb8] sm:$0xff]
    %v2098 = vld [vmem:[#allocation5 + $0xc0] sm:$0xff]
    %v2099 = vld [vmem:[#allocation5 + $0xc8] sm:$0xff]
    %v2100 = vld [vmem:[#allocation5 + $0xd0] sm:$0xff]
    %v2101 = vld [vmem:[#allocation5 + $0xd8] sm:$0xff]
    %v2102 = vld [vmem:[#allocation5 + $0xe0] sm:$0xff]
    %v2103 = vld [vmem:[#allocation5 + $0xe8] sm:$0xff]
    %v2104 = vld [vmem:[#allocation5 + $0xf0] sm:$0xff]
    %v2105 = vld [vmem:[#allocation5 + $0xf8] sm:$0xff]
    %v2106 = vld [vmem:[#allocation5 + $0x100] sm:$0xff]
    %v2107 = vld [vmem:[#allocation5 + $0x108] sm:$0xff]
    %v2108 = vld [vmem:[#allocation5 + $0x110] sm:$0xff]
    %v2109 = vld [vmem:[#allocation5 + $0x118] sm:$0xff]
    %v2110 = vld [vmem:[#allocation5 + $0x120] sm:$0xff]
    %v2111 = vld [vmem:[#allocation5 + $0x128] sm:$0xff]
    %v2112 = vld [vmem:[#allocation5 + $0x130] sm:$0xff]
    %v2113 = vld [vmem:[#allocation5 + $0x138] sm:$0xff]
    %v2114 = vld [vmem:[#allocation5 + $0x140] sm:$0xff]
    %v2115 = vld [vmem:[#allocation5 + $0x148] sm:$0xff]
    %v2116 = vld [vmem:[#allocation5 + $0x150] sm:$0xff]
    %v2117 = vld [vmem:[#allocation5 + $0x158] sm:$0xff]
    %v2118 = vld [vmem:[#allocation5 + $0x160] sm:$0xff]
    %v2119 = vld [vmem:[#allocation5 + $0x168] sm:$0xff]
    %v2120 = vld [vmem:[#allocation5 + $0x170] sm:$0xff]
    %v2121 = vld [vmem:[#allocation5 + $0x178] sm:$0xff]
    %v2122 = vld [vmem:[#allocation5 + $0x180] sm:$0xff]
    %v2123 = vld [vmem:[#allocation5 + $0x188] sm:$0xff]
    %v2124 = vld [vmem:[#allocation5 + $0x190] sm:$0xff]
    %v2125 = vld [vmem:[#allocation5 + $0x198] sm:$0xff]
    %v2126 = vld [vmem:[#allocation5 + $0x1a0] sm:$0xff]
    %v2127 = vld [vmem:[#allocation5 + $0x1a8] sm:$0xff]
    %v2128 = vld [vmem:[#allocation5 + $0x1b0] sm:$0xff]
    %v2129 = vld [vmem:[#allocation5 + $0x1b8] sm:$0xff]
    %v2130 = vld [vmem:[#allocation5 + $0x1c0] sm:$0xff]
    %v2131 = vld [vmem:[#allocation5 + $0x1c8] sm:$0xff]
    %v2132 = vld [vmem:[#allocation5 + $0x1d0] sm:$0xff]
    %v2133 = vld [vmem:[#allocation5 + $0x1d8] sm:$0xff]
    %v2134 = vld [vmem:[#allocation5 + $0x1e0] sm:$0xff]
    %v2135 = vld [vmem:[#allocation5 + $0x1e8] sm:$0xff]
    %v2136 = vld [vmem:[#allocation5 + $0x1f0] sm:$0xff]
    %v2137 = vld [vmem:[#allocation5 + $0x1f8] sm:$0xff]
    %2138 = vmatprep.subr.mxu0 %v2135
    %2139 = vmatpush1.msra.mxu0 %v2134
    %2140 = vmatprep.subr.mxu0 %v2131
    %2141 = vmatpush1.msra.mxu0 %v2130
    %2142 = vmatprep.subr.mxu0 %v2127
    %2143 = vmatpush1.msra.mxu0 %v2126
    %2144 = vmatprep.subr.mxu0 %v2123
    %2145 = vmatpush1.msra.mxu0 %v2122
    %2146 = vmatprep.subr.mxu0 %v2119
    %2147 = vmatpush1.msra.mxu0 %v2118
    %2148 = vmatprep.subr.mxu0 %v2115
    %2149 = vmatpush1.msra.mxu0 %v2114
    %2150 = vmatprep.subr.mxu0 %v2111
    %2151 = vmatpush1.msra.mxu0 %v2110
    %2152 = vmatprep.subr.mxu0 %v2107
    %2153 = vmatpush1.msra.mxu0 %v2106
    %2154 = vmatprep.subr.mxu0 %v2103
    %2155 = vmatpush1.msra.mxu0 %v2102
    %2156 = vmatprep.subr.mxu0 %v2099
    %2157 = vmatpush1.msra.mxu0 %v2098
    %2158 = vmatprep.subr.mxu0 %v2095
    %2159 = vmatpush1.msra.mxu0 %v2094
    %2160 = vmatprep.subr.mxu0 %v2091
    %2161 = vmatpush1.msra.mxu0 %v2090
    %2162 = vmatprep.subr.mxu0 %v2087
    %2163 = vmatpush1.msra.mxu0 %v2086
    %2164 = vmatprep.subr.mxu0 %v2083
    %2165 = vmatpush1.msra.mxu0 %v2082
    %2166 = vmatprep.subr.mxu0 %v2079
    %2167 = vmatpush1.msra.mxu0 %v2078
    %2168 = vmatprep.subr.mxu0 %v2075
    %2169 = vmatpush1.msra.mxu0 %v2074
    %2170 = vmatprep.subr.mxu0 0.0
    %2171 = vmatpush2.msra.mxu0 0.0
    %2172 = vmatprep.subr.mxu0 0.0
    %2173 = vmatpush2.msra.mxu0 0.0
    %2174 = vmatprep.subr.mxu0 0.0
    %2175 = vmatpush2.msra.mxu0 0.0
    %2176 = vmatprep.subr.mxu0 0.0
    %2177 = vmatpush2.msra.mxu0 0.0
    %2178 = vmatprep.subr.mxu0 0.0
    %2179 = vmatpush2.msra.mxu0 0.0
    %2180 = vmatprep.subr.mxu0 0.0
    %2181 = vmatpush2.msra.mxu0 0.0
    %2182 = vmatprep.subr.mxu0 0.0
    %2183 = vmatpush2.msra.mxu0 0.0
    %2184 = vmatprep.subr.mxu0 0.0
    %2185 = vmatpush2.msra.mxu0 0.0
    %2186 = vmatprep.subr.mxu0 0.0
    %2187 = vmatpush2.msra.mxu0 0.0
    %2188 = vmatprep.subr.mxu0 0.0
    %2189 = vmatpush2.msra.mxu0 0.0
    %2190 = vmatprep.subr.mxu0 0.0
    %2191 = vmatpush2.msra.mxu0 0.0
    %2192 = vmatprep.subr.mxu0 0.0
    %2193 = vmatpush2.msra.mxu0 0.0
    %2194 = vmatprep.subr.mxu0 0.0
    %2195 = vmatpush2.msra.mxu0 0.0
    %2196 = vmatprep.subr.mxu0 0.0
    %2197 = vmatpush2.msra.mxu0 0.0
    %2198 = vmatprep.subr.mxu0 0.0
    %2199 = vmatpush2.msra.mxu0 0.0
    %2200 = vmatprep.subr.mxu0 0.0
    %2201 = vmatpush2.msra.mxu0 0.0
    %2202 = vmatprep.mubr.f32.mxu0 0.0
    %2203 = vmatmul.mubr.f32.gmra.mxu0 %v2073
    %v2204 = vpop.f32.mrf.mxu0
    %v2205 = vadd.f32 0.0, %v2204
    %v2206 = vpop.f32.mrf.mxu0
    %v2207 = vadd.f32 0.0, %v2206
    %2208 = vdwg.mxu0
    %2209 = vmatprep.subr.mxu0 %v2137
    %2210 = vmatpush1.msra.mxu0 %v2136
    %2211 = vmatprep.subr.mxu0 %v2133
    %2212 = vmatpush1.msra.mxu0 %v2132
    %2213 = vmatprep.subr.mxu0 %v2129
    %2214 = vmatpush1.msra.mxu0 %v2128
    %2215 = vmatprep.subr.mxu0 %v2125
    %2216 = vmatpush1.msra.mxu0 %v2124
    %2217 = vmatprep.subr.mxu0 %v2121
    %2218 = vmatpush1.msra.mxu0 %v2120
    %2219 = vmatprep.subr.mxu0 %v2117
    %2220 = vmatpush1.msra.mxu0 %v2116
    %2221 = vmatprep.subr.mxu0 %v2113
    %2222 = vmatpush1.msra.mxu0 %v2112
    %2223 = vmatprep.subr.mxu0 %v2109
    %2224 = vmatpush1.msra.mxu0 %v2108
    %2225 = vmatprep.subr.mxu0 %v2105
    %2226 = vmatpush1.msra.mxu0 %v2104
    %2227 = vmatprep.subr.mxu0 %v2101
    %2228 = vmatpush1.msra.mxu0 %v2100
    %2229 = vmatprep.subr.mxu0 %v2097
    %2230 = vmatpush1.msra.mxu0 %v2096
    %2231 = vmatprep.subr.mxu0 %v2093
    %2232 = vmatpush1.msra.mxu0 %v2092
    %2233 = vmatprep.subr.mxu0 %v2089
    %2234 = vmatpush1.msra.mxu0 %v2088
    %2235 = vmatprep.subr.mxu0 %v2085
    %2236 = vmatpush1.msra.mxu0 %v2084
    %2237 = vmatprep.subr.mxu0 %v2081
    %2238 = vmatpush1.msra.mxu0 %v2080
    %2239 = vmatprep.subr.mxu0 %v2077
    %2240 = vmatpush1.msra.mxu0 %v2076
    %2241 = vmatprep.subr.mxu0 0.0
    %2242 = vmatpush2.msra.mxu0 0.0
    %2243 = vmatprep.subr.mxu0 0.0
    %2244 = vmatpush2.msra.mxu0 0.0
    %2245 = vmatprep.subr.mxu0 0.0
    %2246 = vmatpush2.msra.mxu0 0.0
    %2247 = vmatprep.subr.mxu0 0.0
    %2248 = vmatpush2.msra.mxu0 0.0
    %2249 = vmatprep.subr.mxu0 0.0
    %2250 = vmatpush2.msra.mxu0 0.0
    %2251 = vmatprep.subr.mxu0 0.0
    %2252 = vmatpush2.msra.mxu0 0.0
    %2253 = vmatprep.subr.mxu0 0.0
    %2254 = vmatpush2.msra.mxu0 0.0
    %2255 = vmatprep.subr.mxu0 0.0
    %2256 = vmatpush2.msra.mxu0 0.0
    %2257 = vmatprep.subr.mxu0 0.0
    %2258 = vmatpush2.msra.mxu0 0.0
    %2259 = vmatprep.subr.mxu0 0.0
    %2260 = vmatpush2.msra.mxu0 0.0
    %2261 = vmatprep.subr.mxu0 0.0
    %2262 = vmatpush2.msra.mxu0 0.0
    %2263 = vmatprep.subr.mxu0 0.0
    %2264 = vmatpush2.msra.mxu0 0.0
    %2265 = vmatprep.subr.mxu0 0.0
    %2266 = vmatpush2.msra.mxu0 0.0
    %2267 = vmatprep.subr.mxu0 0.0
    %2268 = vmatpush2.msra.mxu0 0.0
    %2269 = vmatprep.subr.mxu0 0.0
    %2270 = vmatpush2.msra.mxu0 0.0
    %2271 = vmatprep.subr.mxu0 0.0
    %2272 = vmatpush2.msra.mxu0 0.0
    %2273 = vmatprep.mubr.f32.mxu0 0.0
    %2274 = vmatmul.mubr.f32.gmra.mxu0 %v2073
    %v2275 = vpop.f32.mrf.mxu0
    %v2276 = vadd.f32 0.0, %v2275
    %v2277 = vpop.f32.mrf.mxu0
    %v2278 = vadd.f32 0.0, %v2277
    %2279 = vdwg.mxu0
    %v2280 = vadd.f32 %v2069, %v2205
    %v2281 = vadd.f32 %v2070, %v2207
    %v2282 = vadd.f32 %v2071, %v2276
    %v2283 = vadd.f32 %v2072, %v2278
    %v2284 = vxor.u32 %v2280, 2147483648
    %v2285 = vmul.f32 %v2284, 1.442695
    %v2286 = vpow.pop %v2285
    %v2287 = vadd.f32 %v2286, 1.0
    %v2288 = vrcp.pop %v2287
    %v2289 = vmul.f32 1.0, %v2288
    %v2290 = vxor.u32 %v2281, 2147483648
    %v2291 = vmul.f32 %v2290, 1.442695
    %v2292 = vpow.pop %v2291
    %v2293 = vadd.f32 %v2292, 1.0
    %v2294 = vrcp.pop %v2293
    %v2295 = vmul.f32 1.0, %v2294
    %v2296 = vtanh.pop %v2282
    %v2297 = vxor.u32 %v2283, 2147483648
    %v2298 = vmul.f32 %v2297, 1.442695
    %v2299 = vpow.pop %v2298
    %v2300 = vadd.f32 %v2299, 1.0
    %v2301 = vrcp.pop %v2300
    %v2302 = vmul.f32 1.0, %v2301
    %v2303 = vld [vmem:[#allocation4] sm:$0xff]
    %v2304 = vmul.f32 %v2295, %v2303
    %v2305 = vmul.f32 %v2289, %v2296
    %v2306 = vadd.f32 %v2304, %v2305
    %v2307 = vtanh.pop %v2306
    %v2308 = vmul.f32 %v2302, %v2307
    %2309 = vst [vmem:[#allocation3] sm:$0xff] %v2308
    %2310 = vst [vmem:[#allocation4] sm:$0xff] %v2306
    %v2311 = vld [vmem:[#allocation3] sm:$0xff]
    %v2312 = vld [vmem:[#allocation8] sm:$0xff]
    %v2313 = vld [vmem:[#allocation8 + $0x8] sm:$0xff]
    %v2314 = vld [vmem:[#allocation8 + $0x10] sm:$0xff]
    %v2315 = vld [vmem:[#allocation8 + $0x18] sm:$0xff]
    %v2316 = vld [vmem:[#allocation8 + $0x20] sm:$0xff]
    %v2317 = vld [vmem:[#allocation8 + $0x28] sm:$0xff]
    %v2318 = vld [vmem:[#allocation8 + $0x30] sm:$0xff]
    %v2319 = vld [vmem:[#allocation8 + $0x38] sm:$0xff]
    %v2320 = vld [vmem:[#allocation8 + $0x40] sm:$0xff]
    %v2321 = vld [vmem:[#allocation8 + $0x48] sm:$0xff]
    %v2322 = vld [vmem:[#allocation8 + $0x50] sm:$0xff]
    %v2323 = vld [vmem:[#allocation8 + $0x58] sm:$0xff]
    %v2324 = vld [vmem:[#allocation8 + $0x60] sm:$0xff]
    %v2325 = vld [vmem:[#allocation8 + $0x68] sm:$0xff]
    %v2326 = vld [vmem:[#allocation8 + $0x70] sm:$0xff]
    %v2327 = vld [vmem:[#allocation8 + $0x78] sm:$0xff]
    %v2328 = vld [vmem:[%s5] sm:$0x1]
    %v2330 = vlaneseq
    %v2331 = vshrl.u32 %v2330, 7
    %v2332 = vsub.s32 0, %v2331
    %v2333 = vrot.slane %v2328, %v2332
    %2335 = vmatprep.subr.mxu0 0.0
    %2336 = vmatpush1.msra.mxu0 %v2327
    %2337 = vmatprep.subr.mxu0 0.0
    %2338 = vmatpush1.msra.mxu0 %v2326
    %2339 = vmatprep.subr.mxu0 0.0
    %2340 = vmatpush1.msra.mxu0 %v2325
    %2341 = vmatprep.subr.mxu0 0.0
    %2342 = vmatpush1.msra.mxu0 %v2324
    %2343 = vmatprep.subr.mxu0 0.0
    %2344 = vmatpush1.msra.mxu0 %v2323
    %2345 = vmatprep.subr.mxu0 0.0
    %2346 = vmatpush1.msra.mxu0 %v2322
    %2347 = vmatprep.subr.mxu0 0.0
    %2348 = vmatpush1.msra.mxu0 %v2321
    %2349 = vmatprep.subr.mxu0 0.0
    %2350 = vmatpush1.msra.mxu0 %v2320
    %2351 = vmatprep.subr.mxu0 0.0
    %2352 = vmatpush1.msra.mxu0 %v2319
    %2353 = vmatprep.subr.mxu0 0.0
    %2354 = vmatpush1.msra.mxu0 %v2318
    %2355 = vmatprep.subr.mxu0 0.0
    %2356 = vmatpush1.msra.mxu0 %v2317
    %2357 = vmatprep.subr.mxu0 0.0
    %2358 = vmatpush1.msra.mxu0 %v2316
    %2359 = vmatprep.subr.mxu0 0.0
    %2360 = vmatpush1.msra.mxu0 %v2315
    %2361 = vmatprep.subr.mxu0 0.0
    %2362 = vmatpush1.msra.mxu0 %v2314
    %2363 = vmatprep.subr.mxu0 0.0
    %2364 = vmatpush1.msra.mxu0 %v2313
    %2365 = vmatprep.subr.mxu0 0.0
    %2366 = vmatpush1.msra.mxu0 %v2312
    %2367 = vmatprep.subr.mxu0 0.0
    %2368 = vmatpush2.msra.mxu0 0.0
    %2369 = vmatprep.subr.mxu0 0.0
    %2370 = vmatpush2.msra.mxu0 0.0
    %2371 = vmatprep.subr.mxu0 0.0
    %2372 = vmatpush2.msra.mxu0 0.0
    %2373 = vmatprep.subr.mxu0 0.0
    %2374 = vmatpush2.msra.mxu0 0.0
    %2375 = vmatprep.subr.mxu0 0.0
    %2376 = vmatpush2.msra.mxu0 0.0
    %2377 = vmatprep.subr.mxu0 0.0
    %2378 = vmatpush2.msra.mxu0 0.0
    %2379 = vmatprep.subr.mxu0 0.0
    %2380 = vmatpush2.msra.mxu0 0.0
    %2381 = vmatprep.subr.mxu0 0.0
    %2382 = vmatpush2.msra.mxu0 0.0
    %2383 = vmatprep.subr.mxu0 0.0
    %2384 = vmatpush2.msra.mxu0 0.0
    %2385 = vmatprep.subr.mxu0 0.0
    %2386 = vmatpush2.msra.mxu0 0.0
    %2387 = vmatprep.subr.mxu0 0.0
    %2388 = vmatpush2.msra.mxu0 0.0
    %2389 = vmatprep.subr.mxu0 0.0
    %2390 = vmatpush2.msra.mxu0 0.0
    %2391 = vmatprep.subr.mxu0 0.0
    %2392 = vmatpush2.msra.mxu0 0.0
    %2393 = vmatprep.subr.mxu0 0.0
    %2394 = vmatpush2.msra.mxu0 0.0
    %2395 = vmatprep.subr.mxu0 0.0
    %2396 = vmatpush2.msra.mxu0 0.0
    %2397 = vmatprep.subr.mxu0 0.0
    %2398 = vmatpush2.msra.mxu0 0.0
    %2399 = vmatprep.mubr.f32.mxu0 0.0
    %2400 = vmatmul.mubr.f32.gmra.mxu0 %v2311
    %v2401 = vpop.f32.mrf.mxu0
    %v2402 = vadd.f32 %v2333, %v2401
    %v2403 = vpop.f32.mrf.mxu0
    %2404 = vdwg.mxu0
    %2405 = vst [vmem:[#allocation10] sm:$0xff] %v2402
    // Predicated region
    $region34: #{tpu_custom_call.1} parent=1 // pred_check
      _
    $region35: #{tpu_custom_call.1} parent=1 // pred_check_branch
      %2407 = sbr.rel (0) target = $region37
    $region36: #{tpu_custom_call.1} parent=1 // pred_region
      %s2409 = ssub.s32 128, 128
      %2410 = vsyncadd [#allocation7], %s2409
      %s2412 = sshll.u32 [#allocation10], 4
      %s2413 = int_to_ptr.vmem [resolvable:$true] %s2412
      %2415 = dma.vmem_to_hbm [thread:$0]  %s2413, 128, %s6, [#allocation7]
    $region37: #{tpu_custom_call.1} parent=1 // pred_fallthru
      _
    // Predicated region
    $region38: #{tpu_custom_call.1} parent=1 // pred_check
      _
    $region39: #{tpu_custom_call.1} parent=1 // pred_check_branch
      %2417 = sbr.rel (0) target = $region41
    $region40: #{tpu_custom_call.1} parent=1 // pred_region
      %2418 = dma.done [#allocation7], 128
    $region41: #{tpu_custom_call.1} parent=1 // pred_fallthru
      _
    %2419 = vsyncpa [#allocation6], 1
    %2420 = vsyncpa [#allocation9], 1
    %2421 = vsyncpa [#allocation7], 1

</llo_original>
